<compile_context>
chip_gen: v7x
topology: tpu7x:2x2x1
jax: 0.10.0
libtpu: 0.0.40
codegen_flags: <defaults>
</compile_context>

<pallas_src>
import math

import jax
import jax.numpy as jnp
import numpy as np
from jax.experimental import pallas as pl
from jax.experimental.pallas import tpu as pltpu

N_INPUT = 100     # layer1 input (forward applies layer1 to x, which has 100 dims)
N_HIDDEN = 32
N_OUTPUT = 4
BATCH = 8

DATA_PAD = 256          # 200 -> 256 (zero-padded K for the first control matmul)
CTRL_HIDDEN_PAD = 896   # 800 -> 896 = 7*128 (zero-padded hidden width)

# Merged lane-dense output slab: [ out(4) | u(100) | w1(1) | w2(1) | zeros(22) ]
SLAB = 128
OUT_LO, OUT_HI = 0, 4
U_LO, U_HI = 4, 104
W1_COL = 104
W2_COL = 105


def _linear(x, w_ref, b_ref):
    return jnp.dot(x, w_ref[...], preferred_element_type=jnp.float32) + b_ref[...]


def net_kernel(data_ref, xy_ref,
               l1w_ref, l1b_ref, l2w_ref, l2b_ref,                       # layer1 / layer2
               c1w_ref, c1b_ref, c2w_ref, c2b_ref, c3w_ref, c3b_ref,     # _control (padded 256->896->896->100)
               p1w_ref, p1b_ref, p2w_ref, p2b_ref, p3w_ref, p3b_ref,     # _w (100->200->200->1)
               res_ref):
    B = data_ref.shape[0]
    xy = xy_ref[...]                 # [2B, 100]  (x rows stacked above y rows)
    x = xy[0:B, :]                   # [B, 100]   aligned sublane slice (no lane shifts)

    # --- main trunk: tanh(Linear1(x)) -> Linear2(.)**2 ---
    h1 = jnp.tanh(_linear(x, l1w_ref, l1b_ref))
    out = _linear(h1, l2w_ref, l2b_ref) ** 2                    # [B, 4]

    # --- ControlNet(200, 800, 100) on full data (zero-padded to 256 / 896) ---
    c1 = jnp.maximum(_linear(data_ref[...], c1w_ref, c1b_ref), 0.0)
    c2 = jnp.maximum(_linear(c1, c2w_ref, c2b_ref), 0.0)
    c3 = _linear(c2, c3w_ref, c3b_ref)                          # [B, 100]
    u = c3 * x * 0.02                                           # == c3 * x / 50

    # --- fused _w = ControlNet(100, 200, 1) on [x; y]: one weight pass for both ---
    a = jnp.maximum(_linear(xy, p1w_ref, p1b_ref), 0.0)
    b = jnp.maximum(_linear(a, p2w_ref, p2b_ref), 0.0)
    w_sq = _linear(b, p3w_ref, p3b_ref) ** 2                    # [2B, 1]

    # torch.sum(x ** 2) with no dim => scalar reduction over the whole batch.
    sum_x2 = jnp.sum(x * x, keepdims=True)                      # (1, 1)
    corr = 0.0001 * jnp.exp(-pl.reciprocal(sum_x2, approx=True))
    w1 = w_sq[0:B, :] + corr                                    # [B, 1]
    w2 = w_sq[B:2 * B, :]                                       # [B, 1]

    pad = jnp.zeros((B, SLAB - (N_OUTPUT + 100 + 2)), jnp.float32)
    res_ref[...] = jnp.concatenate([out, u, w1, w2, pad], axis=1)   # single dense store


def init_linear(key, n_in, n_out):
    """Deterministic init matching nn.Linear's U(-1/sqrt(fan_in), 1/sqrt(fan_in)) scheme."""
    kw, kb = jax.random.split(key)
    bound = 1.0 / math.sqrt(n_in)
    w = jax.random.uniform(kw, (n_in, n_out), jnp.float32, -bound, bound)
    b = jax.random.uniform(kb, (1, n_out), jnp.float32, -bound, bound)
    return w, b


def make_params(key):
    keys = jax.random.split(key, 8)
    l1w, l1b = init_linear(keys[0], N_INPUT, N_HIDDEN)       # layer1: 100 -> 32
    l2w, l2b = init_linear(keys[1], N_HIDDEN, N_OUTPUT)      # layer2: 32 -> n_output
    c1w, c1b = init_linear(keys[2], 200, 800)                # _control layer1
    c2w, c2b = init_linear(keys[3], 800, 800)                # _control layer2
    c3w, c3b = init_linear(keys[4], 800, 100)                # _control layer3
    p1w, p1b = init_linear(keys[5], 100, 200)                # _w layer1
    p2w, p2b = init_linear(keys[6], 200, 200)                # _w layer2
    p3w, p3b = init_linear(keys[7], 200, 1)                  # _w layer3
    return (l1w, l1b, l2w, l2b,
            c1w, c1b, c2w, c2b, c3w, c3b,
            p1w, p1b, p2w, p2b, p3w, p3b)


def pad_params(params):
    """Zero-pad the control net to 128-multiple widths (numerically identical)."""
    (l1w, l1b, l2w, l2b,
     c1w, c1b, c2w, c2b, c3w, c3b,
     p1w, p1b, p2w, p2b, p3w, p3b) = params
    dk = DATA_PAD - 200
    dh = CTRL_HIDDEN_PAD - 800
    c1w_p = jnp.pad(c1w, ((0, dk), (0, dh)))
    c1b_p = jnp.pad(c1b, ((0, 0), (0, dh)))
    c2w_p = jnp.pad(c2w, ((0, dh), (0, dh)))
    c2b_p = jnp.pad(c2b, ((0, 0), (0, dh)))
    c3w_p = jnp.pad(c3w, ((0, dh), (0, 0)))
    return (l1w, l1b, l2w, l2b,
            c1w_p, c1b_p, c2w_p, c2b_p, c3w_p, c3b,
            p1w, p1b, p2w, p2b, p3w, p3b)


def net_forward(data, params):
    B = data.shape[0]
    x = data[:, 0:100]
    y = data[:, 100:200]
    xy = jnp.concatenate([x, y], axis=0)                       # [2B, 100], x over y
    data_pad = jnp.pad(data, ((0, 0), (0, DATA_PAD - 200)))    # [B, 256]
    kparams = pad_params(params)

    vmem_spec = pl.BlockSpec(memory_space=pltpu.MemorySpace.VMEM)
    inputs = (data_pad, xy) + tuple(kparams)

    slab = pl.pallas_call(
        net_kernel,
        out_shape=jax.ShapeDtypeStruct((B, SLAB), jnp.float32),
        in_specs=[vmem_spec] * len(inputs),
        out_specs=vmem_spec,
        compiler_params=pltpu.CompilerParams(vmem_limit_bytes=32 << 20),
    )(*inputs)

    out = slab[:, OUT_LO:OUT_HI]
    u = slab[:, U_LO:U_HI]
    w1 = slab[:, W1_COL:W1_COL + 1]
    w2 = slab[:, W2_COL:W2_COL + 1]
    return out, u, w1, w2


def net_forward_ref(data, params):
    """Pure-JAX reference (unpadded) for correctness checking."""
    (l1w, l1b, l2w, l2b,
     c1w, c1b, c2w, c2b, c3w, c3b,
     p1w, p1b, p2w, p2b, p3w, p3b) = params
    x, y = data[:, 0:100], data[:, 100:200]
    h1 = jnp.tanh(x @ l1w + l1b)
    out = (h1 @ l2w + l2b) ** 2
    c1 = jax.nn.relu(data @ c1w + c1b)
    c2 = jax.nn.relu(c1 @ c2w + c2b)
    u = (c2 @ c3w + c3b) * x / 50.0

    def wnet(inp):
        a = jax.nn.relu(inp @ p1w + p1b)
        b = jax.nn.relu(a @ p2w + p2b)
        return b @ p3w + p3b

    w1 = wnet(x) ** 2 + 0.0001 * jnp.exp(-1.0 / jnp.sum(x ** 2))
    w2 = wnet(y) ** 2
    return out, u, w1, w2


if __name__ == "__main__":
    key = jax.random.PRNGKey(0)
    k_data, k_params = jax.random.split(key)
    data = jax.random.normal(k_data, (BATCH, 200), dtype=jnp.float32)
    params = make_params(k_params)

    outs = net_forward(data, params)
    outs = jax.block_until_ready(outs)

    refs = net_forward_ref(data, params)
    for o, r in zip(outs, refs):
        np.testing.assert_allclose(np.asarray(o), np.asarray(r), rtol=2e-4, atol=5e-5)

    print("KERNEL_OK")
</pallas_src>

<mosaic_0001>
module attributes {stable_mosaic.version = 11 : i64} {
  func.func @net_kernel(%arg0: memref<8x256xf32, #tpu.memory_space<vmem>>, %arg1: memref<16x100xf32, #tpu.memory_space<vmem>>, %arg2: memref<100x32xf32, #tpu.memory_space<vmem>>, %arg3: memref<1x32xf32, #tpu.memory_space<vmem>>, %arg4: memref<32x4xf32, #tpu.memory_space<vmem>>, %arg5: memref<1x4xf32, #tpu.memory_space<vmem>>, %arg6: memref<256x896xf32, #tpu.memory_space<vmem>>, %arg7: memref<1x896xf32, #tpu.memory_space<vmem>>, %arg8: memref<896x896xf32, #tpu.memory_space<vmem>>, %arg9: memref<1x896xf32, #tpu.memory_space<vmem>>, %arg10: memref<896x100xf32, #tpu.memory_space<vmem>>, %arg11: memref<1x100xf32, #tpu.memory_space<vmem>>, %arg12: memref<100x200xf32, #tpu.memory_space<vmem>>, %arg13: memref<1x200xf32, #tpu.memory_space<vmem>>, %arg14: memref<200x200xf32, #tpu.memory_space<vmem>>, %arg15: memref<1x200xf32, #tpu.memory_space<vmem>>, %arg16: memref<200x1xf32, #tpu.memory_space<vmem>>, %arg17: memref<1x1xf32, #tpu.memory_space<vmem>>, %arg18: memref<8x128xf32, #tpu.memory_space<vmem>>) attributes {dimension_semantics = [], scalar_prefetch = 0 : i64, scratch_operands = 0 : i64, tpu.core_type = #tpu.core_type<tc>} {
    %c0 = arith.constant 0 : index
    %c0_0 = arith.constant 0 : index
    %0 = vector.load %arg1[%c0, %c0_0] : memref<16x100xf32, #tpu.memory_space<vmem>>, vector<16x100xf32>
    %1 = vector.extract_strided_slice %0 {offsets = [0, 0], sizes = [8, 100], strides = [1, 1]} : vector<16x100xf32> to vector<8x100xf32>
    %c0_1 = arith.constant 0 : index
    %c0_2 = arith.constant 0 : index
    %2 = vector.load %arg2[%c0_1, %c0_2] : memref<100x32xf32, #tpu.memory_space<vmem>>, vector<100x32xf32>
    %cst = arith.constant dense<0.000000e+00> : vector<8x32xf32>
    %3 = tpu.matmul %1, %2, %cst {dimension_numbers = #tpu.dot_dimension_numbers<[1], [0], [0], [1], [0, 0, 1, 1], [], []>} : vector<8x100xf32>, vector<100x32xf32>, vector<8x32xf32> -> vector<8x32xf32>
    %c0_3 = arith.constant 0 : index
    %c0_4 = arith.constant 0 : index
    %4 = vector.load %arg3[%c0_3, %c0_4] : memref<1x32xf32, #tpu.memory_space<vmem>>, vector<1x32xf32>
    %5 = vector.broadcast %4 : vector<1x32xf32> to vector<8x32xf32>
    %6 = arith.addf %3, %5 : vector<8x32xf32>
    %7 = math.tanh %6 : vector<8x32xf32>
    %c0_5 = arith.constant 0 : index
    %c0_6 = arith.constant 0 : index
    %8 = vector.load %arg4[%c0_5, %c0_6] : memref<32x4xf32, #tpu.memory_space<vmem>>, vector<32x4xf32>
    %cst_7 = arith.constant dense<0.000000e+00> : vector<8x4xf32>
    %9 = tpu.matmul %7, %8, %cst_7 {dimension_numbers = #tpu.dot_dimension_numbers<[1], [0], [0], [1], [0, 0, 1, 1], [], []>} : vector<8x32xf32>, vector<32x4xf32>, vector<8x4xf32> -> vector<8x4xf32>
    %c0_8 = arith.constant 0 : index
    %c0_9 = arith.constant 0 : index
    %10 = vector.load %arg5[%c0_8, %c0_9] : memref<1x4xf32, #tpu.memory_space<vmem>>, vector<1x4xf32>
    %11 = vector.broadcast %10 : vector<1x4xf32> to vector<8x4xf32>
    %12 = arith.addf %9, %11 : vector<8x4xf32>
    %13 = arith.mulf %12, %12 : vector<8x4xf32>
    %c0_10 = arith.constant 0 : index
    %c0_11 = arith.constant 0 : index
    %14 = vector.load %arg0[%c0_10, %c0_11] : memref<8x256xf32, #tpu.memory_space<vmem>>, vector<8x256xf32>
    %c0_12 = arith.constant 0 : index
    %c0_13 = arith.constant 0 : index
    %15 = vector.load %arg6[%c0_12, %c0_13] : memref<256x896xf32, #tpu.memory_space<vmem>>, vector<256x896xf32>
    %cst_14 = arith.constant dense<0.000000e+00> : vector<8x896xf32>
    %16 = tpu.matmul %14, %15, %cst_14 {dimension_numbers = #tpu.dot_dimension_numbers<[1], [0], [0], [1], [0, 0, 1, 1], [], []>} : vector<8x256xf32>, vector<256x896xf32>, vector<8x896xf32> -> vector<8x896xf32>
    %c0_15 = arith.constant 0 : index
    %c0_16 = arith.constant 0 : index
    %17 = vector.load %arg7[%c0_15, %c0_16] : memref<1x896xf32, #tpu.memory_space<vmem>>, vector<1x896xf32>
    %18 = vector.broadcast %17 : vector<1x896xf32> to vector<8x896xf32>
    %19 = arith.addf %16, %18 : vector<8x896xf32>
    %cst_17 = arith.constant 0.000000e+00 : f32
    %20 = vector.broadcast %cst_17 : f32 to vector<8x896xf32>
    %21 = arith.maximumf %19, %20 : vector<8x896xf32>
    %c0_18 = arith.constant 0 : index
    %c0_19 = arith.constant 0 : index
    %22 = vector.load %arg8[%c0_18, %c0_19] : memref<896x896xf32, #tpu.memory_space<vmem>>, vector<896x896xf32>
    %cst_20 = arith.constant dense<0.000000e+00> : vector<8x896xf32>
    %23 = tpu.matmul %21, %22, %cst_20 {dimension_numbers = #tpu.dot_dimension_numbers<[1], [0], [0], [1], [0, 0, 1, 1], [], []>} : vector<8x896xf32>, vector<896x896xf32>, vector<8x896xf32> -> vector<8x896xf32>
    %c0_21 = arith.constant 0 : index
    %c0_22 = arith.constant 0 : index
    %24 = vector.load %arg9[%c0_21, %c0_22] : memref<1x896xf32, #tpu.memory_space<vmem>>, vector<1x896xf32>
    %25 = vector.broadcast %24 : vector<1x896xf32> to vector<8x896xf32>
    %26 = arith.addf %23, %25 : vector<8x896xf32>
    %cst_23 = arith.constant 0.000000e+00 : f32
    %27 = vector.broadcast %cst_23 : f32 to vector<8x896xf32>
    %28 = arith.maximumf %26, %27 : vector<8x896xf32>
    %c0_24 = arith.constant 0 : index
    %c0_25 = arith.constant 0 : index
    %29 = vector.load %arg10[%c0_24, %c0_25] : memref<896x100xf32, #tpu.memory_space<vmem>>, vector<896x100xf32>
    %cst_26 = arith.constant dense<0.000000e+00> : vector<8x100xf32>
    %30 = tpu.matmul %28, %29, %cst_26 {dimension_numbers = #tpu.dot_dimension_numbers<[1], [0], [0], [1], [0, 0, 1, 1], [], []>} : vector<8x896xf32>, vector<896x100xf32>, vector<8x100xf32> -> vector<8x100xf32>
    %c0_27 = arith.constant 0 : index
    %c0_28 = arith.constant 0 : index
    %31 = vector.load %arg11[%c0_27, %c0_28] : memref<1x100xf32, #tpu.memory_space<vmem>>, vector<1x100xf32>
    %32 = vector.broadcast %31 : vector<1x100xf32> to vector<8x100xf32>
    %33 = arith.addf %30, %32 : vector<8x100xf32>
    %34 = arith.mulf %33, %1 : vector<8x100xf32>
    %cst_29 = arith.constant 2.000000e-02 : f32
    %35 = vector.broadcast %cst_29 : f32 to vector<8x100xf32>
    %36 = arith.mulf %34, %35 : vector<8x100xf32>
    %c0_30 = arith.constant 0 : index
    %c0_31 = arith.constant 0 : index
    %37 = vector.load %arg12[%c0_30, %c0_31] : memref<100x200xf32, #tpu.memory_space<vmem>>, vector<100x200xf32>
    %cst_32 = arith.constant dense<0.000000e+00> : vector<16x200xf32>
    %38 = tpu.matmul %0, %37, %cst_32 {dimension_numbers = #tpu.dot_dimension_numbers<[1], [0], [0], [1], [0, 0, 1, 1], [], []>} : vector<16x100xf32>, vector<100x200xf32>, vector<16x200xf32> -> vector<16x200xf32>
    %c0_33 = arith.constant 0 : index
    %c0_34 = arith.constant 0 : index
    %39 = vector.load %arg13[%c0_33, %c0_34] : memref<1x200xf32, #tpu.memory_space<vmem>>, vector<1x200xf32>
    %40 = vector.broadcast %39 : vector<1x200xf32> to vector<16x200xf32>
    %41 = arith.addf %38, %40 : vector<16x200xf32>
    %cst_35 = arith.constant 0.000000e+00 : f32
    %42 = vector.broadcast %cst_35 : f32 to vector<16x200xf32>
    %43 = arith.maximumf %41, %42 : vector<16x200xf32>
    %c0_36 = arith.constant 0 : index
    %c0_37 = arith.constant 0 : index
    %44 = vector.load %arg14[%c0_36, %c0_37] : memref<200x200xf32, #tpu.memory_space<vmem>>, vector<200x200xf32>
    %cst_38 = arith.constant dense<0.000000e+00> : vector<16x200xf32>
    %45 = tpu.matmul %43, %44, %cst_38 {dimension_numbers = #tpu.dot_dimension_numbers<[1], [0], [0], [1], [0, 0, 1, 1], [], []>} : vector<16x200xf32>, vector<200x200xf32>, vector<16x200xf32> -> vector<16x200xf32>
    %c0_39 = arith.constant 0 : index
    %c0_40 = arith.constant 0 : index
    %46 = vector.load %arg15[%c0_39, %c0_40] : memref<1x200xf32, #tpu.memory_space<vmem>>, vector<1x200xf32>
    %47 = vector.broadcast %46 : vector<1x200xf32> to vector<16x200xf32>
    %48 = arith.addf %45, %47 : vector<16x200xf32>
    %cst_41 = arith.constant 0.000000e+00 : f32
    %49 = vector.broadcast %cst_41 : f32 to vector<16x200xf32>
    %50 = arith.maximumf %48, %49 : vector<16x200xf32>
    %c0_42 = arith.constant 0 : index
    %c0_43 = arith.constant 0 : index
    %51 = vector.load %arg16[%c0_42, %c0_43] : memref<200x1xf32, #tpu.memory_space<vmem>>, vector<200x1xf32>
    %cst_44 = arith.constant dense<0.000000e+00> : vector<16x1xf32>
    %52 = tpu.matmul %50, %51, %cst_44 {dimension_numbers = #tpu.dot_dimension_numbers<[1], [0], [0], [1], [0, 0, 1, 1], [], []>} : vector<16x200xf32>, vector<200x1xf32>, vector<16x1xf32> -> vector<16x1xf32>
    %c0_45 = arith.constant 0 : index
    %c0_46 = arith.constant 0 : index
    %53 = vector.load %arg17[%c0_45, %c0_46] : memref<1x1xf32, #tpu.memory_space<vmem>>, vector<1x1xf32>
    %54 = vector.broadcast %53 : vector<1x1xf32> to vector<16x1xf32>
    %55 = arith.addf %52, %54 : vector<16x1xf32>
    %56 = arith.mulf %55, %55 : vector<16x1xf32>
    %57 = arith.mulf %1, %1 : vector<8x100xf32>
    %58 = vector.shape_cast %57 : vector<8x100xf32> to vector<1x8x100xf32>
    %cst_47 = arith.constant dense<0.000000e+00> : vector<1xf32>
    %59 = vector.multi_reduction <add>, %58, %cst_47 [1, 2] : vector<1x8x100xf32> to vector<1xf32>
    %60 = vector.shape_cast %59 : vector<1xf32> to vector<1x1x1xf32>
    %61 = vector.extract %60[0, 0, 0] : f32 from vector<1x1x1xf32>
    %62 = vector.broadcast %61 : f32 to vector<1x1xf32>
    %63 = tpu.reciprocal %62 {approx = true} : vector<1x1xf32> -> vector<1x1xf32>
    %cst_48 = arith.constant 0.000000e+00 : f32
    %64 = vector.broadcast %cst_48 : f32 to vector<1x1xf32>
    %65 = arith.subf %64, %63 : vector<1x1xf32>
    %66 = math.exp %65 : vector<1x1xf32>
    %cst_49 = arith.constant 9.99999974E-5 : f32
    %67 = vector.broadcast %cst_49 : f32 to vector<1x1xf32>
    %68 = arith.mulf %67, %66 : vector<1x1xf32>
    %69 = vector.extract_strided_slice %56 {offsets = [0, 0], sizes = [8, 1], strides = [1, 1]} : vector<16x1xf32> to vector<8x1xf32>
    %70 = vector.broadcast %68 : vector<1x1xf32> to vector<8x1xf32>
    %71 = arith.addf %69, %70 : vector<8x1xf32>
    %72 = vector.extract_strided_slice %56 {offsets = [8, 0], sizes = [8, 1], strides = [1, 1]} : vector<16x1xf32> to vector<8x1xf32>
    %cst_50 = arith.constant 0.000000e+00 : f32
    %73 = vector.broadcast %cst_50 : f32 to vector<8x22xf32>
    %74 = tpu.concatenate %13, %36, %71, %72, %73 in 1 : vector<8x4xf32>, vector<8x100xf32>, vector<8x1xf32>, vector<8x1xf32>, vector<8x22xf32> -> vector<8x128xf32>
    %c0_51 = arith.constant 0 : index
    %c0_52 = arith.constant 0 : index
    %75 = vector.load %arg18[%c0_51, %c0_52] : memref<8x128xf32, #tpu.memory_space<vmem>>, vector<8x128xf32>
    tpu.vector_store %arg18[%c0_51, %c0_52], %74 {strides = array<i32>} : memref<8x128xf32, #tpu.memory_space<vmem>>, vector<8x128xf32>,
    return
  }
}

</mosaic_0001>

<llo_original>
// kernel: tpu_custom_call.1
$region0: #{tpu_custom_call.1}
  #allocation0 [shape = 'u32[]', space=smem, size = 0x4, offset = 0x4, fixed_abs, tag = 'smem constant byte address 0x4 - core index']
  #allocation1 [shape = 'u32[144,128]{1,0:T(1,128)}', space=vmem, size = 0x12000, scoped, tag = 'internal scratch']
  #allocation2 [shape = 'f32[1,1]{1,0:T(1,128)S(1)}', space=vmem, size = 0x200, scoped, tag = 'scoped memory for tpu_custom_call.1']
  %s0 = inlined_call_operand.hbm [shape: f32[8,256], index: 0, kind: input, shape index: {}]
  %s1 = inlined_call_operand.hbm [shape: f32[16,100], index: 1, kind: input, shape index: {}]
  %s2 = inlined_call_operand.vmem [shape: f32[100,32], index: 2, kind: input, shape index: {}]
  %s3 = inlined_call_operand.hbm [shape: f32[1,32], index: 3, kind: input, shape index: {}]
  %s4 = inlined_call_operand.vmem [shape: f32[32,4], index: 4, kind: input, shape index: {}]
  %s5 = inlined_call_operand.hbm [shape: f32[1,4], index: 5, kind: input, shape index: {}]
  %s6 = inlined_call_operand.hbm [shape: f32[256,896], index: 6, kind: input, shape index: {}]
  %s7 = inlined_call_operand.hbm [shape: f32[1,896], index: 7, kind: input, shape index: {}]
  %s8 = inlined_call_operand.hbm [shape: f32[896,896], index: 8, kind: input, shape index: {}]
  %s9 = inlined_call_operand.hbm [shape: f32[1,896], index: 9, kind: input, shape index: {}]
  %s10 = inlined_call_operand.vmem [shape: f32[896,100], index: 10, kind: input, shape index: {}]
  %s11 = inlined_call_operand.hbm [shape: f32[1,100], index: 11, kind: input, shape index: {}]
  %s12 = inlined_call_operand.vmem [shape: f32[100,200], index: 12, kind: input, shape index: {}]
  %s13 = inlined_call_operand.hbm [shape: f32[1,200], index: 13, kind: input, shape index: {}]
  %s14 = inlined_call_operand.hbm [shape: f32[200,200], index: 14, kind: input, shape index: {}]
  %s15 = inlined_call_operand.hbm [shape: f32[1,200], index: 15, kind: input, shape index: {}]
  %s16 = inlined_call_operand.vmem [shape: f32[200,1], index: 16, kind: input, shape index: {}]
  %s17 = inlined_call_operand.<no memory space> [shape: f32[1,1], index: 17, kind: input, shape index: {}]
  %s18 = inlined_call_operand.hbm [shape: f32[8,128], index: 18, kind: output, shape index: {}]
  %s19 = sld [smem:[#allocation0]]
  $region130: #{tpu_custom_call.1} parent=0
    _
  %s21 = ssub.s32 1, %s19
  %s22 = scalar_select 0, %s21, %s19
  %v23 = vstv %s17
  %24 = vst [vmem:[#allocation2] sm:$0x1] %v23
  $region1: #{tpu_custom_call.1} parent=0
    #allocation3 [shape = 'u8[8192]{0}', space=vmem, size = 0x2000, scoped, tag = 'input window, operand 0, single buffered']
    #allocation4 [shape = 's32[1]{0}', space=sflag, size = 0x4, scoped, tag = 'scoped memory for tpu_custom_call.1']
    #allocation5 [shape = 's32[1]{0}', space=sflag, size = 0x4, scoped, tag = 'scoped memory for tpu_custom_call.1']
    #allocation6 [shape = 'u8[8192]{0}', space=vmem, size = 0x2000, scoped, tag = 'input window, operand 1, single buffered']
    #allocation7 [shape = 's32[1]{0}', space=sflag, size = 0x4, scoped, tag = 'scoped memory for tpu_custom_call.1']
    #allocation8 [shape = 'u8[512]{0}', space=vmem, size = 0x400, scoped, tag = 'input window, operand 3, single buffered']
    #allocation9 [shape = 'u8[512]{0}', space=vmem, size = 0x400, scoped, tag = 'input window, operand 5, single buffered']
    #allocation10 [shape = 's32[1]{0}', space=sflag, size = 0x4, scoped, tag = 'scoped memory for tpu_custom_call.1']
    #allocation11 [shape = 'u8[917504]{0}', space=vmem, size = 0xe0000, scoped, tag = 'input window, operand 6, single buffered']
    #allocation12 [shape = 'u8[3584]{0}', space=vmem, size = 0x1000, scoped, tag = 'input window, operand 7, single buffered']
    #allocation13 [shape = 's32[1]{0}', space=sflag, size = 0x4, scoped, tag = 'scoped memory for tpu_custom_call.1']
    #allocation14 [shape = 'u8[3211264]{0}', space=vmem, size = 0x310000, scoped, tag = 'input window, operand 8, single buffered']
    #allocation15 [shape = 'u8[3584]{0}', space=vmem, size = 0x1000, scoped, tag = 'input window, operand 9, single buffered']
    #allocation16 [shape = 's32[1]{0}', space=sflag, size = 0x4, scoped, tag = 'scoped memory for tpu_custom_call.1']
    #allocation17 [shape = 'u8[512]{0}', space=vmem, size = 0x400, scoped, tag = 'input window, operand 11, single buffered']
    #allocation18 [shape = 'u8[1024]{0}', space=vmem, size = 0x400, scoped, tag = 'input window, operand 13, single buffered']
    #allocation19 [shape = 's32[1]{0}', space=sflag, size = 0x4, scoped, tag = 'scoped memory for tpu_custom_call.1']
    #allocation20 [shape = 'u8[204800]{0}', space=vmem, size = 0x32000, scoped, tag = 'input window, operand 14, single buffered']
    #allocation21 [shape = 'u8[1024]{0}', space=vmem, size = 0x400, scoped, tag = 'input window, operand 15, single buffered']
    #allocation22 [shape = 's32[1]{0}', space=sflag, size = 0x4, scoped, tag = 'scoped memory for tpu_custom_call.1']
    #allocation23 [shape = 'u8[4096]{0}', space=vmem, size = 0x1000, scoped, tag = 'output window, operand 0, single buffered']
    %25 = vsyncpa [#allocation4], 0
    %26 = vsyncpa [#allocation7], 0
    %27 = vsyncpa [#allocation10], 0
    %28 = vsyncpa [#allocation13], 0
    %29 = vsyncpa [#allocation16], 0
    %30 = vsyncpa [#allocation19], 0
    %31 = vsyncpa [#allocation22], 0
    %32 = vsyncpa [#allocation5], 0
    // Predicated region
    $region2: #{tpu_custom_call.1} parent=1 // pred_check
      _
    $region3: #{tpu_custom_call.1} parent=1 // pred_check_branch
      %34 = sbr.rel (0) target = $region5
    $region4: #{tpu_custom_call.1} parent=1 // pred_region
      %s36 = ssub.s32 256, 256
      %37 = vsyncadd [#allocation4], %s36
      %s39 = sshll.u32 [#allocation3], 4
      %s40 = int_to_ptr.vmem [resolvable:$true] %s39
      %42 = dma.hbm_to_vmem [thread:$0]  %s0, 256, %s40, [#allocation4]
    $region5: #{tpu_custom_call.1} parent=1 // pred_fallthru
      _
    // Predicated region
    $region6: #{tpu_custom_call.1} parent=1 // pred_check
      _
    $region7: #{tpu_custom_call.1} parent=1 // pred_check_branch
      %44 = sbr.rel (0) target = $region9
    $region8: #{tpu_custom_call.1} parent=1 // pred_region
      %s46 = ssub.s32 256, 256
      %47 = vsyncadd [#allocation7], %s46
      %s48 = sshll.u32 [#allocation6], 4
      %s49 = int_to_ptr.vmem [resolvable:$true] %s48
      %54 = dma.hbm_to_vmem [thread:$0]  %s1, 256, %s49, [#allocation7], 128, 128, 8
    $region9: #{tpu_custom_call.1} parent=1 // pred_fallthru
      _
    // Predicated region
    $region10: #{tpu_custom_call.1} parent=1 // pred_check
      _
    $region11: #{tpu_custom_call.1} parent=1 // pred_check_branch
      %56 = sbr.rel (0) target = $region13
    $region12: #{tpu_custom_call.1} parent=1 // pred_region
      _
    $region13: #{tpu_custom_call.1} parent=1 // pred_fallthru
      _
    // Predicated region
    $region14: #{tpu_custom_call.1} parent=1 // pred_check
      _
    $region15: #{tpu_custom_call.1} parent=1 // pred_check_branch
      %58 = sbr.rel (0) target = $region17
    $region16: #{tpu_custom_call.1} parent=1 // pred_region
      %s60 = ssub.s32 16, 16
      %61 = vsyncadd [#allocation7], %s60
      %s63 = sshll.u32 [#allocation8], 4
      %s64 = int_to_ptr.vmem [resolvable:$true] %s63
      %66 = dma.hbm_to_vmem [thread:$0]  %s3, 16, %s64, [#allocation7]
    $region17: #{tpu_custom_call.1} parent=1 // pred_fallthru
      _
    // Predicated region
    $region18: #{tpu_custom_call.1} parent=1 // pred_check
      _
    $region19: #{tpu_custom_call.1} parent=1 // pred_check_branch
      %68 = sbr.rel (0) target = $region21
    $region20: #{tpu_custom_call.1} parent=1 // pred_region
      _
    $region21: #{tpu_custom_call.1} parent=1 // pred_fallthru
      _
    // Predicated region
    $region22: #{tpu_custom_call.1} parent=1 // pred_check
      _
    $region23: #{tpu_custom_call.1} parent=1 // pred_check_branch
      %70 = sbr.rel (0) target = $region25
    $region24: #{tpu_custom_call.1} parent=1 // pred_region
      %s72 = ssub.s32 16, 16
      %73 = vsyncadd [#allocation10], %s72
      %s75 = sshll.u32 [#allocation9], 4
      %s76 = int_to_ptr.vmem [resolvable:$true] %s75
      %78 = dma.hbm_to_vmem [thread:$0]  %s5, 16, %s76, [#allocation10]
    $region25: #{tpu_custom_call.1} parent=1 // pred_fallthru
      _
    // Predicated region
    $region26: #{tpu_custom_call.1} parent=1 // pred_check
      _
    $region27: #{tpu_custom_call.1} parent=1 // pred_check_branch
      %80 = sbr.rel (0) target = $region29
    $region28: #{tpu_custom_call.1} parent=1 // pred_region
      %s82 = ssub.s32 28672, 28672
      %83 = vsyncadd [#allocation10], %s82
      %s84 = sshll.u32 [#allocation11], 4
      %s85 = int_to_ptr.vmem [resolvable:$true] %s84
      %90 = dma.hbm_to_vmem [thread:$0]  %s6, 28672, %s85, [#allocation10], 896, 896, 56
    $region29: #{tpu_custom_call.1} parent=1 // pred_fallthru
      _
    // Predicated region
    $region30: #{tpu_custom_call.1} parent=1 // pred_check
      _
    $region31: #{tpu_custom_call.1} parent=1 // pred_check_branch
      %92 = sbr.rel (0) target = $region33
    $region32: #{tpu_custom_call.1} parent=1 // pred_region
      %s94 = ssub.s32 112, 112
      %95 = vsyncadd [#allocation13], %s94
      %s97 = sshll.u32 [#allocation12], 4
      %s98 = int_to_ptr.vmem [resolvable:$true] %s97
      %100 = dma.hbm_to_vmem [thread:$0]  %s7, 112, %s98, [#allocation13]
    $region33: #{tpu_custom_call.1} parent=1 // pred_fallthru
      _
    // Predicated region
    $region34: #{tpu_custom_call.1} parent=1 // pred_check
      _
    $region35: #{tpu_custom_call.1} parent=1 // pred_check_branch
      %102 = sbr.rel (0) target = $region37
    $region36: #{tpu_custom_call.1} parent=1 // pred_region
      %s104 = ssub.s32 100352, 100352
      %105 = vsyncadd [#allocation13], %s104
      %s106 = sshll.u32 [#allocation14], 4
      %s107 = int_to_ptr.vmem [resolvable:$true] %s106
      %112 = dma.hbm_to_vmem [thread:$0]  %s8, 100352, %s107, [#allocation13], 896, 896, 56
    $region37: #{tpu_custom_call.1} parent=1 // pred_fallthru
      _
    // Predicated region
    $region38: #{tpu_custom_call.1} parent=1 // pred_check
      _
    $region39: #{tpu_custom_call.1} parent=1 // pred_check_branch
      %114 = sbr.rel (0) target = $region41
    $region40: #{tpu_custom_call.1} parent=1 // pred_region
      %s116 = ssub.s32 112, 112
      %117 = vsyncadd [#allocation16], %s116
      %s119 = sshll.u32 [#allocation15], 4
      %s120 = int_to_ptr.vmem [resolvable:$true] %s119
      %122 = dma.hbm_to_vmem [thread:$0]  %s9, 112, %s120, [#allocation16]
    $region41: #{tpu_custom_call.1} parent=1 // pred_fallthru
      _
    // Predicated region
    $region42: #{tpu_custom_call.1} parent=1 // pred_check
      _
    $region43: #{tpu_custom_call.1} parent=1 // pred_check_branch
      %124 = sbr.rel (0) target = $region45
    $region44: #{tpu_custom_call.1} parent=1 // pred_region
      _
    $region45: #{tpu_custom_call.1} parent=1 // pred_fallthru
      _
    // Predicated region
    $region46: #{tpu_custom_call.1} parent=1 // pred_check
      _
    $region47: #{tpu_custom_call.1} parent=1 // pred_check_branch
      %126 = sbr.rel (0) target = $region49
    $region48: #{tpu_custom_call.1} parent=1 // pred_region
      %s128 = ssub.s32 16, 16
      %129 = vsyncadd [#allocation16], %s128
      %s131 = sshll.u32 [#allocation17], 4
      %s132 = int_to_ptr.vmem [resolvable:$true] %s131
      %134 = dma.hbm_to_vmem [thread:$0]  %s11, 16, %s132, [#allocation16]
    $region49: #{tpu_custom_call.1} parent=1 // pred_fallthru
      _
    // Predicated region
    $region50: #{tpu_custom_call.1} parent=1 // pred_check
      _
    $region51: #{tpu_custom_call.1} parent=1 // pred_check_branch
      %136 = sbr.rel (0) target = $region53
    $region52: #{tpu_custom_call.1} parent=1 // pred_region
      _
    $region53: #{tpu_custom_call.1} parent=1 // pred_fallthru
      _
    // Predicated region
    $region54: #{tpu_custom_call.1} parent=1 // pred_check
      _
    $region55: #{tpu_custom_call.1} parent=1 // pred_check_branch
      %138 = sbr.rel (0) target = $region57
    $region56: #{tpu_custom_call.1} parent=1 // pred_region
      %s140 = ssub.s32 32, 32
      %141 = vsyncadd [#allocation19], %s140
      %s143 = sshll.u32 [#allocation18], 4
      %s144 = int_to_ptr.vmem [resolvable:$true] %s143
      %146 = dma.hbm_to_vmem [thread:$0]  %s13, 32, %s144, [#allocation19]
    $region57: #{tpu_custom_call.1} parent=1 // pred_fallthru
      _
    // Predicated region
    $region58: #{tpu_custom_call.1} parent=1 // pred_check
      _
    $region59: #{tpu_custom_call.1} parent=1 // pred_check_branch
      %148 = sbr.rel (0) target = $region61
    $region60: #{tpu_custom_call.1} parent=1 // pred_region
      %s150 = ssub.s32 6400, 6400
      %151 = vsyncadd [#allocation19], %s150
      %s152 = sshll.u32 [#allocation20], 4
      %s153 = int_to_ptr.vmem [resolvable:$true] %s152
      %158 = dma.hbm_to_vmem [thread:$0]  %s14, 6400, %s153, [#allocation19], 256, 256, 16
    $region61: #{tpu_custom_call.1} parent=1 // pred_fallthru
      _
    // Predicated region
    $region62: #{tpu_custom_call.1} parent=1 // pred_check
      _
    $region63: #{tpu_custom_call.1} parent=1 // pred_check_branch
      %160 = sbr.rel (0) target = $region65
    $region64: #{tpu_custom_call.1} parent=1 // pred_region
      %s162 = ssub.s32 32, 32
      %163 = vsyncadd [#allocation22], %s162
      %s165 = sshll.u32 [#allocation21], 4
      %s166 = int_to_ptr.vmem [resolvable:$true] %s165
      %168 = dma.hbm_to_vmem [thread:$0]  %s15, 32, %s166, [#allocation22]
    $region65: #{tpu_custom_call.1} parent=1 // pred_fallthru
      _
    // Predicated region
    $region66: #{tpu_custom_call.1} parent=1 // pred_check
      _
    $region67: #{tpu_custom_call.1} parent=1 // pred_check_branch
      %170 = sbr.rel (0) target = $region69
    $region68: #{tpu_custom_call.1} parent=1 // pred_region
      _
    $region69: #{tpu_custom_call.1} parent=1 // pred_fallthru
      _
    // Predicated region
    $region70: #{tpu_custom_call.1} parent=1 // pred_check
      _
    $region71: #{tpu_custom_call.1} parent=1 // pred_check_branch
      %172 = sbr.rel (0) target = $region73
    $region72: #{tpu_custom_call.1} parent=1 // pred_region
      _
    $region73: #{tpu_custom_call.1} parent=1 // pred_fallthru
      _
    // Predicated region
    $region74: #{tpu_custom_call.1} parent=1 // pred_check
      _
    $region75: #{tpu_custom_call.1} parent=1 // pred_check_branch
      %174 = sbr.rel (0) target = $region77
    $region76: #{tpu_custom_call.1} parent=1 // pred_region
      %175 = dma.done [#allocation4], 256
    $region77: #{tpu_custom_call.1} parent=1 // pred_fallthru
      _
    // Predicated region
    $region78: #{tpu_custom_call.1} parent=1 // pred_check
      _
    $region79: #{tpu_custom_call.1} parent=1 // pred_check_branch
      %177 = sbr.rel (0) target = $region81
    $region80: #{tpu_custom_call.1} parent=1 // pred_region
      %178 = dma.done [#allocation7], 256
    $region81: #{tpu_custom_call.1} parent=1 // pred_fallthru
      _
    // Predicated region
    $region82: #{tpu_custom_call.1} parent=1 // pred_check
      _
    $region83: #{tpu_custom_call.1} parent=1 // pred_check_branch
      %180 = sbr.rel (0) target = $region85
    $region84: #{tpu_custom_call.1} parent=1 // pred_region
      %181 = dma.done [#allocation7], 16
    $region85: #{tpu_custom_call.1} parent=1 // pred_fallthru
      _
    // Predicated region
    $region86: #{tpu_custom_call.1} parent=1 // pred_check
      _
    $region87: #{tpu_custom_call.1} parent=1 // pred_check_branch
      %183 = sbr.rel (0) target = $region89
    $region88: #{tpu_custom_call.1} parent=1 // pred_region
      %184 = dma.done [#allocation10], 16
    $region89: #{tpu_custom_call.1} parent=1 // pred_fallthru
      _
    // Predicated region
    $region90: #{tpu_custom_call.1} parent=1 // pred_check
      _
    $region91: #{tpu_custom_call.1} parent=1 // pred_check_branch
      %186 = sbr.rel (0) target = $region93
    $region92: #{tpu_custom_call.1} parent=1 // pred_region
      %187 = dma.done [#allocation10], 28672
    $region93: #{tpu_custom_call.1} parent=1 // pred_fallthru
      _
    // Predicated region
    $region94: #{tpu_custom_call.1} parent=1 // pred_check
      _
    $region95: #{tpu_custom_call.1} parent=1 // pred_check_branch
      %189 = sbr.rel (0) target = $region97
    $region96: #{tpu_custom_call.1} parent=1 // pred_region
      %190 = dma.done [#allocation13], 112
    $region97: #{tpu_custom_call.1} parent=1 // pred_fallthru
      _
    // Predicated region
    $region98: #{tpu_custom_call.1} parent=1 // pred_check
      _
    $region99: #{tpu_custom_call.1} parent=1 // pred_check_branch
      %192 = sbr.rel (0) target = $region101
    $region100: #{tpu_custom_call.1} parent=1 // pred_region
      %193 = dma.done [#allocation13], 100352
    $region101: #{tpu_custom_call.1} parent=1 // pred_fallthru
      _
    // Predicated region
    $region102: #{tpu_custom_call.1} parent=1 // pred_check
      _
    $region103: #{tpu_custom_call.1} parent=1 // pred_check_branch
      %195 = sbr.rel (0) target = $region105
    $region104: #{tpu_custom_call.1} parent=1 // pred_region
      %196 = dma.done [#allocation16], 112
    $region105: #{tpu_custom_call.1} parent=1 // pred_fallthru
      _
    // Predicated region
    $region106: #{tpu_custom_call.1} parent=1 // pred_check
      _
    $region107: #{tpu_custom_call.1} parent=1 // pred_check_branch
      %198 = sbr.rel (0) target = $region109
    $region108: #{tpu_custom_call.1} parent=1 // pred_region
      %199 = dma.done [#allocation16], 16
    $region109: #{tpu_custom_call.1} parent=1 // pred_fallthru
      _
    // Predicated region
    $region110: #{tpu_custom_call.1} parent=1 // pred_check
      _
    $region111: #{tpu_custom_call.1} parent=1 // pred_check_branch
      %201 = sbr.rel (0) target = $region113
    $region112: #{tpu_custom_call.1} parent=1 // pred_region
      %202 = dma.done [#allocation19], 32
    $region113: #{tpu_custom_call.1} parent=1 // pred_fallthru
      _
    // Predicated region
    $region114: #{tpu_custom_call.1} parent=1 // pred_check
      _
    $region115: #{tpu_custom_call.1} parent=1 // pred_check_branch
      %204 = sbr.rel (0) target = $region117
    $region116: #{tpu_custom_call.1} parent=1 // pred_region
      %205 = dma.done [#allocation19], 6400
    $region117: #{tpu_custom_call.1} parent=1 // pred_fallthru
      _
    // Predicated region
    $region118: #{tpu_custom_call.1} parent=1 // pred_check
      _
    $region119: #{tpu_custom_call.1} parent=1 // pred_check_branch
      %207 = sbr.rel (0) target = $region121
    $region120: #{tpu_custom_call.1} parent=1 // pred_region
      %208 = dma.done [#allocation22], 32
    $region121: #{tpu_custom_call.1} parent=1 // pred_fallthru
      _
    %v209 = vld [vmem:[#allocation6] sm:$0xff]
    %v210 = vld [vmem:[#allocation6 + $0x8] sm:$0xff]
    %v211 = vld [vmem:[%s2] sm:$0xff]
    %v212 = vld [vmem:[%s2 + $0x8] sm:$0xff]
    %v213 = vld [vmem:[%s2 + $0x10] sm:$0xff]
    %v214 = vld [vmem:[%s2 + $0x18] sm:$0xff]
    %v215 = vld [vmem:[%s2 + $0x20] sm:$0xff]
    %v216 = vld [vmem:[%s2 + $0x28] sm:$0xff]
    %v217 = vld [vmem:[%s2 + $0x30] sm:$0xff]
    %v218 = vld [vmem:[%s2 + $0x38] sm:$0xff]
    %v219 = vld [vmem:[%s2 + $0x40] sm:$0xff]
    %v220 = vld [vmem:[%s2 + $0x48] sm:$0xff]
    %v221 = vld [vmem:[%s2 + $0x50] sm:$0xff]
    %v222 = vld [vmem:[%s2 + $0x58] sm:$0xff]
    %v223 = vld [vmem:[%s2 + $0x60] sm:$0xf]
    %v224 = vld [vmem:[#allocation8] sm:$0x1]
    %v226 = vlaneseq
    %v227 = vshrl.u32 %v226, 7
    %v228 = vsub.s32 0, %v227
    %v229 = vrot.slane %v224, %v228
    %vm231 = vcmask 818176
    %v233 = vsel %vm231, %v209, 0
    %vm235 = vcmask 1043456
    %v237 = vsel %vm235, %v223, 0
    %239 = vmatprep.subr.mxu0 0.0
    %240 = vmatpush1.msra.mxu0 %v211
    %241 = vmatprep.subr.mxu0 0.0
    %242 = vmatpush1.msra.mxu0 %v212
    %243 = vmatprep.subr.mxu0 0.0
    %244 = vmatpush1.msra.mxu0 %v213
    %245 = vmatprep.subr.mxu0 0.0
    %246 = vmatpush1.msra.mxu0 %v214
    %247 = vmatprep.subr.mxu0 0.0
    %248 = vmatpush1.msra.mxu0 %v215
    %249 = vmatprep.subr.mxu0 0.0
    %250 = vmatpush1.msra.mxu0 %v216
    %251 = vmatprep.subr.mxu0 0.0
    %252 = vmatpush1.msra.mxu0 %v217
    %253 = vmatprep.subr.mxu0 0.0
    %254 = vmatpush1.msra.mxu0 %v218
    %255 = vmatprep.subr.mxu0 0.0
    %256 = vmatpush1.msra.mxu0 %v219
    %257 = vmatprep.subr.mxu0 0.0
    %258 = vmatpush1.msra.mxu0 %v220
    %259 = vmatprep.subr.mxu0 0.0
    %260 = vmatpush1.msra.mxu0 %v221
    %261 = vmatprep.subr.mxu0 0.0
    %262 = vmatpush1.msra.mxu0 %v222
    %263 = vmatprep.subr.mxu0 0.0
    %264 = vmatpush1.msra.mxu0 %v237
    %265 = vmatprep.subr.mxu0 0.0
    %266 = vmatpush1.msra.mxu0 0.0
    %267 = vmatprep.subr.mxu0 0.0
    %268 = vmatpush1.msra.mxu0 0.0
    %269 = vmatprep.subr.mxu0 0.0
    %270 = vmatpush1.msra.mxu0 0.0
    %271 = vmatprep.subr.mxu0 0.0
    %272 = vmatpush1.msra.mxu0 0.0
    %273 = vmatprep.subr.mxu0 0.0
    %274 = vmatpush1.msra.mxu0 0.0
    %275 = vmatprep.subr.mxu0 0.0
    %276 = vmatpush1.msra.mxu0 0.0
    %277 = vmatprep.subr.mxu0 0.0
    %278 = vmatpush1.msra.mxu0 0.0
    %279 = vmatprep.subr.mxu0 0.0
    %280 = vmatpush1.msra.mxu0 0.0
    %281 = vmatprep.subr.mxu0 0.0
    %282 = vmatpush1.msra.mxu0 0.0
    %283 = vmatprep.subr.mxu0 0.0
    %284 = vmatpush1.msra.mxu0 0.0
    %285 = vmatprep.subr.mxu0 0.0
    %286 = vmatpush1.msra.mxu0 0.0
    %287 = vmatprep.subr.mxu0 0.0
    %288 = vmatpush1.msra.mxu0 0.0
    %289 = vmatprep.subr.mxu0 0.0
    %290 = vmatpush1.msra.mxu0 0.0
    %291 = vmatprep.subr.mxu0 0.0
    %292 = vmatpush1.msra.mxu0 0.0
    %293 = vmatprep.subr.mxu0 0.0
    %294 = vmatpush1.msra.mxu0 0.0
    %295 = vmatprep.subr.mxu0 0.0
    %296 = vmatpush1.msra.mxu0 0.0
    %297 = vmatprep.subr.mxu0 0.0
    %298 = vmatpush1.msra.mxu0 0.0
    %299 = vmatprep.subr.mxu0 0.0
    %300 = vmatpush1.msra.mxu0 0.0
    %301 = vmatprep.subr.mxu0 0.0
    %302 = vmatpush1.msra.mxu0 0.0
    %303 = vmatprep.mubr.f32.mxu0 0.0
    %304 = vmatmul.mubr.f32.gmra.mrb[0].mxu0 %v233
    %v305 = vpop.f32.mrb[0].mxu0
    %v306 = vadd.f32 %v229, %v305
    %v307 = vpop.f32.mrb[0].mxu0
    %308 = vdwg.mxu0
    %v309 = vtanh.pop %v306
    %v310 = vld [vmem:[%s4] sm:$0xff]
    %v311 = vld [vmem:[%s4 + $0x8] sm:$0xff]
    %v312 = vld [vmem:[%s4 + $0x10] sm:$0xff]
    %v313 = vld [vmem:[%s4 + $0x18] sm:$0xff]
    %v314 = vld [vmem:[#allocation9] sm:$0x1]
    %v316 = vlaneseq
    %v317 = vshrl.u32 %v316, 7
    %v318 = vsub.s32 0, %v317
    %v319 = vrot.slane %v314, %v318
    %vm321 = vcmask 261120
    %v323 = vsel %vm321, %v309, 0
    %325 = vmatprep.subr.mxu0 0.0
    %326 = vmatpush1.msra.mxu0 %v310
    %327 = vmatprep.subr.mxu0 0.0
    %328 = vmatpush1.msra.mxu0 %v311
    %329 = vmatprep.subr.mxu0 0.0
    %330 = vmatpush1.msra.mxu0 %v312
    %331 = vmatprep.subr.mxu0 0.0
    %332 = vmatpush1.msra.mxu0 %v313
    %333 = vmatprep.subr.mxu0 0.0
    %334 = vmatpush1.msra.mxu0 0.0
    %335 = vmatprep.subr.mxu0 0.0
    %336 = vmatpush1.msra.mxu0 0.0
    %337 = vmatprep.subr.mxu0 0.0
    %338 = vmatpush1.msra.mxu0 0.0
    %339 = vmatprep.subr.mxu0 0.0
    %340 = vmatpush1.msra.mxu0 0.0
    %341 = vmatprep.subr.mxu0 0.0
    %342 = vmatpush1.msra.mxu0 0.0
    %343 = vmatprep.subr.mxu0 0.0
    %344 = vmatpush1.msra.mxu0 0.0
    %345 = vmatprep.subr.mxu0 0.0
    %346 = vmatpush1.msra.mxu0 0.0
    %347 = vmatprep.subr.mxu0 0.0
    %348 = vmatpush1.msra.mxu0 0.0
    %349 = vmatprep.subr.mxu0 0.0
    %350 = vmatpush1.msra.mxu0 0.0
    %351 = vmatprep.subr.mxu0 0.0
    %352 = vmatpush1.msra.mxu0 0.0
    %353 = vmatprep.subr.mxu0 0.0
    %354 = vmatpush1.msra.mxu0 0.0
    %355 = vmatprep.subr.mxu0 0.0
    %356 = vmatpush1.msra.mxu0 0.0
    %357 = vmatprep.subr.mxu0 0.0
    %358 = vmatpush1.msra.mxu0 0.0
    %359 = vmatprep.subr.mxu0 0.0
    %360 = vmatpush1.msra.mxu0 0.0
    %361 = vmatprep.subr.mxu0 0.0
    %362 = vmatpush1.msra.mxu0 0.0
    %363 = vmatprep.subr.mxu0 0.0
    %364 = vmatpush1.msra.mxu0 0.0
    %365 = vmatprep.subr.mxu0 0.0
    %366 = vmatpush1.msra.mxu0 0.0
    %367 = vmatprep.subr.mxu0 0.0
    %368 = vmatpush1.msra.mxu0 0.0
    %369 = vmatprep.subr.mxu0 0.0
    %370 = vmatpush1.msra.mxu0 0.0
    %371 = vmatprep.subr.mxu0 0.0
    %372 = vmatpush1.msra.mxu0 0.0
    %373 = vmatprep.subr.mxu0 0.0
    %374 = vmatpush1.msra.mxu0 0.0
    %375 = vmatprep.subr.mxu0 0.0
    %376 = vmatpush1.msra.mxu0 0.0
    %377 = vmatprep.subr.mxu0 0.0
    %378 = vmatpush1.msra.mxu0 0.0
    %379 = vmatprep.subr.mxu0 0.0
    %380 = vmatpush1.msra.mxu0 0.0
    %381 = vmatprep.subr.mxu0 0.0
    %382 = vmatpush1.msra.mxu0 0.0
    %383 = vmatprep.subr.mxu0 0.0
    %384 = vmatpush1.msra.mxu0 0.0
    %385 = vmatprep.subr.mxu0 0.0
    %386 = vmatpush1.msra.mxu0 0.0
    %387 = vmatprep.subr.mxu0 0.0
    %388 = vmatpush1.msra.mxu0 0.0
    %389 = vmatprep.mubr.f32.mxu0 0.0
    %390 = vmatmul.mubr.f32.gmra.mrb[0].mxu0 %v323
    %v391 = vpop.f32.mrb[0].mxu0
    %v392 = vadd.f32 %v319, %v391
    %v393 = vpop.f32.mrb[0].mxu0
    %394 = vdwg.mxu0
    %v395 = vmul.f32 %v392, %v392
    %v396 = vld [vmem:[#allocation3] sm:$0xff]
    %v397 = vld [vmem:[#allocation3 + $0x8] sm:$0xff]
    %v398 = vld [vmem:[#allocation11] sm:$0xff]
    %v399 = vld [vmem:[#allocation11 + $0x8] sm:$0xff]
    %v400 = vld [vmem:[#allocation11 + $0x10] sm:$0xff]
    %v401 = vld [vmem:[#allocation11 + $0x18] sm:$0xff]
    %v402 = vld [vmem:[#allocation11 + $0x20] sm:$0xff]
    %v403 = vld [vmem:[#allocation11 + $0x28] sm:$0xff]
    %v404 = vld [vmem:[#allocation11 + $0x30] sm:$0xff]
    %v405 = vld [vmem:[#allocation11 + $0x38] sm:$0xff]
    %v406 = vld [vmem:[#allocation11 + $0x40] sm:$0xff]
    %v407 = vld [vmem:[#allocation11 + $0x48] sm:$0xff]
    %v408 = vld [vmem:[#allocation11 + $0x50] sm:$0xff]
    %v409 = vld [vmem:[#allocation11 + $0x58] sm:$0xff]
    %v410 = vld [vmem:[#allocation11 + $0x60] sm:$0xff]
    %v411 = vld [vmem:[#allocation11 + $0x68] sm:$0xff]
    %v412 = vld [vmem:[#allocation11 + $0x70] sm:$0xff]
    %v413 = vld [vmem:[#allocation11 + $0x78] sm:$0xff]
    %v414 = vld [vmem:[#allocation11 + $0x80] sm:$0xff]
    %v415 = vld [vmem:[#allocation11 + $0x88] sm:$0xff]
    %v416 = vld [vmem:[#allocation11 + $0x90] sm:$0xff]
    %v417 = vld [vmem:[#allocation11 + $0x98] sm:$0xff]
    %v418 = vld [vmem:[#allocation11 + $0xa0] sm:$0xff]
    %v419 = vld [vmem:[#allocation11 + $0xa8] sm:$0xff]
    %v420 = vld [vmem:[#allocation11 + $0xb0] sm:$0xff]
    %v421 = vld [vmem:[#allocation11 + $0xb8] sm:$0xff]
    %v422 = vld [vmem:[#allocation11 + $0xc0] sm:$0xff]
    %v423 = vld [vmem:[#allocation11 + $0xc8] sm:$0xff]
    %v424 = vld [vmem:[#allocation11 + $0xd0] sm:$0xff]
    %v425 = vld [vmem:[#allocation11 + $0xd8] sm:$0xff]
    %v426 = vld [vmem:[#allocation11 + $0xe0] sm:$0xff]
    %v427 = vld [vmem:[#allocation11 + $0xe8] sm:$0xff]
    %v428 = vld [vmem:[#allocation11 + $0xf0] sm:$0xff]
    %v429 = vld [vmem:[#allocation11 + $0xf8] sm:$0xff]
    %v430 = vld [vmem:[#allocation11 + $0x100] sm:$0xff]
    %v431 = vld [vmem:[#allocation11 + $0x108] sm:$0xff]
    %v432 = vld [vmem:[#allocation11 + $0x110] sm:$0xff]
    %v433 = vld [vmem:[#allocation11 + $0x118] sm:$0xff]
    %v434 = vld [vmem:[#allocation11 + $0x120] sm:$0xff]
    %v435 = vld [vmem:[#allocation11 + $0x128] sm:$0xff]
    %v436 = vld [vmem:[#allocation11 + $0x130] sm:$0xff]
    %v437 = vld [vmem:[#allocation11 + $0x138] sm:$0xff]
    %v438 = vld [vmem:[#allocation11 + $0x140] sm:$0xff]
    %v439 = vld [vmem:[#allocation11 + $0x148] sm:$0xff]
    %v440 = vld [vmem:[#allocation11 + $0x150] sm:$0xff]
    %v441 = vld [vmem:[#allocation11 + $0x158] sm:$0xff]
    %v442 = vld [vmem:[#allocation11 + $0x160] sm:$0xff]
    %v443 = vld [vmem:[#allocation11 + $0x168] sm:$0xff]
    %v444 = vld [vmem:[#allocation11 + $0x170] sm:$0xff]
    %v445 = vld [vmem:[#allocation11 + $0x178] sm:$0xff]
    %v446 = vld [vmem:[#allocation11 + $0x180] sm:$0xff]
    %v447 = vld [vmem:[#allocation11 + $0x188] sm:$0xff]
    %v448 = vld [vmem:[#allocation11 + $0x190] sm:$0xff]
    %v449 = vld [vmem:[#allocation11 + $0x198] sm:$0xff]
    %v450 = vld [vmem:[#allocation11 + $0x1a0] sm:$0xff]
    %v451 = vld [vmem:[#allocation11 + $0x1a8] sm:$0xff]
    %v452 = vld [vmem:[#allocation11 + $0x1b0] sm:$0xff]
    %v453 = vld [vmem:[#allocation11 + $0x1b8] sm:$0xff]
    %v454 = vld [vmem:[#allocation11 + $0x1c0] sm:$0xff]
    %v455 = vld [vmem:[#allocation11 + $0x1c8] sm:$0xff]
    %v456 = vld [vmem:[#allocation11 + $0x1d0] sm:$0xff]
    %v457 = vld [vmem:[#allocation11 + $0x1d8] sm:$0xff]
    %v458 = vld [vmem:[#allocation11 + $0x1e0] sm:$0xff]
    %v459 = vld [vmem:[#allocation11 + $0x1e8] sm:$0xff]
    %v460 = vld [vmem:[#allocation11 + $0x1f0] sm:$0xff]
    %v461 = vld [vmem:[#allocation11 + $0x1f8] sm:$0xff]
    %v462 = vld [vmem:[#allocation11 + $0x200] sm:$0xff]
    %v463 = vld [vmem:[#allocation11 + $0x208] sm:$0xff]
    %v464 = vld [vmem:[#allocation11 + $0x210] sm:$0xff]
    %v465 = vld [vmem:[#allocation11 + $0x218] sm:$0xff]
    %v466 = vld [vmem:[#allocation11 + $0x220] sm:$0xff]
    %v467 = vld [vmem:[#allocation11 + $0x228] sm:$0xff]
    %v468 = vld [vmem:[#allocation11 + $0x230] sm:$0xff]
    %v469 = vld [vmem:[#allocation11 + $0x238] sm:$0xff]
    %v470 = vld [vmem:[#allocation11 + $0x240] sm:$0xff]
    %v471 = vld [vmem:[#allocation11 + $0x248] sm:$0xff]
    %v472 = vld [vmem:[#allocation11 + $0x250] sm:$0xff]
    %v473 = vld [vmem:[#allocation11 + $0x258] sm:$0xff]
    %v474 = vld [vmem:[#allocation11 + $0x260] sm:$0xff]
    %v475 = vld [vmem:[#allocation11 + $0x268] sm:$0xff]
    %v476 = vld [vmem:[#allocation11 + $0x270] sm:$0xff]
    %v477 = vld [vmem:[#allocation11 + $0x278] sm:$0xff]
    %v478 = vld [vmem:[#allocation11 + $0x280] sm:$0xff]
    %v479 = vld [vmem:[#allocation11 + $0x288] sm:$0xff]
    %v480 = vld [vmem:[#allocation11 + $0x290] sm:$0xff]
    %v481 = vld [vmem:[#allocation11 + $0x298] sm:$0xff]
    %v482 = vld [vmem:[#allocation11 + $0x2a0] sm:$0xff]
    %v483 = vld [vmem:[#allocation11 + $0x2a8] sm:$0xff]
    %v484 = vld [vmem:[#allocation11 + $0x2b0] sm:$0xff]
    %v485 = vld [vmem:[#allocation11 + $0x2b8] sm:$0xff]
    %v486 = vld [vmem:[#allocation11 + $0x2c0] sm:$0xff]
    %v487 = vld [vmem:[#allocation11 + $0x2c8] sm:$0xff]
    %v488 = vld [vmem:[#allocation11 + $0x2d0] sm:$0xff]
    %v489 = vld [vmem:[#allocation11 + $0x2d8] sm:$0xff]
    %v490 = vld [vmem:[#allocation11 + $0x2e0] sm:$0xff]
    %v491 = vld [vmem:[#allocation11 + $0x2e8] sm:$0xff]
    %v492 = vld [vmem:[#allocation11 + $0x2f0] sm:$0xff]
    %v493 = vld [vmem:[#allocation11 + $0x2f8] sm:$0xff]
    %v494 = vld [vmem:[#allocation11 + $0x300] sm:$0xff]
    %v495 = vld [vmem:[#allocation11 + $0x308] sm:$0xff]
    %v496 = vld [vmem:[#allocation11 + $0x310] sm:$0xff]
    %v497 = vld [vmem:[#allocation11 + $0x318] sm:$0xff]
    %v498 = vld [vmem:[#allocation11 + $0x320] sm:$0xff]
    %v499 = vld [vmem:[#allocation11 + $0x328] sm:$0xff]
    %v500 = vld [vmem:[#allocation11 + $0x330] sm:$0xff]
    %v501 = vld [vmem:[#allocation11 + $0x338] sm:$0xff]
    %v502 = vld [vmem:[#allocation11 + $0x340] sm:$0xff]
    %v503 = vld [vmem:[#allocation11 + $0x348] sm:$0xff]
    %v504 = vld [vmem:[#allocation11 + $0x350] sm:$0xff]
    %v505 = vld [vmem:[#allocation11 + $0x358] sm:$0xff]
    %v506 = vld [vmem:[#allocation11 + $0x360] sm:$0xff]
    %v507 = vld [vmem:[#allocation11 + $0x368] sm:$0xff]
    %v508 = vld [vmem:[#allocation11 + $0x370] sm:$0xff]
    %v509 = vld [vmem:[#allocation11 + $0x378] sm:$0xff]
    %v510 = vld [vmem:[#allocation11 + $0x380] sm:$0xff]
    %v511 = vld [vmem:[#allocation11 + $0x388] sm:$0xff]
    %v512 = vld [vmem:[#allocation11 + $0x390] sm:$0xff]
    %v513 = vld [vmem:[#allocation11 + $0x398] sm:$0xff]
    %v514 = vld [vmem:[#allocation11 + $0x3a0] sm:$0xff]
    %v515 = vld [vmem:[#allocation11 + $0x3a8] sm:$0xff]
    %v516 = vld [vmem:[#allocation11 + $0x3b0] sm:$0xff]
    %v517 = vld [vmem:[#allocation11 + $0x3b8] sm:$0xff]
    %v518 = vld [vmem:[#allocation11 + $0x3c0] sm:$0xff]
    %v519 = vld [vmem:[#allocation11 + $0x3c8] sm:$0xff]
    %v520 = vld [vmem:[#allocation11 + $0x3d0] sm:$0xff]
    %v521 = vld [vmem:[#allocation11 + $0x3d8] sm:$0xff]
    %v522 = vld [vmem:[#allocation11 + $0x3e0] sm:$0xff]
    %v523 = vld [vmem:[#allocation11 + $0x3e8] sm:$0xff]
    %v524 = vld [vmem:[#allocation11 + $0x3f0] sm:$0xff]
    %v525 = vld [vmem:[#allocation11 + $0x3f8] sm:$0xff]
    %v526 = vld [vmem:[#allocation11 + $0x400] sm:$0xff]
    %v527 = vld [vmem:[#allocation11 + $0x408] sm:$0xff]
    %v528 = vld [vmem:[#allocation11 + $0x410] sm:$0xff]
    %v529 = vld [vmem:[#allocation11 + $0x418] sm:$0xff]
    %v530 = vld [vmem:[#allocation11 + $0x420] sm:$0xff]
    %v531 = vld [vmem:[#allocation11 + $0x428] sm:$0xff]
    %v532 = vld [vmem:[#allocation11 + $0x430] sm:$0xff]
    %v533 = vld [vmem:[#allocation11 + $0x438] sm:$0xff]
    %v534 = vld [vmem:[#allocation11 + $0x440] sm:$0xff]
    %v535 = vld [vmem:[#allocation11 + $0x448] sm:$0xff]
    %v536 = vld [vmem:[#allocation11 + $0x450] sm:$0xff]
    %v537 = vld [vmem:[#allocation11 + $0x458] sm:$0xff]
    %v538 = vld [vmem:[#allocation11 + $0x460] sm:$0xff]
    %v539 = vld [vmem:[#allocation11 + $0x468] sm:$0xff]
    %v540 = vld [vmem:[#allocation11 + $0x470] sm:$0xff]
    %v541 = vld [vmem:[#allocation11 + $0x478] sm:$0xff]
    %v542 = vld [vmem:[#allocation11 + $0x480] sm:$0xff]
    %v543 = vld [vmem:[#allocation11 + $0x488] sm:$0xff]
    %v544 = vld [vmem:[#allocation11 + $0x490] sm:$0xff]
    %v545 = vld [vmem:[#allocation11 + $0x498] sm:$0xff]
    %v546 = vld [vmem:[#allocation11 + $0x4a0] sm:$0xff]
    %v547 = vld [vmem:[#allocation11 + $0x4a8] sm:$0xff]
    %v548 = vld [vmem:[#allocation11 + $0x4b0] sm:$0xff]
    %v549 = vld [vmem:[#allocation11 + $0x4b8] sm:$0xff]
    %v550 = vld [vmem:[#allocation11 + $0x4c0] sm:$0xff]
    %v551 = vld [vmem:[#allocation11 + $0x4c8] sm:$0xff]
    %v552 = vld [vmem:[#allocation11 + $0x4d0] sm:$0xff]
    %v553 = vld [vmem:[#allocation11 + $0x4d8] sm:$0xff]
    %v554 = vld [vmem:[#allocation11 + $0x4e0] sm:$0xff]
    %v555 = vld [vmem:[#allocation11 + $0x4e8] sm:$0xff]
    %v556 = vld [vmem:[#allocation11 + $0x4f0] sm:$0xff]
    %v557 = vld [vmem:[#allocation11 + $0x4f8] sm:$0xff]
    %v558 = vld [vmem:[#allocation11 + $0x500] sm:$0xff]
    %v559 = vld [vmem:[#allocation11 + $0x508] sm:$0xff]
    %v560 = vld [vmem:[#allocation11 + $0x510] sm:$0xff]
    %v561 = vld [vmem:[#allocation11 + $0x518] sm:$0xff]
    %v562 = vld [vmem:[#allocation11 + $0x520] sm:$0xff]
    %v563 = vld [vmem:[#allocation11 + $0x528] sm:$0xff]
    %v564 = vld [vmem:[#allocation11 + $0x530] sm:$0xff]
    %v565 = vld [vmem:[#allocation11 + $0x538] sm:$0xff]
    %v566 = vld [vmem:[#allocation11 + $0x540] sm:$0xff]
    %v567 = vld [vmem:[#allocation11 + $0x548] sm:$0xff]
    %v568 = vld [vmem:[#allocation11 + $0x550] sm:$0xff]
    %v569 = vld [vmem:[#allocation11 + $0x558] sm:$0xff]
    %v570 = vld [vmem:[#allocation11 + $0x560] sm:$0xff]
    %v571 = vld [vmem:[#allocation11 + $0x568] sm:$0xff]
    %v572 = vld [vmem:[#allocation11 + $0x570] sm:$0xff]
    %v573 = vld [vmem:[#allocation11 + $0x578] sm:$0xff]
    %v574 = vld [vmem:[#allocation11 + $0x580] sm:$0xff]
    %v575 = vld [vmem:[#allocation11 + $0x588] sm:$0xff]
    %v576 = vld [vmem:[#allocation11 + $0x590] sm:$0xff]
    %v577 = vld [vmem:[#allocation11 + $0x598] sm:$0xff]
    %v578 = vld [vmem:[#allocation11 + $0x5a0] sm:$0xff]
    %v579 = vld [vmem:[#allocation11 + $0x5a8] sm:$0xff]
    %v580 = vld [vmem:[#allocation11 + $0x5b0] sm:$0xff]
    %v581 = vld [vmem:[#allocation11 + $0x5b8] sm:$0xff]
    %v582 = vld [vmem:[#allocation11 + $0x5c0] sm:$0xff]
    %v583 = vld [vmem:[#allocation11 + $0x5c8] sm:$0xff]
    %v584 = vld [vmem:[#allocation11 + $0x5d0] sm:$0xff]
    %v585 = vld [vmem:[#allocation11 + $0x5d8] sm:$0xff]
    %v586 = vld [vmem:[#allocation11 + $0x5e0] sm:$0xff]
    %v587 = vld [vmem:[#allocation11 + $0x5e8] sm:$0xff]
    %v588 = vld [vmem:[#allocation11 + $0x5f0] sm:$0xff]
    %v589 = vld [vmem:[#allocation11 + $0x5f8] sm:$0xff]
    %v590 = vld [vmem:[#allocation11 + $0x600] sm:$0xff]
    %v591 = vld [vmem:[#allocation11 + $0x608] sm:$0xff]
    %v592 = vld [vmem:[#allocation11 + $0x610] sm:$0xff]
    %v593 = vld [vmem:[#allocation11 + $0x618] sm:$0xff]
    %v594 = vld [vmem:[#allocation11 + $0x620] sm:$0xff]
    %v595 = vld [vmem:[#allocation11 + $0x628] sm:$0xff]
    %v596 = vld [vmem:[#allocation11 + $0x630] sm:$0xff]
    %v597 = vld [vmem:[#allocation11 + $0x638] sm:$0xff]
    %v598 = vld [vmem:[#allocation11 + $0x640] sm:$0xff]
    %v599 = vld [vmem:[#allocation11 + $0x648] sm:$0xff]
    %v600 = vld [vmem:[#allocation11 + $0x650] sm:$0xff]
    %v601 = vld [vmem:[#allocation11 + $0x658] sm:$0xff]
    %v602 = vld [vmem:[#allocation11 + $0x660] sm:$0xff]
    %v603 = vld [vmem:[#allocation11 + $0x668] sm:$0xff]
    %v604 = vld [vmem:[#allocation11 + $0x670] sm:$0xff]
    %v605 = vld [vmem:[#allocation11 + $0x678] sm:$0xff]
    %v606 = vld [vmem:[#allocation11 + $0x680] sm:$0xff]
    %v607 = vld [vmem:[#allocation11 + $0x688] sm:$0xff]
    %v608 = vld [vmem:[#allocation11 + $0x690] sm:$0xff]
    %v609 = vld [vmem:[#allocation11 + $0x698] sm:$0xff]
    %v610 = vld [vmem:[#allocation11 + $0x6a0] sm:$0xff]
    %v611 = vld [vmem:[#allocation11 + $0x6a8] sm:$0xff]
    %v612 = vld [vmem:[#allocation11 + $0x6b0] sm:$0xff]
    %v613 = vld [vmem:[#allocation11 + $0x6b8] sm:$0xff]
    %v614 = vld [vmem:[#allocation11 + $0x6c0] sm:$0xff]
    %v615 = vld [vmem:[#allocation11 + $0x6c8] sm:$0xff]
    %v616 = vld [vmem:[#allocation11 + $0x6d0] sm:$0xff]
    %v617 = vld [vmem:[#allocation11 + $0x6d8] sm:$0xff]
    %v618 = vld [vmem:[#allocation11 + $0x6e0] sm:$0xff]
    %v619 = vld [vmem:[#allocation11 + $0x6e8] sm:$0xff]
    %v620 = vld [vmem:[#allocation11 + $0x6f0] sm:$0xff]
    %v621 = vld [vmem:[#allocation11 + $0x6f8] sm:$0xff]
    %v622 = vld [vmem:[#allocation12] sm:$0xff]
    %v624 = vlaneseq
    %v625 = vshrl.u32 %v624, 7
    %v626 = vsub.s32 0, %v625
    %v627 = vrot.slane %v622, %v626
    %v628 = vlaneseq
    %v629 = vshrl.u32 %v628, 7
    %v630 = vsub.s32 1, %v629
    %v631 = vrot.slane %v622, %v630
    %v632 = vlaneseq
    %v633 = vshrl.u32 %v632, 7
    %v634 = vsub.s32 2, %v633
    %v635 = vrot.slane %v622, %v634
    %v636 = vlaneseq
    %v637 = vshrl.u32 %v636, 7
    %v638 = vsub.s32 3, %v637
    %v639 = vrot.slane %v622, %v638
    %v640 = vlaneseq
    %v641 = vshrl.u32 %v640, 7
    %v642 = vsub.s32 4, %v641
    %v643 = vrot.slane %v622, %v642
    %v644 = vlaneseq
    %v645 = vshrl.u32 %v644, 7
    %v646 = vsub.s32 5, %v645
    %v647 = vrot.slane %v622, %v646
    %v648 = vlaneseq
    %v649 = vshrl.u32 %v648, 7
    %v650 = vsub.s32 6, %v649
    %v651 = vrot.slane %v622, %v650
    %659 = vmatprep.subr.mxu0 %v399
    %660 = vmatpush1.msra.mxu0 %v398
    %661 = vmatprep.subr.mxu0 %v406
    %662 = vmatpush1.msra.mxu0 %v405
    %663 = vmatprep.subr.mxu0 %v413
    %664 = vmatpush1.msra.mxu0 %v412
    %665 = vmatprep.subr.mxu0 %v420
    %666 = vmatpush1.msra.mxu0 %v419
    %667 = vmatprep.subr.mxu0 %v427
    %668 = vmatpush1.msra.mxu0 %v426
    %669 = vmatprep.subr.mxu0 %v434
    %670 = vmatpush1.msra.mxu0 %v433
    %671 = vmatprep.subr.mxu0 %v441
    %672 = vmatpush1.msra.mxu0 %v440
    %673 = vmatprep.subr.mxu0 %v448
    %674 = vmatpush1.msra.mxu0 %v447
    %675 = vmatprep.subr.mxu0 %v455
    %676 = vmatpush1.msra.mxu0 %v454
    %677 = vmatprep.subr.mxu0 %v462
    %678 = vmatpush1.msra.mxu0 %v461
    %679 = vmatprep.subr.mxu0 %v469
    %680 = vmatpush1.msra.mxu0 %v468
    %681 = vmatprep.subr.mxu0 %v476
    %682 = vmatpush1.msra.mxu0 %v475
    %683 = vmatprep.subr.mxu0 %v483
    %684 = vmatpush1.msra.mxu0 %v482
    %685 = vmatprep.subr.mxu0 %v490
    %686 = vmatpush1.msra.mxu0 %v489
    %687 = vmatprep.subr.mxu0 %v497
    %688 = vmatpush1.msra.mxu0 %v496
    %689 = vmatprep.subr.mxu0 %v504
    %690 = vmatpush1.msra.mxu0 %v503
    %691 = vmatprep.subr.mxu0 %v511
    %692 = vmatpush1.msra.mxu0 %v510
    %693 = vmatprep.subr.mxu0 %v518
    %694 = vmatpush1.msra.mxu0 %v517
    %695 = vmatprep.subr.mxu0 %v525
    %696 = vmatpush1.msra.mxu0 %v524
    %697 = vmatprep.subr.mxu0 %v532
    %698 = vmatpush1.msra.mxu0 %v531
    %699 = vmatprep.subr.mxu0 %v539
    %700 = vmatpush1.msra.mxu0 %v538
    %701 = vmatprep.subr.mxu0 %v546
    %702 = vmatpush1.msra.mxu0 %v545
    %703 = vmatprep.subr.mxu0 %v553
    %704 = vmatpush1.msra.mxu0 %v552
    %705 = vmatprep.subr.mxu0 %v560
    %706 = vmatpush1.msra.mxu0 %v559
    %707 = vmatprep.subr.mxu0 %v567
    %708 = vmatpush1.msra.mxu0 %v566
    %709 = vmatprep.subr.mxu0 %v574
    %710 = vmatpush1.msra.mxu0 %v573
    %711 = vmatprep.subr.mxu0 %v581
    %712 = vmatpush1.msra.mxu0 %v580
    %713 = vmatprep.subr.mxu0 %v588
    %714 = vmatpush1.msra.mxu0 %v587
    %715 = vmatprep.subr.mxu0 %v595
    %716 = vmatpush1.msra.mxu0 %v594
    %717 = vmatprep.subr.mxu0 %v602
    %718 = vmatpush1.msra.mxu0 %v601
    %719 = vmatprep.subr.mxu0 %v609
    %720 = vmatpush1.msra.mxu0 %v608
    %721 = vmatprep.subr.mxu0 %v616
    %722 = vmatpush1.msra.mxu0 %v615
    %723 = vmatprep.mubr.f32.mxu0 %v397
    %724 = vmatmul.mubr.f32.gmra.mrb[0].mxu0 %v396
    %v725 = vpop.f32.mrb[0].mxu0
    %v726 = vadd.f32 %v627, %v725
    %v727 = vpop.f32.mrb[0].mxu0
    %v728 = vadd.f32 %v631, %v727
    %729 = vdwg.mxu0
    %730 = vmatprep.subr.mxu0 %v401
    %731 = vmatpush1.msra.mxu0 %v400
    %732 = vmatprep.subr.mxu0 %v408
    %733 = vmatpush1.msra.mxu0 %v407
    %734 = vmatprep.subr.mxu0 %v415
    %735 = vmatpush1.msra.mxu0 %v414
    %736 = vmatprep.subr.mxu0 %v422
    %737 = vmatpush1.msra.mxu0 %v421
    %738 = vmatprep.subr.mxu0 %v429
    %739 = vmatpush1.msra.mxu0 %v428
    %740 = vmatprep.subr.mxu0 %v436
    %741 = vmatpush1.msra.mxu0 %v435
    %742 = vmatprep.subr.mxu0 %v443
    %743 = vmatpush1.msra.mxu0 %v442
    %744 = vmatprep.subr.mxu0 %v450
    %745 = vmatpush1.msra.mxu0 %v449
    %746 = vmatprep.subr.mxu0 %v457
    %747 = vmatpush1.msra.mxu0 %v456
    %748 = vmatprep.subr.mxu0 %v464
    %749 = vmatpush1.msra.mxu0 %v463
    %750 = vmatprep.subr.mxu0 %v471
    %751 = vmatpush1.msra.mxu0 %v470
    %752 = vmatprep.subr.mxu0 %v478
    %753 = vmatpush1.msra.mxu0 %v477
    %754 = vmatprep.subr.mxu0 %v485
    %755 = vmatpush1.msra.mxu0 %v484
    %756 = vmatprep.subr.mxu0 %v492
    %757 = vmatpush1.msra.mxu0 %v491
    %758 = vmatprep.subr.mxu0 %v499
    %759 = vmatpush1.msra.mxu0 %v498
    %760 = vmatprep.subr.mxu0 %v506
    %761 = vmatpush1.msra.mxu0 %v505
    %762 = vmatprep.subr.mxu0 %v513
    %763 = vmatpush1.msra.mxu0 %v512
    %764 = vmatprep.subr.mxu0 %v520
    %765 = vmatpush1.msra.mxu0 %v519
    %766 = vmatprep.subr.mxu0 %v527
    %767 = vmatpush1.msra.mxu0 %v526
    %768 = vmatprep.subr.mxu0 %v534
    %769 = vmatpush1.msra.mxu0 %v533
    %770 = vmatprep.subr.mxu0 %v541
    %771 = vmatpush1.msra.mxu0 %v540
    %772 = vmatprep.subr.mxu0 %v548
    %773 = vmatpush1.msra.mxu0 %v547
    %774 = vmatprep.subr.mxu0 %v555
    %775 = vmatpush1.msra.mxu0 %v554
    %776 = vmatprep.subr.mxu0 %v562
    %777 = vmatpush1.msra.mxu0 %v561
    %778 = vmatprep.subr.mxu0 %v569
    %779 = vmatpush1.msra.mxu0 %v568
    %780 = vmatprep.subr.mxu0 %v576
    %781 = vmatpush1.msra.mxu0 %v575
    %782 = vmatprep.subr.mxu0 %v583
    %783 = vmatpush1.msra.mxu0 %v582
    %784 = vmatprep.subr.mxu0 %v590
    %785 = vmatpush1.msra.mxu0 %v589
    %786 = vmatprep.subr.mxu0 %v597
    %787 = vmatpush1.msra.mxu0 %v596
    %788 = vmatprep.subr.mxu0 %v604
    %789 = vmatpush1.msra.mxu0 %v603
    %790 = vmatprep.subr.mxu0 %v611
    %791 = vmatpush1.msra.mxu0 %v610
    %792 = vmatprep.subr.mxu0 %v618
    %793 = vmatpush1.msra.mxu0 %v617
    %794 = vmatprep.mubr.f32.mxu0 %v397
    %795 = vmatmul.mubr.f32.gmra.mrb[0].mxu0 %v396
    %v796 = vpop.f32.mrb[0].mxu0
    %v797 = vadd.f32 %v635, %v796
    %v798 = vpop.f32.mrb[0].mxu0
    %v799 = vadd.f32 %v639, %v798
    %800 = vdwg.mxu0
    %801 = vmatprep.subr.mxu0 %v403
    %802 = vmatpush1.msra.mxu0 %v402
    %803 = vmatprep.subr.mxu0 %v410
    %804 = vmatpush1.msra.mxu0 %v409
    %805 = vmatprep.subr.mxu0 %v417
    %806 = vmatpush1.msra.mxu0 %v416
    %807 = vmatprep.subr.mxu0 %v424
    %808 = vmatpush1.msra.mxu0 %v423
    %809 = vmatprep.subr.mxu0 %v431
    %810 = vmatpush1.msra.mxu0 %v430
    %811 = vmatprep.subr.mxu0 %v438
    %812 = vmatpush1.msra.mxu0 %v437
    %813 = vmatprep.subr.mxu0 %v445
    %814 = vmatpush1.msra.mxu0 %v444
    %815 = vmatprep.subr.mxu0 %v452
    %816 = vmatpush1.msra.mxu0 %v451
    %817 = vmatprep.subr.mxu0 %v459
    %818 = vmatpush1.msra.mxu0 %v458
    %819 = vmatprep.subr.mxu0 %v466
    %820 = vmatpush1.msra.mxu0 %v465
    %821 = vmatprep.subr.mxu0 %v473
    %822 = vmatpush1.msra.mxu0 %v472
    %823 = vmatprep.subr.mxu0 %v480
    %824 = vmatpush1.msra.mxu0 %v479
    %825 = vmatprep.subr.mxu0 %v487
    %826 = vmatpush1.msra.mxu0 %v486
    %827 = vmatprep.subr.mxu0 %v494
    %828 = vmatpush1.msra.mxu0 %v493
    %829 = vmatprep.subr.mxu0 %v501
    %830 = vmatpush1.msra.mxu0 %v500
    %831 = vmatprep.subr.mxu0 %v508
    %832 = vmatpush1.msra.mxu0 %v507
    %833 = vmatprep.subr.mxu0 %v515
    %834 = vmatpush1.msra.mxu0 %v514
    %835 = vmatprep.subr.mxu0 %v522
    %836 = vmatpush1.msra.mxu0 %v521
    %837 = vmatprep.subr.mxu0 %v529
    %838 = vmatpush1.msra.mxu0 %v528
    %839 = vmatprep.subr.mxu0 %v536
    %840 = vmatpush1.msra.mxu0 %v535
    %841 = vmatprep.subr.mxu0 %v543
    %842 = vmatpush1.msra.mxu0 %v542
    %843 = vmatprep.subr.mxu0 %v550
    %844 = vmatpush1.msra.mxu0 %v549
    %845 = vmatprep.subr.mxu0 %v557
    %846 = vmatpush1.msra.mxu0 %v556
    %847 = vmatprep.subr.mxu0 %v564
    %848 = vmatpush1.msra.mxu0 %v563
    %849 = vmatprep.subr.mxu0 %v571
    %850 = vmatpush1.msra.mxu0 %v570
    %851 = vmatprep.subr.mxu0 %v578
    %852 = vmatpush1.msra.mxu0 %v577
    %853 = vmatprep.subr.mxu0 %v585
    %854 = vmatpush1.msra.mxu0 %v584
    %855 = vmatprep.subr.mxu0 %v592
    %856 = vmatpush1.msra.mxu0 %v591
    %857 = vmatprep.subr.mxu0 %v599
    %858 = vmatpush1.msra.mxu0 %v598
    %859 = vmatprep.subr.mxu0 %v606
    %860 = vmatpush1.msra.mxu0 %v605
    %861 = vmatprep.subr.mxu0 %v613
    %862 = vmatpush1.msra.mxu0 %v612
    %863 = vmatprep.subr.mxu0 %v620
    %864 = vmatpush1.msra.mxu0 %v619
    %865 = vmatprep.mubr.f32.mxu0 %v397
    %866 = vmatmul.mubr.f32.gmra.mrb[0].mxu0 %v396
    %v867 = vpop.f32.mrb[0].mxu0
    %v868 = vadd.f32 %v643, %v867
    %v869 = vpop.f32.mrb[0].mxu0
    %v870 = vadd.f32 %v647, %v869
    %871 = vdwg.mxu0
    %872 = vmatprep.subr.mxu0 0.0
    %873 = vmatpush1.msra.mxu0 %v404
    %874 = vmatprep.subr.mxu0 0.0
    %875 = vmatpush1.msra.mxu0 %v411
    %876 = vmatprep.subr.mxu0 0.0
    %877 = vmatpush1.msra.mxu0 %v418
    %878 = vmatprep.subr.mxu0 0.0
    %879 = vmatpush1.msra.mxu0 %v425
    %880 = vmatprep.subr.mxu0 0.0
    %881 = vmatpush1.msra.mxu0 %v432
    %882 = vmatprep.subr.mxu0 0.0
    %883 = vmatpush1.msra.mxu0 %v439
    %884 = vmatprep.subr.mxu0 0.0
    %885 = vmatpush1.msra.mxu0 %v446
    %886 = vmatprep.subr.mxu0 0.0
    %887 = vmatpush1.msra.mxu0 %v453
    %888 = vmatprep.subr.mxu0 0.0
    %889 = vmatpush1.msra.mxu0 %v460
    %890 = vmatprep.subr.mxu0 0.0
    %891 = vmatpush1.msra.mxu0 %v467
    %892 = vmatprep.subr.mxu0 0.0
    %893 = vmatpush1.msra.mxu0 %v474
    %894 = vmatprep.subr.mxu0 0.0
    %895 = vmatpush1.msra.mxu0 %v481
    %896 = vmatprep.subr.mxu0 0.0
    %897 = vmatpush1.msra.mxu0 %v488
    %898 = vmatprep.subr.mxu0 0.0
    %899 = vmatpush1.msra.mxu0 %v495
    %900 = vmatprep.subr.mxu0 0.0
    %901 = vmatpush1.msra.mxu0 %v502
    %902 = vmatprep.subr.mxu0 0.0
    %903 = vmatpush1.msra.mxu0 %v509
    %904 = vmatprep.subr.mxu0 0.0
    %905 = vmatpush1.msra.mxu0 %v516
    %906 = vmatprep.subr.mxu0 0.0
    %907 = vmatpush1.msra.mxu0 %v523
    %908 = vmatprep.subr.mxu0 0.0
    %909 = vmatpush1.msra.mxu0 %v530
    %910 = vmatprep.subr.mxu0 0.0
    %911 = vmatpush1.msra.mxu0 %v537
    %912 = vmatprep.subr.mxu0 0.0
    %913 = vmatpush1.msra.mxu0 %v544
    %914 = vmatprep.subr.mxu0 0.0
    %915 = vmatpush1.msra.mxu0 %v551
    %916 = vmatprep.subr.mxu0 0.0
    %917 = vmatpush1.msra.mxu0 %v558
    %918 = vmatprep.subr.mxu0 0.0
    %919 = vmatpush1.msra.mxu0 %v565
    %920 = vmatprep.subr.mxu0 0.0
    %921 = vmatpush1.msra.mxu0 %v572
    %922 = vmatprep.subr.mxu0 0.0
    %923 = vmatpush1.msra.mxu0 %v579
    %924 = vmatprep.subr.mxu0 0.0
    %925 = vmatpush1.msra.mxu0 %v586
    %926 = vmatprep.subr.mxu0 0.0
    %927 = vmatpush1.msra.mxu0 %v593
    %928 = vmatprep.subr.mxu0 0.0
    %929 = vmatpush1.msra.mxu0 %v600
    %930 = vmatprep.subr.mxu0 0.0
    %931 = vmatpush1.msra.mxu0 %v607
    %932 = vmatprep.subr.mxu0 0.0
    %933 = vmatpush1.msra.mxu0 %v614
    %934 = vmatprep.subr.mxu0 0.0
    %935 = vmatpush1.msra.mxu0 %v621
    %936 = vmatprep.mubr.f32.mxu0 %v397
    %937 = vmatmul.mubr.f32.gmra.mrb[0].mxu0 %v396
    %v938 = vpop.f32.mrb[0].mxu0
    %v939 = vadd.f32 %v651, %v938
    %v940 = vpop.f32.mrb[0].mxu0
    %941 = vdwg.mxu0
    %v942 = vmax.f32 %v726, 0.0
    %v943 = vmax.f32 %v728, 0.0
    %v944 = vmax.f32 %v797, 0.0
    %v945 = vmax.f32 %v799, 0.0
    %v946 = vmax.f32 %v868, 0.0
    %v947 = vmax.f32 %v870, 0.0
    %v948 = vmax.f32 %v939, 0.0
    %v949 = vld [vmem:[#allocation14] sm:$0xff]
    %v950 = vld [vmem:[#allocation14 + $0x8] sm:$0xff]
    %v951 = vld [vmem:[#allocation14 + $0x10] sm:$0xff]
    %v952 = vld [vmem:[#allocation14 + $0x18] sm:$0xff]
    %v953 = vld [vmem:[#allocation14 + $0x20] sm:$0xff]
    %v954 = vld [vmem:[#allocation14 + $0x28] sm:$0xff]
    %v955 = vld [vmem:[#allocation14 + $0x30] sm:$0xff]
    %v956 = vld [vmem:[#allocation14 + $0x38] sm:$0xff]
    %v957 = vld [vmem:[#allocation14 + $0x40] sm:$0xff]
    %v958 = vld [vmem:[#allocation14 + $0x48] sm:$0xff]
    %v959 = vld [vmem:[#allocation14 + $0x50] sm:$0xff]
    %v960 = vld [vmem:[#allocation14 + $0x58] sm:$0xff]
    %v961 = vld [vmem:[#allocation14 + $0x60] sm:$0xff]
    %v962 = vld [vmem:[#allocation14 + $0x68] sm:$0xff]
    %v963 = vld [vmem:[#allocation14 + $0x70] sm:$0xff]
    %v964 = vld [vmem:[#allocation14 + $0x78] sm:$0xff]
    %v965 = vld [vmem:[#allocation14 + $0x80] sm:$0xff]
    %v966 = vld [vmem:[#allocation14 + $0x88] sm:$0xff]
    %v967 = vld [vmem:[#allocation14 + $0x90] sm:$0xff]
    %v968 = vld [vmem:[#allocation14 + $0x98] sm:$0xff]
    %v969 = vld [vmem:[#allocation14 + $0xa0] sm:$0xff]
    %v970 = vld [vmem:[#allocation14 + $0xa8] sm:$0xff]
    %v971 = vld [vmem:[#allocation14 + $0xb0] sm:$0xff]
    %v972 = vld [vmem:[#allocation14 + $0xb8] sm:$0xff]
    %v973 = vld [vmem:[#allocation14 + $0xc0] sm:$0xff]
    %v974 = vld [vmem:[#allocation14 + $0xc8] sm:$0xff]
    %v975 = vld [vmem:[#allocation14 + $0xd0] sm:$0xff]
    %v976 = vld [vmem:[#allocation14 + $0xd8] sm:$0xff]
    %v977 = vld [vmem:[#allocation14 + $0xe0] sm:$0xff]
    %v978 = vld [vmem:[#allocation14 + $0xe8] sm:$0xff]
    %v979 = vld [vmem:[#allocation14 + $0xf0] sm:$0xff]
    %v980 = vld [vmem:[#allocation14 + $0xf8] sm:$0xff]
    %v981 = vld [vmem:[#allocation14 + $0x100] sm:$0xff]
    %v982 = vld [vmem:[#allocation14 + $0x108] sm:$0xff]
    %v983 = vld [vmem:[#allocation14 + $0x110] sm:$0xff]
    %v984 = vld [vmem:[#allocation14 + $0x118] sm:$0xff]
    %v985 = vld [vmem:[#allocation14 + $0x120] sm:$0xff]
    %v986 = vld [vmem:[#allocation14 + $0x128] sm:$0xff]
    %v987 = vld [vmem:[#allocation14 + $0x130] sm:$0xff]
    %v988 = vld [vmem:[#allocation14 + $0x138] sm:$0xff]
    %v989 = vld [vmem:[#allocation14 + $0x140] sm:$0xff]
    %v990 = vld [vmem:[#allocation14 + $0x148] sm:$0xff]
    %v991 = vld [vmem:[#allocation14 + $0x150] sm:$0xff]
    %v992 = vld [vmem:[#allocation14 + $0x158] sm:$0xff]
    %v993 = vld [vmem:[#allocation14 + $0x160] sm:$0xff]
    %v994 = vld [vmem:[#allocation14 + $0x168] sm:$0xff]
    %v995 = vld [vmem:[#allocation14 + $0x170] sm:$0xff]
    %v996 = vld [vmem:[#allocation14 + $0x178] sm:$0xff]
    %v997 = vld [vmem:[#allocation14 + $0x180] sm:$0xff]
    %v998 = vld [vmem:[#allocation14 + $0x188] sm:$0xff]
    %v999 = vld [vmem:[#allocation14 + $0x190] sm:$0xff]
    %v1000 = vld [vmem:[#allocation14 + $0x198] sm:$0xff]
    %v1001 = vld [vmem:[#allocation14 + $0x1a0] sm:$0xff]
    %v1002 = vld [vmem:[#allocation14 + $0x1a8] sm:$0xff]
    %v1003 = vld [vmem:[#allocation14 + $0x1b0] sm:$0xff]
    %v1004 = vld [vmem:[#allocation14 + $0x1b8] sm:$0xff]
    %v1005 = vld [vmem:[#allocation14 + $0x1c0] sm:$0xff]
    %v1006 = vld [vmem:[#allocation14 + $0x1c8] sm:$0xff]
    %v1007 = vld [vmem:[#allocation14 + $0x1d0] sm:$0xff]
    %v1008 = vld [vmem:[#allocation14 + $0x1d8] sm:$0xff]
    %v1009 = vld [vmem:[#allocation14 + $0x1e0] sm:$0xff]
    %v1010 = vld [vmem:[#allocation14 + $0x1e8] sm:$0xff]
    %v1011 = vld [vmem:[#allocation14 + $0x1f0] sm:$0xff]
    %v1012 = vld [vmem:[#allocation14 + $0x1f8] sm:$0xff]
    %v1013 = vld [vmem:[#allocation14 + $0x200] sm:$0xff]
    %v1014 = vld [vmem:[#allocation14 + $0x208] sm:$0xff]
    %v1015 = vld [vmem:[#allocation14 + $0x210] sm:$0xff]
    %v1016 = vld [vmem:[#allocation14 + $0x218] sm:$0xff]
    %v1017 = vld [vmem:[#allocation14 + $0x220] sm:$0xff]
    %v1018 = vld [vmem:[#allocation14 + $0x228] sm:$0xff]
    %v1019 = vld [vmem:[#allocation14 + $0x230] sm:$0xff]
    %v1020 = vld [vmem:[#allocation14 + $0x238] sm:$0xff]
    %v1021 = vld [vmem:[#allocation14 + $0x240] sm:$0xff]
    %v1022 = vld [vmem:[#allocation14 + $0x248] sm:$0xff]
    %v1023 = vld [vmem:[#allocation14 + $0x250] sm:$0xff]
    %v1024 = vld [vmem:[#allocation14 + $0x258] sm:$0xff]
    %v1025 = vld [vmem:[#allocation14 + $0x260] sm:$0xff]
    %v1026 = vld [vmem:[#allocation14 + $0x268] sm:$0xff]
    %v1027 = vld [vmem:[#allocation14 + $0x270] sm:$0xff]
    %v1028 = vld [vmem:[#allocation14 + $0x278] sm:$0xff]
    %v1029 = vld [vmem:[#allocation14 + $0x280] sm:$0xff]
    %v1030 = vld [vmem:[#allocation14 + $0x288] sm:$0xff]
    %v1031 = vld [vmem:[#allocation14 + $0x290] sm:$0xff]
    %v1032 = vld [vmem:[#allocation14 + $0x298] sm:$0xff]
    %v1033 = vld [vmem:[#allocation14 + $0x2a0] sm:$0xff]
    %v1034 = vld [vmem:[#allocation14 + $0x2a8] sm:$0xff]
    %v1035 = vld [vmem:[#allocation14 + $0x2b0] sm:$0xff]
    %v1036 = vld [vmem:[#allocation14 + $0x2b8] sm:$0xff]
    %v1037 = vld [vmem:[#allocation14 + $0x2c0] sm:$0xff]
    %v1038 = vld [vmem:[#allocation14 + $0x2c8] sm:$0xff]
    %v1039 = vld [vmem:[#allocation14 + $0x2d0] sm:$0xff]
    %v1040 = vld [vmem:[#allocation14 + $0x2d8] sm:$0xff]
    %v1041 = vld [vmem:[#allocation14 + $0x2e0] sm:$0xff]
    %v1042 = vld [vmem:[#allocation14 + $0x2e8] sm:$0xff]
    %v1043 = vld [vmem:[#allocation14 + $0x2f0] sm:$0xff]
    %v1044 = vld [vmem:[#allocation14 + $0x2f8] sm:$0xff]
    %v1045 = vld [vmem:[#allocation14 + $0x300] sm:$0xff]
    %v1046 = vld [vmem:[#allocation14 + $0x308] sm:$0xff]
    %v1047 = vld [vmem:[#allocation14 + $0x310] sm:$0xff]
    %v1048 = vld [vmem:[#allocation14 + $0x318] sm:$0xff]
    %v1049 = vld [vmem:[#allocation14 + $0x320] sm:$0xff]
    %v1050 = vld [vmem:[#allocation14 + $0x328] sm:$0xff]
    %v1051 = vld [vmem:[#allocation14 + $0x330] sm:$0xff]
    %v1052 = vld [vmem:[#allocation14 + $0x338] sm:$0xff]
    %v1053 = vld [vmem:[#allocation14 + $0x340] sm:$0xff]
    %v1054 = vld [vmem:[#allocation14 + $0x348] sm:$0xff]
    %v1055 = vld [vmem:[#allocation14 + $0x350] sm:$0xff]
    %v1056 = vld [vmem:[#allocation14 + $0x358] sm:$0xff]
    %v1057 = vld [vmem:[#allocation14 + $0x360] sm:$0xff]
    %v1058 = vld [vmem:[#allocation14 + $0x368] sm:$0xff]
    %v1059 = vld [vmem:[#allocation14 + $0x370] sm:$0xff]
    %v1060 = vld [vmem:[#allocation14 + $0x378] sm:$0xff]
    %v1061 = vld [vmem:[#allocation14 + $0x380] sm:$0xff]
    %v1062 = vld [vmem:[#allocation14 + $0x388] sm:$0xff]
    %v1063 = vld [vmem:[#allocation14 + $0x390] sm:$0xff]
    %v1064 = vld [vmem:[#allocation14 + $0x398] sm:$0xff]
    %v1065 = vld [vmem:[#allocation14 + $0x3a0] sm:$0xff]
    %v1066 = vld [vmem:[#allocation14 + $0x3a8] sm:$0xff]
    %v1067 = vld [vmem:[#allocation14 + $0x3b0] sm:$0xff]
    %v1068 = vld [vmem:[#allocation14 + $0x3b8] sm:$0xff]
    %v1069 = vld [vmem:[#allocation14 + $0x3c0] sm:$0xff]
    %v1070 = vld [vmem:[#allocation14 + $0x3c8] sm:$0xff]
    %v1071 = vld [vmem:[#allocation14 + $0x3d0] sm:$0xff]
    %v1072 = vld [vmem:[#allocation14 + $0x3d8] sm:$0xff]
    %v1073 = vld [vmem:[#allocation14 + $0x3e0] sm:$0xff]
    %v1074 = vld [vmem:[#allocation14 + $0x3e8] sm:$0xff]
    %v1075 = vld [vmem:[#allocation14 + $0x3f0] sm:$0xff]
    %v1076 = vld [vmem:[#allocation14 + $0x3f8] sm:$0xff]
    %v1077 = vld [vmem:[#allocation14 + $0x400] sm:$0xff]
    %v1078 = vld [vmem:[#allocation14 + $0x408] sm:$0xff]
    %v1079 = vld [vmem:[#allocation14 + $0x410] sm:$0xff]
    %v1080 = vld [vmem:[#allocation14 + $0x418] sm:$0xff]
    %v1081 = vld [vmem:[#allocation14 + $0x420] sm:$0xff]
    %v1082 = vld [vmem:[#allocation14 + $0x428] sm:$0xff]
    %v1083 = vld [vmem:[#allocation14 + $0x430] sm:$0xff]
    %v1084 = vld [vmem:[#allocation14 + $0x438] sm:$0xff]
    %v1085 = vld [vmem:[#allocation14 + $0x440] sm:$0xff]
    %v1086 = vld [vmem:[#allocation14 + $0x448] sm:$0xff]
    %v1087 = vld [vmem:[#allocation14 + $0x450] sm:$0xff]
    %v1088 = vld [vmem:[#allocation14 + $0x458] sm:$0xff]
    %v1089 = vld [vmem:[#allocation14 + $0x460] sm:$0xff]
    %v1090 = vld [vmem:[#allocation14 + $0x468] sm:$0xff]
    %v1091 = vld [vmem:[#allocation14 + $0x470] sm:$0xff]
    %v1092 = vld [vmem:[#allocation14 + $0x478] sm:$0xff]
    %v1093 = vld [vmem:[#allocation14 + $0x480] sm:$0xff]
    %v1094 = vld [vmem:[#allocation14 + $0x488] sm:$0xff]
    %v1095 = vld [vmem:[#allocation14 + $0x490] sm:$0xff]
    %v1096 = vld [vmem:[#allocation14 + $0x498] sm:$0xff]
    %v1097 = vld [vmem:[#allocation14 + $0x4a0] sm:$0xff]
    %v1098 = vld [vmem:[#allocation14 + $0x4a8] sm:$0xff]
    %v1099 = vld [vmem:[#allocation14 + $0x4b0] sm:$0xff]
    %v1100 = vld [vmem:[#allocation14 + $0x4b8] sm:$0xff]
    %v1101 = vld [vmem:[#allocation14 + $0x4c0] sm:$0xff]
    %v1102 = vld [vmem:[#allocation14 + $0x4c8] sm:$0xff]
    %v1103 = vld [vmem:[#allocation14 + $0x4d0] sm:$0xff]
    %v1104 = vld [vmem:[#allocation14 + $0x4d8] sm:$0xff]
    %v1105 = vld [vmem:[#allocation14 + $0x4e0] sm:$0xff]
    %v1106 = vld [vmem:[#allocation14 + $0x4e8] sm:$0xff]
    %v1107 = vld [vmem:[#allocation14 + $0x4f0] sm:$0xff]
    %v1108 = vld [vmem:[#allocation14 + $0x4f8] sm:$0xff]
    %v1109 = vld [vmem:[#allocation14 + $0x500] sm:$0xff]
    %v1110 = vld [vmem:[#allocation14 + $0x508] sm:$0xff]
    %v1111 = vld [vmem:[#allocation14 + $0x510] sm:$0xff]
    %v1112 = vld [vmem:[#allocation14 + $0x518] sm:$0xff]
    %v1113 = vld [vmem:[#allocation14 + $0x520] sm:$0xff]
    %v1114 = vld [vmem:[#allocation14 + $0x528] sm:$0xff]
    %v1115 = vld [vmem:[#allocation14 + $0x530] sm:$0xff]
    %v1116 = vld [vmem:[#allocation14 + $0x538] sm:$0xff]
    %v1117 = vld [vmem:[#allocation14 + $0x540] sm:$0xff]
    %v1118 = vld [vmem:[#allocation14 + $0x548] sm:$0xff]
    %v1119 = vld [vmem:[#allocation14 + $0x550] sm:$0xff]
    %v1120 = vld [vmem:[#allocation14 + $0x558] sm:$0xff]
    %v1121 = vld [vmem:[#allocation14 + $0x560] sm:$0xff]
    %v1122 = vld [vmem:[#allocation14 + $0x568] sm:$0xff]
    %v1123 = vld [vmem:[#allocation14 + $0x570] sm:$0xff]
    %v1124 = vld [vmem:[#allocation14 + $0x578] sm:$0xff]
    %v1125 = vld [vmem:[#allocation14 + $0x580] sm:$0xff]
    %v1126 = vld [vmem:[#allocation14 + $0x588] sm:$0xff]
    %v1127 = vld [vmem:[#allocation14 + $0x590] sm:$0xff]
    %v1128 = vld [vmem:[#allocation14 + $0x598] sm:$0xff]
    %v1129 = vld [vmem:[#allocation14 + $0x5a0] sm:$0xff]
    %v1130 = vld [vmem:[#allocation14 + $0x5a8] sm:$0xff]
    %v1131 = vld [vmem:[#allocation14 + $0x5b0] sm:$0xff]
    %v1132 = vld [vmem:[#allocation14 + $0x5b8] sm:$0xff]
    %v1133 = vld [vmem:[#allocation14 + $0x5c0] sm:$0xff]
    %v1134 = vld [vmem:[#allocation14 + $0x5c8] sm:$0xff]
    %v1135 = vld [vmem:[#allocation14 + $0x5d0] sm:$0xff]
    %v1136 = vld [vmem:[#allocation14 + $0x5d8] sm:$0xff]
    %v1137 = vld [vmem:[#allocation14 + $0x5e0] sm:$0xff]
    %v1138 = vld [vmem:[#allocation14 + $0x5e8] sm:$0xff]
    %v1139 = vld [vmem:[#allocation14 + $0x5f0] sm:$0xff]
    %v1140 = vld [vmem:[#allocation14 + $0x5f8] sm:$0xff]
    %v1141 = vld [vmem:[#allocation14 + $0x600] sm:$0xff]
    %v1142 = vld [vmem:[#allocation14 + $0x608] sm:$0xff]
    %v1143 = vld [vmem:[#allocation14 + $0x610] sm:$0xff]
    %v1144 = vld [vmem:[#allocation14 + $0x618] sm:$0xff]
    %v1145 = vld [vmem:[#allocation14 + $0x620] sm:$0xff]
    %v1146 = vld [vmem:[#allocation14 + $0x628] sm:$0xff]
    %v1147 = vld [vmem:[#allocation14 + $0x630] sm:$0xff]
    %v1148 = vld [vmem:[#allocation14 + $0x638] sm:$0xff]
    %v1149 = vld [vmem:[#allocation14 + $0x640] sm:$0xff]
    %v1150 = vld [vmem:[#allocation14 + $0x648] sm:$0xff]
    %v1151 = vld [vmem:[#allocation14 + $0x650] sm:$0xff]
    %v1152 = vld [vmem:[#allocation14 + $0x658] sm:$0xff]
    %v1153 = vld [vmem:[#allocation14 + $0x660] sm:$0xff]
    %v1154 = vld [vmem:[#allocation14 + $0x668] sm:$0xff]
    %v1155 = vld [vmem:[#allocation14 + $0x670] sm:$0xff]
    %v1156 = vld [vmem:[#allocation14 + $0x678] sm:$0xff]
    %v1157 = vld [vmem:[#allocation14 + $0x680] sm:$0xff]
    %v1158 = vld [vmem:[#allocation14 + $0x688] sm:$0xff]
    %v1159 = vld [vmem:[#allocation14 + $0x690] sm:$0xff]
    %v1160 = vld [vmem:[#allocation14 + $0x698] sm:$0xff]
    %v1161 = vld [vmem:[#allocation14 + $0x6a0] sm:$0xff]
    %v1162 = vld [vmem:[#allocation14 + $0x6a8] sm:$0xff]
    %v1163 = vld [vmem:[#allocation14 + $0x6b0] sm:$0xff]
    %v1164 = vld [vmem:[#allocation14 + $0x6b8] sm:$0xff]
    %v1165 = vld [vmem:[#allocation14 + $0x6c0] sm:$0xff]
    %v1166 = vld [vmem:[#allocation14 + $0x6c8] sm:$0xff]
    %v1167 = vld [vmem:[#allocation14 + $0x6d0] sm:$0xff]
    %v1168 = vld [vmem:[#allocation14 + $0x6d8] sm:$0xff]
    %v1169 = vld [vmem:[#allocation14 + $0x6e0] sm:$0xff]
    %v1170 = vld [vmem:[#allocation14 + $0x6e8] sm:$0xff]
    %v1171 = vld [vmem:[#allocation14 + $0x6f0] sm:$0xff]
    %v1172 = vld [vmem:[#allocation14 + $0x6f8] sm:$0xff]
    %v1173 = vld [vmem:[#allocation14 + $0x700] sm:$0xff]
    %v1174 = vld [vmem:[#allocation14 + $0x708] sm:$0xff]
    %v1175 = vld [vmem:[#allocation14 + $0x710] sm:$0xff]
    %v1176 = vld [vmem:[#allocation14 + $0x718] sm:$0xff]
    %v1177 = vld [vmem:[#allocation14 + $0x720] sm:$0xff]
    %v1178 = vld [vmem:[#allocation14 + $0x728] sm:$0xff]
    %v1179 = vld [vmem:[#allocation14 + $0x730] sm:$0xff]
    %v1180 = vld [vmem:[#allocation14 + $0x738] sm:$0xff]
    %v1181 = vld [vmem:[#allocation14 + $0x740] sm:$0xff]
    %v1182 = vld [vmem:[#allocation14 + $0x748] sm:$0xff]
    %v1183 = vld [vmem:[#allocation14 + $0x750] sm:$0xff]
    %v1184 = vld [vmem:[#allocation14 + $0x758] sm:$0xff]
    %v1185 = vld [vmem:[#allocation14 + $0x760] sm:$0xff]
    %v1186 = vld [vmem:[#allocation14 + $0x768] sm:$0xff]
    %v1187 = vld [vmem:[#allocation14 + $0x770] sm:$0xff]
    %v1188 = vld [vmem:[#allocation14 + $0x778] sm:$0xff]
    %v1189 = vld [vmem:[#allocation14 + $0x780] sm:$0xff]
    %v1190 = vld [vmem:[#allocation14 + $0x788] sm:$0xff]
    %v1191 = vld [vmem:[#allocation14 + $0x790] sm:$0xff]
    %v1192 = vld [vmem:[#allocation14 + $0x798] sm:$0xff]
    %v1193 = vld [vmem:[#allocation14 + $0x7a0] sm:$0xff]
    %v1194 = vld [vmem:[#allocation14 + $0x7a8] sm:$0xff]
    %v1195 = vld [vmem:[#allocation14 + $0x7b0] sm:$0xff]
    %v1196 = vld [vmem:[#allocation14 + $0x7b8] sm:$0xff]
    %v1197 = vld [vmem:[#allocation14 + $0x7c0] sm:$0xff]
    %v1198 = vld [vmem:[#allocation14 + $0x7c8] sm:$0xff]
    %v1199 = vld [vmem:[#allocation14 + $0x7d0] sm:$0xff]
    %v1200 = vld [vmem:[#allocation14 + $0x7d8] sm:$0xff]
    %v1201 = vld [vmem:[#allocation14 + $0x7e0] sm:$0xff]
    %v1202 = vld [vmem:[#allocation14 + $0x7e8] sm:$0xff]
    %v1203 = vld [vmem:[#allocation14 + $0x7f0] sm:$0xff]
    %v1204 = vld [vmem:[#allocation14 + $0x7f8] sm:$0xff]
    %v1205 = vld [vmem:[#allocation14 + $0x800] sm:$0xff]
    %v1206 = vld [vmem:[#allocation14 + $0x808] sm:$0xff]
    %v1207 = vld [vmem:[#allocation14 + $0x810] sm:$0xff]
    %v1208 = vld [vmem:[#allocation14 + $0x818] sm:$0xff]
    %v1209 = vld [vmem:[#allocation14 + $0x820] sm:$0xff]
    %v1210 = vld [vmem:[#allocation14 + $0x828] sm:$0xff]
    %v1211 = vld [vmem:[#allocation14 + $0x830] sm:$0xff]
    %v1212 = vld [vmem:[#allocation14 + $0x838] sm:$0xff]
    %v1213 = vld [vmem:[#allocation14 + $0x840] sm:$0xff]
    %v1214 = vld [vmem:[#allocation14 + $0x848] sm:$0xff]
    %v1215 = vld [vmem:[#allocation14 + $0x850] sm:$0xff]
    %v1216 = vld [vmem:[#allocation14 + $0x858] sm:$0xff]
    %v1217 = vld [vmem:[#allocation14 + $0x860] sm:$0xff]
    %v1218 = vld [vmem:[#allocation14 + $0x868] sm:$0xff]
    %v1219 = vld [vmem:[#allocation14 + $0x870] sm:$0xff]
    %v1220 = vld [vmem:[#allocation14 + $0x878] sm:$0xff]
    %v1221 = vld [vmem:[#allocation14 + $0x880] sm:$0xff]
    %v1222 = vld [vmem:[#allocation14 + $0x888] sm:$0xff]
    %v1223 = vld [vmem:[#allocation14 + $0x890] sm:$0xff]
    %v1224 = vld [vmem:[#allocation14 + $0x898] sm:$0xff]
    %v1225 = vld [vmem:[#allocation14 + $0x8a0] sm:$0xff]
    %v1226 = vld [vmem:[#allocation14 + $0x8a8] sm:$0xff]
    %v1227 = vld [vmem:[#allocation14 + $0x8b0] sm:$0xff]
    %v1228 = vld [vmem:[#allocation14 + $0x8b8] sm:$0xff]
    %v1229 = vld [vmem:[#allocation14 + $0x8c0] sm:$0xff]
    %v1230 = vld [vmem:[#allocation14 + $0x8c8] sm:$0xff]
    %v1231 = vld [vmem:[#allocation14 + $0x8d0] sm:$0xff]
    %v1232 = vld [vmem:[#allocation14 + $0x8d8] sm:$0xff]
    %v1233 = vld [vmem:[#allocation14 + $0x8e0] sm:$0xff]
    %v1234 = vld [vmem:[#allocation14 + $0x8e8] sm:$0xff]
    %v1235 = vld [vmem:[#allocation14 + $0x8f0] sm:$0xff]
    %v1236 = vld [vmem:[#allocation14 + $0x8f8] sm:$0xff]
    %v1237 = vld [vmem:[#allocation14 + $0x900] sm:$0xff]
    %v1238 = vld [vmem:[#allocation14 + $0x908] sm:$0xff]
    %v1239 = vld [vmem:[#allocation14 + $0x910] sm:$0xff]
    %v1240 = vld [vmem:[#allocation14 + $0x918] sm:$0xff]
    %v1241 = vld [vmem:[#allocation14 + $0x920] sm:$0xff]
    %v1242 = vld [vmem:[#allocation14 + $0x928] sm:$0xff]
    %v1243 = vld [vmem:[#allocation14 + $0x930] sm:$0xff]
    %v1244 = vld [vmem:[#allocation14 + $0x938] sm:$0xff]
    %v1245 = vld [vmem:[#allocation14 + $0x940] sm:$0xff]
    %v1246 = vld [vmem:[#allocation14 + $0x948] sm:$0xff]
    %v1247 = vld [vmem:[#allocation14 + $0x950] sm:$0xff]
    %v1248 = vld [vmem:[#allocation14 + $0x958] sm:$0xff]
    %v1249 = vld [vmem:[#allocation14 + $0x960] sm:$0xff]
    %v1250 = vld [vmem:[#allocation14 + $0x968] sm:$0xff]
    %v1251 = vld [vmem:[#allocation14 + $0x970] sm:$0xff]
    %v1252 = vld [vmem:[#allocation14 + $0x978] sm:$0xff]
    %v1253 = vld [vmem:[#allocation14 + $0x980] sm:$0xff]
    %v1254 = vld [vmem:[#allocation14 + $0x988] sm:$0xff]
    %v1255 = vld [vmem:[#allocation14 + $0x990] sm:$0xff]
    %v1256 = vld [vmem:[#allocation14 + $0x998] sm:$0xff]
    %v1257 = vld [vmem:[#allocation14 + $0x9a0] sm:$0xff]
    %v1258 = vld [vmem:[#allocation14 + $0x9a8] sm:$0xff]
    %v1259 = vld [vmem:[#allocation14 + $0x9b0] sm:$0xff]
    %v1260 = vld [vmem:[#allocation14 + $0x9b8] sm:$0xff]
    %v1261 = vld [vmem:[#allocation14 + $0x9c0] sm:$0xff]
    %v1262 = vld [vmem:[#allocation14 + $0x9c8] sm:$0xff]
    %v1263 = vld [vmem:[#allocation14 + $0x9d0] sm:$0xff]
    %v1264 = vld [vmem:[#allocation14 + $0x9d8] sm:$0xff]
    %v1265 = vld [vmem:[#allocation14 + $0x9e0] sm:$0xff]
    %v1266 = vld [vmem:[#allocation14 + $0x9e8] sm:$0xff]
    %v1267 = vld [vmem:[#allocation14 + $0x9f0] sm:$0xff]
    %v1268 = vld [vmem:[#allocation14 + $0x9f8] sm:$0xff]
    %v1269 = vld [vmem:[#allocation14 + $0xa00] sm:$0xff]
    %v1270 = vld [vmem:[#allocation14 + $0xa08] sm:$0xff]
    %v1271 = vld [vmem:[#allocation14 + $0xa10] sm:$0xff]
    %v1272 = vld [vmem:[#allocation14 + $0xa18] sm:$0xff]
    %v1273 = vld [vmem:[#allocation14 + $0xa20] sm:$0xff]
    %v1274 = vld [vmem:[#allocation14 + $0xa28] sm:$0xff]
    %v1275 = vld [vmem:[#allocation14 + $0xa30] sm:$0xff]
    %v1276 = vld [vmem:[#allocation14 + $0xa38] sm:$0xff]
    %v1277 = vld [vmem:[#allocation14 + $0xa40] sm:$0xff]
    %v1278 = vld [vmem:[#allocation14 + $0xa48] sm:$0xff]
    %v1279 = vld [vmem:[#allocation14 + $0xa50] sm:$0xff]
    %v1280 = vld [vmem:[#allocation14 + $0xa58] sm:$0xff]
    %v1281 = vld [vmem:[#allocation14 + $0xa60] sm:$0xff]
    %v1282 = vld [vmem:[#allocation14 + $0xa68] sm:$0xff]
    %v1283 = vld [vmem:[#allocation14 + $0xa70] sm:$0xff]
    %v1284 = vld [vmem:[#allocation14 + $0xa78] sm:$0xff]
    %v1285 = vld [vmem:[#allocation14 + $0xa80] sm:$0xff]
    %v1286 = vld [vmem:[#allocation14 + $0xa88] sm:$0xff]
    %v1287 = vld [vmem:[#allocation14 + $0xa90] sm:$0xff]
    %v1288 = vld [vmem:[#allocation14 + $0xa98] sm:$0xff]
    %v1289 = vld [vmem:[#allocation14 + $0xaa0] sm:$0xff]
    %v1290 = vld [vmem:[#allocation14 + $0xaa8] sm:$0xff]
    %v1291 = vld [vmem:[#allocation14 + $0xab0] sm:$0xff]
    %v1292 = vld [vmem:[#allocation14 + $0xab8] sm:$0xff]
    %v1293 = vld [vmem:[#allocation14 + $0xac0] sm:$0xff]
    %v1294 = vld [vmem:[#allocation14 + $0xac8] sm:$0xff]
    %v1295 = vld [vmem:[#allocation14 + $0xad0] sm:$0xff]
    %v1296 = vld [vmem:[#allocation14 + $0xad8] sm:$0xff]
    %v1297 = vld [vmem:[#allocation14 + $0xae0] sm:$0xff]
    %v1298 = vld [vmem:[#allocation14 + $0xae8] sm:$0xff]
    %v1299 = vld [vmem:[#allocation14 + $0xaf0] sm:$0xff]
    %v1300 = vld [vmem:[#allocation14 + $0xaf8] sm:$0xff]
    %v1301 = vld [vmem:[#allocation14 + $0xb00] sm:$0xff]
    %v1302 = vld [vmem:[#allocation14 + $0xb08] sm:$0xff]
    %v1303 = vld [vmem:[#allocation14 + $0xb10] sm:$0xff]
    %v1304 = vld [vmem:[#allocation14 + $0xb18] sm:$0xff]
    %v1305 = vld [vmem:[#allocation14 + $0xb20] sm:$0xff]
    %v1306 = vld [vmem:[#allocation14 + $0xb28] sm:$0xff]
    %v1307 = vld [vmem:[#allocation14 + $0xb30] sm:$0xff]
    %v1308 = vld [vmem:[#allocation14 + $0xb38] sm:$0xff]
    %v1309 = vld [vmem:[#allocation14 + $0xb40] sm:$0xff]
    %v1310 = vld [vmem:[#allocation14 + $0xb48] sm:$0xff]
    %v1311 = vld [vmem:[#allocation14 + $0xb50] sm:$0xff]
    %v1312 = vld [vmem:[#allocation14 + $0xb58] sm:$0xff]
    %v1313 = vld [vmem:[#allocation14 + $0xb60] sm:$0xff]
    %v1314 = vld [vmem:[#allocation14 + $0xb68] sm:$0xff]
    %v1315 = vld [vmem:[#allocation14 + $0xb70] sm:$0xff]
    %v1316 = vld [vmem:[#allocation14 + $0xb78] sm:$0xff]
    %v1317 = vld [vmem:[#allocation14 + $0xb80] sm:$0xff]
    %v1318 = vld [vmem:[#allocation14 + $0xb88] sm:$0xff]
    %v1319 = vld [vmem:[#allocation14 + $0xb90] sm:$0xff]
    %v1320 = vld [vmem:[#allocation14 + $0xb98] sm:$0xff]
    %v1321 = vld [vmem:[#allocation14 + $0xba0] sm:$0xff]
    %v1322 = vld [vmem:[#allocation14 + $0xba8] sm:$0xff]
    %v1323 = vld [vmem:[#allocation14 + $0xbb0] sm:$0xff]
    %v1324 = vld [vmem:[#allocation14 + $0xbb8] sm:$0xff]
    %v1325 = vld [vmem:[#allocation14 + $0xbc0] sm:$0xff]
    %v1326 = vld [vmem:[#allocation14 + $0xbc8] sm:$0xff]
    %v1327 = vld [vmem:[#allocation14 + $0xbd0] sm:$0xff]
    %v1328 = vld [vmem:[#allocation14 + $0xbd8] sm:$0xff]
    %v1329 = vld [vmem:[#allocation14 + $0xbe0] sm:$0xff]
    %v1330 = vld [vmem:[#allocation14 + $0xbe8] sm:$0xff]
    %v1331 = vld [vmem:[#allocation14 + $0xbf0] sm:$0xff]
    %v1332 = vld [vmem:[#allocation14 + $0xbf8] sm:$0xff]
    %v1333 = vld [vmem:[#allocation14 + $0xc00] sm:$0xff]
    %v1334 = vld [vmem:[#allocation14 + $0xc08] sm:$0xff]
    %v1335 = vld [vmem:[#allocation14 + $0xc10] sm:$0xff]
    %v1336 = vld [vmem:[#allocation14 + $0xc18] sm:$0xff]
    %v1337 = vld [vmem:[#allocation14 + $0xc20] sm:$0xff]
    %v1338 = vld [vmem:[#allocation14 + $0xc28] sm:$0xff]
    %v1339 = vld [vmem:[#allocation14 + $0xc30] sm:$0xff]
    %v1340 = vld [vmem:[#allocation14 + $0xc38] sm:$0xff]
    %v1341 = vld [vmem:[#allocation14 + $0xc40] sm:$0xff]
    %v1342 = vld [vmem:[#allocation14 + $0xc48] sm:$0xff]
    %v1343 = vld [vmem:[#allocation14 + $0xc50] sm:$0xff]
    %v1344 = vld [vmem:[#allocation14 + $0xc58] sm:$0xff]
    %v1345 = vld [vmem:[#allocation14 + $0xc60] sm:$0xff]
    %v1346 = vld [vmem:[#allocation14 + $0xc68] sm:$0xff]
    %v1347 = vld [vmem:[#allocation14 + $0xc70] sm:$0xff]
    %v1348 = vld [vmem:[#allocation14 + $0xc78] sm:$0xff]
    %v1349 = vld [vmem:[#allocation14 + $0xc80] sm:$0xff]
    %v1350 = vld [vmem:[#allocation14 + $0xc88] sm:$0xff]
    %v1351 = vld [vmem:[#allocation14 + $0xc90] sm:$0xff]
    %v1352 = vld [vmem:[#allocation14 + $0xc98] sm:$0xff]
    %v1353 = vld [vmem:[#allocation14 + $0xca0] sm:$0xff]
    %v1354 = vld [vmem:[#allocation14 + $0xca8] sm:$0xff]
    %v1355 = vld [vmem:[#allocation14 + $0xcb0] sm:$0xff]
    %v1356 = vld [vmem:[#allocation14 + $0xcb8] sm:$0xff]
    %v1357 = vld [vmem:[#allocation14 + $0xcc0] sm:$0xff]
    %v1358 = vld [vmem:[#allocation14 + $0xcc8] sm:$0xff]
    %v1359 = vld [vmem:[#allocation14 + $0xcd0] sm:$0xff]
    %v1360 = vld [vmem:[#allocation14 + $0xcd8] sm:$0xff]
    %v1361 = vld [vmem:[#allocation14 + $0xce0] sm:$0xff]
    %v1362 = vld [vmem:[#allocation14 + $0xce8] sm:$0xff]
    %v1363 = vld [vmem:[#allocation14 + $0xcf0] sm:$0xff]
    %v1364 = vld [vmem:[#allocation14 + $0xcf8] sm:$0xff]
    %v1365 = vld [vmem:[#allocation14 + $0xd00] sm:$0xff]
    %v1366 = vld [vmem:[#allocation14 + $0xd08] sm:$0xff]
    %v1367 = vld [vmem:[#allocation14 + $0xd10] sm:$0xff]
    %v1368 = vld [vmem:[#allocation14 + $0xd18] sm:$0xff]
    %v1369 = vld [vmem:[#allocation14 + $0xd20] sm:$0xff]
    %v1370 = vld [vmem:[#allocation14 + $0xd28] sm:$0xff]
    %v1371 = vld [vmem:[#allocation14 + $0xd30] sm:$0xff]
    %v1372 = vld [vmem:[#allocation14 + $0xd38] sm:$0xff]
    %v1373 = vld [vmem:[#allocation14 + $0xd40] sm:$0xff]
    %v1374 = vld [vmem:[#allocation14 + $0xd48] sm:$0xff]
    %v1375 = vld [vmem:[#allocation14 + $0xd50] sm:$0xff]
    %v1376 = vld [vmem:[#allocation14 + $0xd58] sm:$0xff]
    %v1377 = vld [vmem:[#allocation14 + $0xd60] sm:$0xff]
    %v1378 = vld [vmem:[#allocation14 + $0xd68] sm:$0xff]
    %v1379 = vld [vmem:[#allocation14 + $0xd70] sm:$0xff]
    %v1380 = vld [vmem:[#allocation14 + $0xd78] sm:$0xff]
    %v1381 = vld [vmem:[#allocation14 + $0xd80] sm:$0xff]
    %v1382 = vld [vmem:[#allocation14 + $0xd88] sm:$0xff]
    %v1383 = vld [vmem:[#allocation14 + $0xd90] sm:$0xff]
    %v1384 = vld [vmem:[#allocation14 + $0xd98] sm:$0xff]
    %v1385 = vld [vmem:[#allocation14 + $0xda0] sm:$0xff]
    %v1386 = vld [vmem:[#allocation14 + $0xda8] sm:$0xff]
    %v1387 = vld [vmem:[#allocation14 + $0xdb0] sm:$0xff]
    %v1388 = vld [vmem:[#allocation14 + $0xdb8] sm:$0xff]
    %v1389 = vld [vmem:[#allocation14 + $0xdc0] sm:$0xff]
    %v1390 = vld [vmem:[#allocation14 + $0xdc8] sm:$0xff]
    %v1391 = vld [vmem:[#allocation14 + $0xdd0] sm:$0xff]
    %v1392 = vld [vmem:[#allocation14 + $0xdd8] sm:$0xff]
    %v1393 = vld [vmem:[#allocation14 + $0xde0] sm:$0xff]
    %v1394 = vld [vmem:[#allocation14 + $0xde8] sm:$0xff]
    %v1395 = vld [vmem:[#allocation14 + $0xdf0] sm:$0xff]
    %v1396 = vld [vmem:[#allocation14 + $0xdf8] sm:$0xff]
    %v1397 = vld [vmem:[#allocation14 + $0xe00] sm:$0xff]
    %v1398 = vld [vmem:[#allocation14 + $0xe08] sm:$0xff]
    %v1399 = vld [vmem:[#allocation14 + $0xe10] sm:$0xff]
    %v1400 = vld [vmem:[#allocation14 + $0xe18] sm:$0xff]
    %v1401 = vld [vmem:[#allocation14 + $0xe20] sm:$0xff]
    %v1402 = vld [vmem:[#allocation14 + $0xe28] sm:$0xff]
    %v1403 = vld [vmem:[#allocation14 + $0xe30] sm:$0xff]
    %v1404 = vld [vmem:[#allocation14 + $0xe38] sm:$0xff]
    %v1405 = vld [vmem:[#allocation14 + $0xe40] sm:$0xff]
    %v1406 = vld [vmem:[#allocation14 + $0xe48] sm:$0xff]
    %v1407 = vld [vmem:[#allocation14 + $0xe50] sm:$0xff]
    %v1408 = vld [vmem:[#allocation14 + $0xe58] sm:$0xff]
    %v1409 = vld [vmem:[#allocation14 + $0xe60] sm:$0xff]
    %v1410 = vld [vmem:[#allocation14 + $0xe68] sm:$0xff]
    %v1411 = vld [vmem:[#allocation14 + $0xe70] sm:$0xff]
    %v1412 = vld [vmem:[#allocation14 + $0xe78] sm:$0xff]
    %v1413 = vld [vmem:[#allocation14 + $0xe80] sm:$0xff]
    %v1414 = vld [vmem:[#allocation14 + $0xe88] sm:$0xff]
    %v1415 = vld [vmem:[#allocation14 + $0xe90] sm:$0xff]
    %v1416 = vld [vmem:[#allocation14 + $0xe98] sm:$0xff]
    %v1417 = vld [vmem:[#allocation14 + $0xea0] sm:$0xff]
    %v1418 = vld [vmem:[#allocation14 + $0xea8] sm:$0xff]
    %v1419 = vld [vmem:[#allocation14 + $0xeb0] sm:$0xff]
    %v1420 = vld [vmem:[#allocation14 + $0xeb8] sm:$0xff]
    %v1421 = vld [vmem:[#allocation14 + $0xec0] sm:$0xff]
    %v1422 = vld [vmem:[#allocation14 + $0xec8] sm:$0xff]
    %v1423 = vld [vmem:[#allocation14 + $0xed0] sm:$0xff]
    %v1424 = vld [vmem:[#allocation14 + $0xed8] sm:$0xff]
    %v1425 = vld [vmem:[#allocation14 + $0xee0] sm:$0xff]
    %v1426 = vld [vmem:[#allocation14 + $0xee8] sm:$0xff]
    %v1427 = vld [vmem:[#allocation14 + $0xef0] sm:$0xff]
    %v1428 = vld [vmem:[#allocation14 + $0xef8] sm:$0xff]
    %v1429 = vld [vmem:[#allocation14 + $0xf00] sm:$0xff]
    %v1430 = vld [vmem:[#allocation14 + $0xf08] sm:$0xff]
    %v1431 = vld [vmem:[#allocation14 + $0xf10] sm:$0xff]
    %v1432 = vld [vmem:[#allocation14 + $0xf18] sm:$0xff]
    %v1433 = vld [vmem:[#allocation14 + $0xf20] sm:$0xff]
    %v1434 = vld [vmem:[#allocation14 + $0xf28] sm:$0xff]
    %v1435 = vld [vmem:[#allocation14 + $0xf30] sm:$0xff]
    %v1436 = vld [vmem:[#allocation14 + $0xf38] sm:$0xff]
    %v1437 = vld [vmem:[#allocation14 + $0xf40] sm:$0xff]
    %v1438 = vld [vmem:[#allocation14 + $0xf48] sm:$0xff]
    %v1439 = vld [vmem:[#allocation14 + $0xf50] sm:$0xff]
    %v1440 = vld [vmem:[#allocation14 + $0xf58] sm:$0xff]
    %v1441 = vld [vmem:[#allocation14 + $0xf60] sm:$0xff]
    %v1442 = vld [vmem:[#allocation14 + $0xf68] sm:$0xff]
    %v1443 = vld [vmem:[#allocation14 + $0xf70] sm:$0xff]
    %v1444 = vld [vmem:[#allocation14 + $0xf78] sm:$0xff]
    %v1445 = vld [vmem:[#allocation14 + $0xf80] sm:$0xff]
    %v1446 = vld [vmem:[#allocation14 + $0xf88] sm:$0xff]
    %v1447 = vld [vmem:[#allocation14 + $0xf90] sm:$0xff]
    %v1448 = vld [vmem:[#allocation14 + $0xf98] sm:$0xff]
    %v1449 = vld [vmem:[#allocation14 + $0xfa0] sm:$0xff]
    %v1450 = vld [vmem:[#allocation14 + $0xfa8] sm:$0xff]
    %v1451 = vld [vmem:[#allocation14 + $0xfb0] sm:$0xff]
    %v1452 = vld [vmem:[#allocation14 + $0xfb8] sm:$0xff]
    %v1453 = vld [vmem:[#allocation14 + $0xfc0] sm:$0xff]
    %v1454 = vld [vmem:[#allocation14 + $0xfc8] sm:$0xff]
    %v1455 = vld [vmem:[#allocation14 + $0xfd0] sm:$0xff]
    %v1456 = vld [vmem:[#allocation14 + $0xfd8] sm:$0xff]
    %v1457 = vld [vmem:[#allocation14 + $0xfe0] sm:$0xff]
    %v1458 = vld [vmem:[#allocation14 + $0xfe8] sm:$0xff]
    %v1459 = vld [vmem:[#allocation14 + $0xff0] sm:$0xff]
    %v1460 = vld [vmem:[#allocation14 + $0xff8] sm:$0xff]
    %v1461 = vld [vmem:[#allocation14 + $0x1000] sm:$0xff]
    %v1462 = vld [vmem:[#allocation14 + $0x1008] sm:$0xff]
    %v1463 = vld [vmem:[#allocation14 + $0x1010] sm:$0xff]
    %v1464 = vld [vmem:[#allocation14 + $0x1018] sm:$0xff]
    %v1465 = vld [vmem:[#allocation14 + $0x1020] sm:$0xff]
    %v1466 = vld [vmem:[#allocation14 + $0x1028] sm:$0xff]
    %v1467 = vld [vmem:[#allocation14 + $0x1030] sm:$0xff]
    %v1468 = vld [vmem:[#allocation14 + $0x1038] sm:$0xff]
    %v1469 = vld [vmem:[#allocation14 + $0x1040] sm:$0xff]
    %v1470 = vld [vmem:[#allocation14 + $0x1048] sm:$0xff]
    %v1471 = vld [vmem:[#allocation14 + $0x1050] sm:$0xff]
    %v1472 = vld [vmem:[#allocation14 + $0x1058] sm:$0xff]
    %v1473 = vld [vmem:[#allocation14 + $0x1060] sm:$0xff]
    %v1474 = vld [vmem:[#allocation14 + $0x1068] sm:$0xff]
    %v1475 = vld [vmem:[#allocation14 + $0x1070] sm:$0xff]
    %v1476 = vld [vmem:[#allocation14 + $0x1078] sm:$0xff]
    %v1477 = vld [vmem:[#allocation14 + $0x1080] sm:$0xff]
    %v1478 = vld [vmem:[#allocation14 + $0x1088] sm:$0xff]
    %v1479 = vld [vmem:[#allocation14 + $0x1090] sm:$0xff]
    %v1480 = vld [vmem:[#allocation14 + $0x1098] sm:$0xff]
    %v1481 = vld [vmem:[#allocation14 + $0x10a0] sm:$0xff]
    %v1482 = vld [vmem:[#allocation14 + $0x10a8] sm:$0xff]
    %v1483 = vld [vmem:[#allocation14 + $0x10b0] sm:$0xff]
    %v1484 = vld [vmem:[#allocation14 + $0x10b8] sm:$0xff]
    %v1485 = vld [vmem:[#allocation14 + $0x10c0] sm:$0xff]
    %v1486 = vld [vmem:[#allocation14 + $0x10c8] sm:$0xff]
    %v1487 = vld [vmem:[#allocation14 + $0x10d0] sm:$0xff]
    %v1488 = vld [vmem:[#allocation14 + $0x10d8] sm:$0xff]
    %v1489 = vld [vmem:[#allocation14 + $0x10e0] sm:$0xff]
    %v1490 = vld [vmem:[#allocation14 + $0x10e8] sm:$0xff]
    %v1491 = vld [vmem:[#allocation14 + $0x10f0] sm:$0xff]
    %v1492 = vld [vmem:[#allocation14 + $0x10f8] sm:$0xff]
    %v1493 = vld [vmem:[#allocation14 + $0x1100] sm:$0xff]
    %v1494 = vld [vmem:[#allocation14 + $0x1108] sm:$0xff]
    %v1495 = vld [vmem:[#allocation14 + $0x1110] sm:$0xff]
    %v1496 = vld [vmem:[#allocation14 + $0x1118] sm:$0xff]
    %v1497 = vld [vmem:[#allocation14 + $0x1120] sm:$0xff]
    %v1498 = vld [vmem:[#allocation14 + $0x1128] sm:$0xff]
    %v1499 = vld [vmem:[#allocation14 + $0x1130] sm:$0xff]
    %v1500 = vld [vmem:[#allocation14 + $0x1138] sm:$0xff]
    %v1501 = vld [vmem:[#allocation14 + $0x1140] sm:$0xff]
    %v1502 = vld [vmem:[#allocation14 + $0x1148] sm:$0xff]
    %v1503 = vld [vmem:[#allocation14 + $0x1150] sm:$0xff]
    %v1504 = vld [vmem:[#allocation14 + $0x1158] sm:$0xff]
    %v1505 = vld [vmem:[#allocation14 + $0x1160] sm:$0xff]
    %v1506 = vld [vmem:[#allocation14 + $0x1168] sm:$0xff]
    %v1507 = vld [vmem:[#allocation14 + $0x1170] sm:$0xff]
    %v1508 = vld [vmem:[#allocation14 + $0x1178] sm:$0xff]
    %v1509 = vld [vmem:[#allocation14 + $0x1180] sm:$0xff]
    %v1510 = vld [vmem:[#allocation14 + $0x1188] sm:$0xff]
    %v1511 = vld [vmem:[#allocation14 + $0x1190] sm:$0xff]
    %v1512 = vld [vmem:[#allocation14 + $0x1198] sm:$0xff]
    %v1513 = vld [vmem:[#allocation14 + $0x11a0] sm:$0xff]
    %v1514 = vld [vmem:[#allocation14 + $0x11a8] sm:$0xff]
    %v1515 = vld [vmem:[#allocation14 + $0x11b0] sm:$0xff]
    %v1516 = vld [vmem:[#allocation14 + $0x11b8] sm:$0xff]
    %v1517 = vld [vmem:[#allocation14 + $0x11c0] sm:$0xff]
    %v1518 = vld [vmem:[#allocation14 + $0x11c8] sm:$0xff]
    %v1519 = vld [vmem:[#allocation14 + $0x11d0] sm:$0xff]
    %v1520 = vld [vmem:[#allocation14 + $0x11d8] sm:$0xff]
    %v1521 = vld [vmem:[#allocation14 + $0x11e0] sm:$0xff]
    %v1522 = vld [vmem:[#allocation14 + $0x11e8] sm:$0xff]
    %v1523 = vld [vmem:[#allocation14 + $0x11f0] sm:$0xff]
    %v1524 = vld [vmem:[#allocation14 + $0x11f8] sm:$0xff]
    %v1525 = vld [vmem:[#allocation14 + $0x1200] sm:$0xff]
    %v1526 = vld [vmem:[#allocation14 + $0x1208] sm:$0xff]
    %v1527 = vld [vmem:[#allocation14 + $0x1210] sm:$0xff]
    %v1528 = vld [vmem:[#allocation14 + $0x1218] sm:$0xff]
    %v1529 = vld [vmem:[#allocation14 + $0x1220] sm:$0xff]
    %v1530 = vld [vmem:[#allocation14 + $0x1228] sm:$0xff]
    %v1531 = vld [vmem:[#allocation14 + $0x1230] sm:$0xff]
    %v1532 = vld [vmem:[#allocation14 + $0x1238] sm:$0xff]
    %v1533 = vld [vmem:[#allocation14 + $0x1240] sm:$0xff]
    %v1534 = vld [vmem:[#allocation14 + $0x1248] sm:$0xff]
    %v1535 = vld [vmem:[#allocation14 + $0x1250] sm:$0xff]
    %v1536 = vld [vmem:[#allocation14 + $0x1258] sm:$0xff]
    %v1537 = vld [vmem:[#allocation14 + $0x1260] sm:$0xff]
    %v1538 = vld [vmem:[#allocation14 + $0x1268] sm:$0xff]
    %v1539 = vld [vmem:[#allocation14 + $0x1270] sm:$0xff]
    %v1540 = vld [vmem:[#allocation14 + $0x1278] sm:$0xff]
    %v1541 = vld [vmem:[#allocation14 + $0x1280] sm:$0xff]
    %v1542 = vld [vmem:[#allocation14 + $0x1288] sm:$0xff]
    %v1543 = vld [vmem:[#allocation14 + $0x1290] sm:$0xff]
    %v1544 = vld [vmem:[#allocation14 + $0x1298] sm:$0xff]
    %v1545 = vld [vmem:[#allocation14 + $0x12a0] sm:$0xff]
    %v1546 = vld [vmem:[#allocation14 + $0x12a8] sm:$0xff]
    %v1547 = vld [vmem:[#allocation14 + $0x12b0] sm:$0xff]
    %v1548 = vld [vmem:[#allocation14 + $0x12b8] sm:$0xff]
    %v1549 = vld [vmem:[#allocation14 + $0x12c0] sm:$0xff]
    %v1550 = vld [vmem:[#allocation14 + $0x12c8] sm:$0xff]
    %v1551 = vld [vmem:[#allocation14 + $0x12d0] sm:$0xff]
    %v1552 = vld [vmem:[#allocation14 + $0x12d8] sm:$0xff]
    %v1553 = vld [vmem:[#allocation14 + $0x12e0] sm:$0xff]
    %v1554 = vld [vmem:[#allocation14 + $0x12e8] sm:$0xff]
    %v1555 = vld [vmem:[#allocation14 + $0x12f0] sm:$0xff]
    %v1556 = vld [vmem:[#allocation14 + $0x12f8] sm:$0xff]
    %v1557 = vld [vmem:[#allocation14 + $0x1300] sm:$0xff]
    %v1558 = vld [vmem:[#allocation14 + $0x1308] sm:$0xff]
    %v1559 = vld [vmem:[#allocation14 + $0x1310] sm:$0xff]
    %v1560 = vld [vmem:[#allocation14 + $0x1318] sm:$0xff]
    %v1561 = vld [vmem:[#allocation14 + $0x1320] sm:$0xff]
    %v1562 = vld [vmem:[#allocation14 + $0x1328] sm:$0xff]
    %v1563 = vld [vmem:[#allocation14 + $0x1330] sm:$0xff]
    %v1564 = vld [vmem:[#allocation14 + $0x1338] sm:$0xff]
    %v1565 = vld [vmem:[#allocation14 + $0x1340] sm:$0xff]
    %v1566 = vld [vmem:[#allocation14 + $0x1348] sm:$0xff]
    %v1567 = vld [vmem:[#allocation14 + $0x1350] sm:$0xff]
    %v1568 = vld [vmem:[#allocation14 + $0x1358] sm:$0xff]
    %v1569 = vld [vmem:[#allocation14 + $0x1360] sm:$0xff]
    %v1570 = vld [vmem:[#allocation14 + $0x1368] sm:$0xff]
    %v1571 = vld [vmem:[#allocation14 + $0x1370] sm:$0xff]
    %v1572 = vld [vmem:[#allocation14 + $0x1378] sm:$0xff]
    %v1573 = vld [vmem:[#allocation14 + $0x1380] sm:$0xff]
    %v1574 = vld [vmem:[#allocation14 + $0x1388] sm:$0xff]
    %v1575 = vld [vmem:[#allocation14 + $0x1390] sm:$0xff]
    %v1576 = vld [vmem:[#allocation14 + $0x1398] sm:$0xff]
    %v1577 = vld [vmem:[#allocation14 + $0x13a0] sm:$0xff]
    %v1578 = vld [vmem:[#allocation14 + $0x13a8] sm:$0xff]
    %v1579 = vld [vmem:[#allocation14 + $0x13b0] sm:$0xff]
    %v1580 = vld [vmem:[#allocation14 + $0x13b8] sm:$0xff]
    %v1581 = vld [vmem:[#allocation14 + $0x13c0] sm:$0xff]
    %v1582 = vld [vmem:[#allocation14 + $0x13c8] sm:$0xff]
    %v1583 = vld [vmem:[#allocation14 + $0x13d0] sm:$0xff]
    %v1584 = vld [vmem:[#allocation14 + $0x13d8] sm:$0xff]
    %v1585 = vld [vmem:[#allocation14 + $0x13e0] sm:$0xff]
    %v1586 = vld [vmem:[#allocation14 + $0x13e8] sm:$0xff]
    %v1587 = vld [vmem:[#allocation14 + $0x13f0] sm:$0xff]
    %v1588 = vld [vmem:[#allocation14 + $0x13f8] sm:$0xff]
    %v1589 = vld [vmem:[#allocation14 + $0x1400] sm:$0xff]
    %v1590 = vld [vmem:[#allocation14 + $0x1408] sm:$0xff]
    %v1591 = vld [vmem:[#allocation14 + $0x1410] sm:$0xff]
    %v1592 = vld [vmem:[#allocation14 + $0x1418] sm:$0xff]
    %v1593 = vld [vmem:[#allocation14 + $0x1420] sm:$0xff]
    %v1594 = vld [vmem:[#allocation14 + $0x1428] sm:$0xff]
    %v1595 = vld [vmem:[#allocation14 + $0x1430] sm:$0xff]
    %v1596 = vld [vmem:[#allocation14 + $0x1438] sm:$0xff]
    %v1597 = vld [vmem:[#allocation14 + $0x1440] sm:$0xff]
    %v1598 = vld [vmem:[#allocation14 + $0x1448] sm:$0xff]
    %v1599 = vld [vmem:[#allocation14 + $0x1450] sm:$0xff]
    %v1600 = vld [vmem:[#allocation14 + $0x1458] sm:$0xff]
    %v1601 = vld [vmem:[#allocation14 + $0x1460] sm:$0xff]
    %v1602 = vld [vmem:[#allocation14 + $0x1468] sm:$0xff]
    %v1603 = vld [vmem:[#allocation14 + $0x1470] sm:$0xff]
    %v1604 = vld [vmem:[#allocation14 + $0x1478] sm:$0xff]
    %v1605 = vld [vmem:[#allocation14 + $0x1480] sm:$0xff]
    %v1606 = vld [vmem:[#allocation14 + $0x1488] sm:$0xff]
    %v1607 = vld [vmem:[#allocation14 + $0x1490] sm:$0xff]
    %v1608 = vld [vmem:[#allocation14 + $0x1498] sm:$0xff]
    %v1609 = vld [vmem:[#allocation14 + $0x14a0] sm:$0xff]
    %v1610 = vld [vmem:[#allocation14 + $0x14a8] sm:$0xff]
    %v1611 = vld [vmem:[#allocation14 + $0x14b0] sm:$0xff]
    %v1612 = vld [vmem:[#allocation14 + $0x14b8] sm:$0xff]
    %v1613 = vld [vmem:[#allocation14 + $0x14c0] sm:$0xff]
    %v1614 = vld [vmem:[#allocation14 + $0x14c8] sm:$0xff]
    %v1615 = vld [vmem:[#allocation14 + $0x14d0] sm:$0xff]
    %v1616 = vld [vmem:[#allocation14 + $0x14d8] sm:$0xff]
    %v1617 = vld [vmem:[#allocation14 + $0x14e0] sm:$0xff]
    %v1618 = vld [vmem:[#allocation14 + $0x14e8] sm:$0xff]
    %v1619 = vld [vmem:[#allocation14 + $0x14f0] sm:$0xff]
    %v1620 = vld [vmem:[#allocation14 + $0x14f8] sm:$0xff]
    %v1621 = vld [vmem:[#allocation14 + $0x1500] sm:$0xff]
    %v1622 = vld [vmem:[#allocation14 + $0x1508] sm:$0xff]
    %v1623 = vld [vmem:[#allocation14 + $0x1510] sm:$0xff]
    %v1624 = vld [vmem:[#allocation14 + $0x1518] sm:$0xff]
    %v1625 = vld [vmem:[#allocation14 + $0x1520] sm:$0xff]
    %v1626 = vld [vmem:[#allocation14 + $0x1528] sm:$0xff]
    %v1627 = vld [vmem:[#allocation14 + $0x1530] sm:$0xff]
    %v1628 = vld [vmem:[#allocation14 + $0x1538] sm:$0xff]
    %v1629 = vld [vmem:[#allocation14 + $0x1540] sm:$0xff]
    %v1630 = vld [vmem:[#allocation14 + $0x1548] sm:$0xff]
    %v1631 = vld [vmem:[#allocation14 + $0x1550] sm:$0xff]
    %v1632 = vld [vmem:[#allocation14 + $0x1558] sm:$0xff]
    %v1633 = vld [vmem:[#allocation14 + $0x1560] sm:$0xff]
    %v1634 = vld [vmem:[#allocation14 + $0x1568] sm:$0xff]
    %v1635 = vld [vmem:[#allocation14 + $0x1570] sm:$0xff]
    %v1636 = vld [vmem:[#allocation14 + $0x1578] sm:$0xff]
    %v1637 = vld [vmem:[#allocation14 + $0x1580] sm:$0xff]
    %v1638 = vld [vmem:[#allocation14 + $0x1588] sm:$0xff]
    %v1639 = vld [vmem:[#allocation14 + $0x1590] sm:$0xff]
    %v1640 = vld [vmem:[#allocation14 + $0x1598] sm:$0xff]
    %v1641 = vld [vmem:[#allocation14 + $0x15a0] sm:$0xff]
    %v1642 = vld [vmem:[#allocation14 + $0x15a8] sm:$0xff]
    %v1643 = vld [vmem:[#allocation14 + $0x15b0] sm:$0xff]
    %v1644 = vld [vmem:[#allocation14 + $0x15b8] sm:$0xff]
    %v1645 = vld [vmem:[#allocation14 + $0x15c0] sm:$0xff]
    %v1646 = vld [vmem:[#allocation14 + $0x15c8] sm:$0xff]
    %v1647 = vld [vmem:[#allocation14 + $0x15d0] sm:$0xff]
    %v1648 = vld [vmem:[#allocation14 + $0x15d8] sm:$0xff]
    %v1649 = vld [vmem:[#allocation14 + $0x15e0] sm:$0xff]
    %v1650 = vld [vmem:[#allocation14 + $0x15e8] sm:$0xff]
    %v1651 = vld [vmem:[#allocation14 + $0x15f0] sm:$0xff]
    %v1652 = vld [vmem:[#allocation14 + $0x15f8] sm:$0xff]
    %v1653 = vld [vmem:[#allocation14 + $0x1600] sm:$0xff]
    %v1654 = vld [vmem:[#allocation14 + $0x1608] sm:$0xff]
    %v1655 = vld [vmem:[#allocation14 + $0x1610] sm:$0xff]
    %v1656 = vld [vmem:[#allocation14 + $0x1618] sm:$0xff]
    %v1657 = vld [vmem:[#allocation14 + $0x1620] sm:$0xff]
    %v1658 = vld [vmem:[#allocation14 + $0x1628] sm:$0xff]
    %v1659 = vld [vmem:[#allocation14 + $0x1630] sm:$0xff]
    %v1660 = vld [vmem:[#allocation14 + $0x1638] sm:$0xff]
    %v1661 = vld [vmem:[#allocation14 + $0x1640] sm:$0xff]
    %v1662 = vld [vmem:[#allocation14 + $0x1648] sm:$0xff]
    %v1663 = vld [vmem:[#allocation14 + $0x1650] sm:$0xff]
    %v1664 = vld [vmem:[#allocation14 + $0x1658] sm:$0xff]
    %v1665 = vld [vmem:[#allocation14 + $0x1660] sm:$0xff]
    %v1666 = vld [vmem:[#allocation14 + $0x1668] sm:$0xff]
    %v1667 = vld [vmem:[#allocation14 + $0x1670] sm:$0xff]
    %v1668 = vld [vmem:[#allocation14 + $0x1678] sm:$0xff]
    %v1669 = vld [vmem:[#allocation14 + $0x1680] sm:$0xff]
    %v1670 = vld [vmem:[#allocation14 + $0x1688] sm:$0xff]
    %v1671 = vld [vmem:[#allocation14 + $0x1690] sm:$0xff]
    %v1672 = vld [vmem:[#allocation14 + $0x1698] sm:$0xff]
    %v1673 = vld [vmem:[#allocation14 + $0x16a0] sm:$0xff]
    %v1674 = vld [vmem:[#allocation14 + $0x16a8] sm:$0xff]
    %v1675 = vld [vmem:[#allocation14 + $0x16b0] sm:$0xff]
    %v1676 = vld [vmem:[#allocation14 + $0x16b8] sm:$0xff]
    %v1677 = vld [vmem:[#allocation14 + $0x16c0] sm:$0xff]
    %v1678 = vld [vmem:[#allocation14 + $0x16c8] sm:$0xff]
    %v1679 = vld [vmem:[#allocation14 + $0x16d0] sm:$0xff]
    %v1680 = vld [vmem:[#allocation14 + $0x16d8] sm:$0xff]
    %v1681 = vld [vmem:[#allocation14 + $0x16e0] sm:$0xff]
    %v1682 = vld [vmem:[#allocation14 + $0x16e8] sm:$0xff]
    %v1683 = vld [vmem:[#allocation14 + $0x16f0] sm:$0xff]
    %v1684 = vld [vmem:[#allocation14 + $0x16f8] sm:$0xff]
    %v1685 = vld [vmem:[#allocation14 + $0x1700] sm:$0xff]
    %v1686 = vld [vmem:[#allocation14 + $0x1708] sm:$0xff]
    %v1687 = vld [vmem:[#allocation14 + $0x1710] sm:$0xff]
    %v1688 = vld [vmem:[#allocation14 + $0x1718] sm:$0xff]
    %v1689 = vld [vmem:[#allocation14 + $0x1720] sm:$0xff]
    %v1690 = vld [vmem:[#allocation14 + $0x1728] sm:$0xff]
    %v1691 = vld [vmem:[#allocation14 + $0x1730] sm:$0xff]
    %v1692 = vld [vmem:[#allocation14 + $0x1738] sm:$0xff]
    %v1693 = vld [vmem:[#allocation14 + $0x1740] sm:$0xff]
    %v1694 = vld [vmem:[#allocation14 + $0x1748] sm:$0xff]
    %v1695 = vld [vmem:[#allocation14 + $0x1750] sm:$0xff]
    %v1696 = vld [vmem:[#allocation14 + $0x1758] sm:$0xff]
    %v1697 = vld [vmem:[#allocation14 + $0x1760] sm:$0xff]
    %v1698 = vld [vmem:[#allocation14 + $0x1768] sm:$0xff]
    %v1699 = vld [vmem:[#allocation14 + $0x1770] sm:$0xff]
    %v1700 = vld [vmem:[#allocation14 + $0x1778] sm:$0xff]
    %v1701 = vld [vmem:[#allocation14 + $0x1780] sm:$0xff]
    %v1702 = vld [vmem:[#allocation14 + $0x1788] sm:$0xff]
    %v1703 = vld [vmem:[#allocation14 + $0x1790] sm:$0xff]
    %v1704 = vld [vmem:[#allocation14 + $0x1798] sm:$0xff]
    %v1705 = vld [vmem:[#allocation14 + $0x17a0] sm:$0xff]
    %v1706 = vld [vmem:[#allocation14 + $0x17a8] sm:$0xff]
    %v1707 = vld [vmem:[#allocation14 + $0x17b0] sm:$0xff]
    %v1708 = vld [vmem:[#allocation14 + $0x17b8] sm:$0xff]
    %v1709 = vld [vmem:[#allocation14 + $0x17c0] sm:$0xff]
    %v1710 = vld [vmem:[#allocation14 + $0x17c8] sm:$0xff]
    %v1711 = vld [vmem:[#allocation14 + $0x17d0] sm:$0xff]
    %v1712 = vld [vmem:[#allocation14 + $0x17d8] sm:$0xff]
    %v1713 = vld [vmem:[#allocation14 + $0x17e0] sm:$0xff]
    %v1714 = vld [vmem:[#allocation14 + $0x17e8] sm:$0xff]
    %v1715 = vld [vmem:[#allocation14 + $0x17f0] sm:$0xff]
    %v1716 = vld [vmem:[#allocation14 + $0x17f8] sm:$0xff]
    %v1717 = vld [vmem:[#allocation14 + $0x1800] sm:$0xff]
    %v1718 = vld [vmem:[#allocation14 + $0x1808] sm:$0xff]
    %v1719 = vld [vmem:[#allocation14 + $0x1810] sm:$0xff]
    %v1720 = vld [vmem:[#allocation14 + $0x1818] sm:$0xff]
    %v1721 = vld [vmem:[#allocation14 + $0x1820] sm:$0xff]
    %v1722 = vld [vmem:[#allocation14 + $0x1828] sm:$0xff]
    %v1723 = vld [vmem:[#allocation14 + $0x1830] sm:$0xff]
    %v1724 = vld [vmem:[#allocation14 + $0x1838] sm:$0xff]
    %v1725 = vld [vmem:[#allocation14 + $0x1840] sm:$0xff]
    %v1726 = vld [vmem:[#allocation14 + $0x1848] sm:$0xff]
    %v1727 = vld [vmem:[#allocation14 + $0x1850] sm:$0xff]
    %v1728 = vld [vmem:[#allocation14 + $0x1858] sm:$0xff]
    %v1729 = vld [vmem:[#allocation14 + $0x1860] sm:$0xff]
    %v1730 = vld [vmem:[#allocation14 + $0x1868] sm:$0xff]
    %v1731 = vld [vmem:[#allocation14 + $0x1870] sm:$0xff]
    %v1732 = vld [vmem:[#allocation14 + $0x1878] sm:$0xff]
    %v1733 = vld [vmem:[#allocation15] sm:$0xff]
    %v1735 = vlaneseq
    %v1736 = vshrl.u32 %v1735, 7
    %v1737 = vsub.s32 0, %v1736
    %v1738 = vrot.slane %v1733, %v1737
    %v1739 = vlaneseq
    %v1740 = vshrl.u32 %v1739, 7
    %v1741 = vsub.s32 1, %v1740
    %v1742 = vrot.slane %v1733, %v1741
    %v1743 = vlaneseq
    %v1744 = vshrl.u32 %v1743, 7
    %v1745 = vsub.s32 2, %v1744
    %v1746 = vrot.slane %v1733, %v1745
    %v1747 = vlaneseq
    %v1748 = vshrl.u32 %v1747, 7
    %v1749 = vsub.s32 3, %v1748
    %v1750 = vrot.slane %v1733, %v1749
    %v1751 = vlaneseq
    %v1752 = vshrl.u32 %v1751, 7
    %v1753 = vsub.s32 4, %v1752
    %v1754 = vrot.slane %v1733, %v1753
    %v1755 = vlaneseq
    %v1756 = vshrl.u32 %v1755, 7
    %v1757 = vsub.s32 5, %v1756
    %v1758 = vrot.slane %v1733, %v1757
    %v1759 = vlaneseq
    %v1760 = vshrl.u32 %v1759, 7
    %v1761 = vsub.s32 6, %v1760
    %v1762 = vrot.slane %v1733, %v1761
    %1770 = vmatprep.subr.mxu0 %v950
    %1771 = vmatpush1.msra.mxu0 %v949
    %1772 = vmatprep.subr.mxu0 %v957
    %1773 = vmatpush1.msra.mxu0 %v956
    %1774 = vmatprep.subr.mxu0 %v964
    %1775 = vmatpush1.msra.mxu0 %v963
    %1776 = vmatprep.subr.mxu0 %v971
    %1777 = vmatpush1.msra.mxu0 %v970
    %1778 = vmatprep.subr.mxu0 %v978
    %1779 = vmatpush1.msra.mxu0 %v977
    %1780 = vmatprep.subr.mxu0 %v985
    %1781 = vmatpush1.msra.mxu0 %v984
    %1782 = vmatprep.subr.mxu0 %v992
    %1783 = vmatpush1.msra.mxu0 %v991
    %1784 = vmatprep.subr.mxu0 %v999
    %1785 = vmatpush1.msra.mxu0 %v998
    %1786 = vmatprep.subr.mxu0 %v1006
    %1787 = vmatpush1.msra.mxu0 %v1005
    %1788 = vmatprep.subr.mxu0 %v1013
    %1789 = vmatpush1.msra.mxu0 %v1012
    %1790 = vmatprep.subr.mxu0 %v1020
    %1791 = vmatpush1.msra.mxu0 %v1019
    %1792 = vmatprep.subr.mxu0 %v1027
    %1793 = vmatpush1.msra.mxu0 %v1026
    %1794 = vmatprep.subr.mxu0 %v1034
    %1795 = vmatpush1.msra.mxu0 %v1033
    %1796 = vmatprep.subr.mxu0 %v1041
    %1797 = vmatpush1.msra.mxu0 %v1040
    %1798 = vmatprep.subr.mxu0 %v1048
    %1799 = vmatpush1.msra.mxu0 %v1047
    %1800 = vmatprep.subr.mxu0 %v1055
    %1801 = vmatpush1.msra.mxu0 %v1054
    %1802 = vmatprep.subr.mxu0 %v1062
    %1803 = vmatpush1.msra.mxu0 %v1061
    %1804 = vmatprep.subr.mxu0 %v1069
    %1805 = vmatpush1.msra.mxu0 %v1068
    %1806 = vmatprep.subr.mxu0 %v1076
    %1807 = vmatpush1.msra.mxu0 %v1075
    %1808 = vmatprep.subr.mxu0 %v1083
    %1809 = vmatpush1.msra.mxu0 %v1082
    %1810 = vmatprep.subr.mxu0 %v1090
    %1811 = vmatpush1.msra.mxu0 %v1089
    %1812 = vmatprep.subr.mxu0 %v1097
    %1813 = vmatpush1.msra.mxu0 %v1096
    %1814 = vmatprep.subr.mxu0 %v1104
    %1815 = vmatpush1.msra.mxu0 %v1103
    %1816 = vmatprep.subr.mxu0 %v1111
    %1817 = vmatpush1.msra.mxu0 %v1110
    %1818 = vmatprep.subr.mxu0 %v1118
    %1819 = vmatpush1.msra.mxu0 %v1117
    %1820 = vmatprep.subr.mxu0 %v1125
    %1821 = vmatpush1.msra.mxu0 %v1124
    %1822 = vmatprep.subr.mxu0 %v1132
    %1823 = vmatpush1.msra.mxu0 %v1131
    %1824 = vmatprep.subr.mxu0 %v1139
    %1825 = vmatpush1.msra.mxu0 %v1138
    %1826 = vmatprep.subr.mxu0 %v1146
    %1827 = vmatpush1.msra.mxu0 %v1145
    %1828 = vmatprep.subr.mxu0 %v1153
    %1829 = vmatpush1.msra.mxu0 %v1152
    %1830 = vmatprep.subr.mxu0 %v1160
    %1831 = vmatpush1.msra.mxu0 %v1159
    %1832 = vmatprep.subr.mxu0 %v1167
    %1833 = vmatpush1.msra.mxu0 %v1166
    %1834 = vmatprep.mubr.f32.mxu0 %v943
    %1835 = vmatmul.mubr.f32.gmra.mrb[0].mxu0 %v942
    %v1836 = vpop.f32.mrb[0].mxu0
    %v1837 = vadd.f32 %v1738, %v1836
    %v1838 = vpop.f32.mrb[0].mxu0
    %v1839 = vadd.f32 %v1742, %v1838
    %1840 = vdwg.mxu0
    %1841 = vmatprep.subr.mxu0 %v1174
    %1842 = vmatpush1.msra.mxu0 %v1173
    %1843 = vmatprep.subr.mxu0 %v1181
    %1844 = vmatpush1.msra.mxu0 %v1180
    %1845 = vmatprep.subr.mxu0 %v1188
    %1846 = vmatpush1.msra.mxu0 %v1187
    %1847 = vmatprep.subr.mxu0 %v1195
    %1848 = vmatpush1.msra.mxu0 %v1194
    %1849 = vmatprep.subr.mxu0 %v1202
    %1850 = vmatpush1.msra.mxu0 %v1201
    %1851 = vmatprep.subr.mxu0 %v1209
    %1852 = vmatpush1.msra.mxu0 %v1208
    %1853 = vmatprep.subr.mxu0 %v1216
    %1854 = vmatpush1.msra.mxu0 %v1215
    %1855 = vmatprep.subr.mxu0 %v1223
    %1856 = vmatpush1.msra.mxu0 %v1222
    %1857 = vmatprep.subr.mxu0 %v1230
    %1858 = vmatpush1.msra.mxu0 %v1229
    %1859 = vmatprep.subr.mxu0 %v1237
    %1860 = vmatpush1.msra.mxu0 %v1236
    %1861 = vmatprep.subr.mxu0 %v1244
    %1862 = vmatpush1.msra.mxu0 %v1243
    %1863 = vmatprep.subr.mxu0 %v1251
    %1864 = vmatpush1.msra.mxu0 %v1250
    %1865 = vmatprep.subr.mxu0 %v1258
    %1866 = vmatpush1.msra.mxu0 %v1257
    %1867 = vmatprep.subr.mxu0 %v1265
    %1868 = vmatpush1.msra.mxu0 %v1264
    %1869 = vmatprep.subr.mxu0 %v1272
    %1870 = vmatpush1.msra.mxu0 %v1271
    %1871 = vmatprep.subr.mxu0 %v1279
    %1872 = vmatpush1.msra.mxu0 %v1278
    %1873 = vmatprep.subr.mxu0 %v1286
    %1874 = vmatpush1.msra.mxu0 %v1285
    %1875 = vmatprep.subr.mxu0 %v1293
    %1876 = vmatpush1.msra.mxu0 %v1292
    %1877 = vmatprep.subr.mxu0 %v1300
    %1878 = vmatpush1.msra.mxu0 %v1299
    %1879 = vmatprep.subr.mxu0 %v1307
    %1880 = vmatpush1.msra.mxu0 %v1306
    %1881 = vmatprep.subr.mxu0 %v1314
    %1882 = vmatpush1.msra.mxu0 %v1313
    %1883 = vmatprep.subr.mxu0 %v1321
    %1884 = vmatpush1.msra.mxu0 %v1320
    %1885 = vmatprep.subr.mxu0 %v1328
    %1886 = vmatpush1.msra.mxu0 %v1327
    %1887 = vmatprep.subr.mxu0 %v1335
    %1888 = vmatpush1.msra.mxu0 %v1334
    %1889 = vmatprep.subr.mxu0 %v1342
    %1890 = vmatpush1.msra.mxu0 %v1341
    %1891 = vmatprep.subr.mxu0 %v1349
    %1892 = vmatpush1.msra.mxu0 %v1348
    %1893 = vmatprep.subr.mxu0 %v1356
    %1894 = vmatpush1.msra.mxu0 %v1355
    %1895 = vmatprep.subr.mxu0 %v1363
    %1896 = vmatpush1.msra.mxu0 %v1362
    %1897 = vmatprep.subr.mxu0 %v1370
    %1898 = vmatpush1.msra.mxu0 %v1369
    %1899 = vmatprep.subr.mxu0 %v1377
    %1900 = vmatpush1.msra.mxu0 %v1376
    %1901 = vmatprep.subr.mxu0 %v1384
    %1902 = vmatpush1.msra.mxu0 %v1383
    %1903 = vmatprep.subr.mxu0 %v1391
    %1904 = vmatpush1.msra.mxu0 %v1390
    %1905 = vmatprep.mubr.f32.mxu0 %v945
    %1906 = vmatmul.mubr.f32.gmra.mrb[0].mxu0 %v944
    %v1907 = vpop.f32.mrb[0].mxu0
    %v1908 = vadd.f32 %v1837, %v1907
    %v1909 = vpop.f32.mrb[0].mxu0
    %v1910 = vadd.f32 %v1839, %v1909
    %1911 = vdwg.mxu0
    %1912 = vmatprep.subr.mxu0 %v1398
    %1913 = vmatpush1.msra.mxu0 %v1397
    %1914 = vmatprep.subr.mxu0 %v1405
    %1915 = vmatpush1.msra.mxu0 %v1404
    %1916 = vmatprep.subr.mxu0 %v1412
    %1917 = vmatpush1.msra.mxu0 %v1411
    %1918 = vmatprep.subr.mxu0 %v1419
    %1919 = vmatpush1.msra.mxu0 %v1418
    %1920 = vmatprep.subr.mxu0 %v1426
    %1921 = vmatpush1.msra.mxu0 %v1425
    %1922 = vmatprep.subr.mxu0 %v1433
    %1923 = vmatpush1.msra.mxu0 %v1432
    %1924 = vmatprep.subr.mxu0 %v1440
    %1925 = vmatpush1.msra.mxu0 %v1439
    %1926 = vmatprep.subr.mxu0 %v1447
    %1927 = vmatpush1.msra.mxu0 %v1446
    %1928 = vmatprep.subr.mxu0 %v1454
    %1929 = vmatpush1.msra.mxu0 %v1453
    %1930 = vmatprep.subr.mxu0 %v1461
    %1931 = vmatpush1.msra.mxu0 %v1460
    %1932 = vmatprep.subr.mxu0 %v1468
    %1933 = vmatpush1.msra.mxu0 %v1467
    %1934 = vmatprep.subr.mxu0 %v1475
    %1935 = vmatpush1.msra.mxu0 %v1474
    %1936 = vmatprep.subr.mxu0 %v1482
    %1937 = vmatpush1.msra.mxu0 %v1481
    %1938 = vmatprep.subr.mxu0 %v1489
    %1939 = vmatpush1.msra.mxu0 %v1488
    %1940 = vmatprep.subr.mxu0 %v1496
    %1941 = vmatpush1.msra.mxu0 %v1495
    %1942 = vmatprep.subr.mxu0 %v1503
    %1943 = vmatpush1.msra.mxu0 %v1502
    %1944 = vmatprep.subr.mxu0 %v1510
    %1945 = vmatpush1.msra.mxu0 %v1509
    %1946 = vmatprep.subr.mxu0 %v1517
    %1947 = vmatpush1.msra.mxu0 %v1516
    %1948 = vmatprep.subr.mxu0 %v1524
    %1949 = vmatpush1.msra.mxu0 %v1523
    %1950 = vmatprep.subr.mxu0 %v1531
    %1951 = vmatpush1.msra.mxu0 %v1530
    %1952 = vmatprep.subr.mxu0 %v1538
    %1953 = vmatpush1.msra.mxu0 %v1537
    %1954 = vmatprep.subr.mxu0 %v1545
    %1955 = vmatpush1.msra.mxu0 %v1544
    %1956 = vmatprep.subr.mxu0 %v1552
    %1957 = vmatpush1.msra.mxu0 %v1551
    %1958 = vmatprep.subr.mxu0 %v1559
    %1959 = vmatpush1.msra.mxu0 %v1558
    %1960 = vmatprep.subr.mxu0 %v1566
    %1961 = vmatpush1.msra.mxu0 %v1565
    %1962 = vmatprep.subr.mxu0 %v1573
    %1963 = vmatpush1.msra.mxu0 %v1572
    %1964 = vmatprep.subr.mxu0 %v1580
    %1965 = vmatpush1.msra.mxu0 %v1579
    %1966 = vmatprep.subr.mxu0 %v1587
    %1967 = vmatpush1.msra.mxu0 %v1586
    %1968 = vmatprep.subr.mxu0 %v1594
    %1969 = vmatpush1.msra.mxu0 %v1593
    %1970 = vmatprep.subr.mxu0 %v1601
    %1971 = vmatpush1.msra.mxu0 %v1600
    %1972 = vmatprep.subr.mxu0 %v1608
    %1973 = vmatpush1.msra.mxu0 %v1607
    %1974 = vmatprep.subr.mxu0 %v1615
    %1975 = vmatpush1.msra.mxu0 %v1614
    %1976 = vmatprep.mubr.f32.mxu0 %v947
    %1977 = vmatmul.mubr.f32.gmra.mrb[0].mxu0 %v946
    %v1978 = vpop.f32.mrb[0].mxu0
    %v1979 = vadd.f32 %v1908, %v1978
    %v1980 = vpop.f32.mrb[0].mxu0
    %v1981 = vadd.f32 %v1910, %v1980
    %1982 = vdwg.mxu0
    %1983 = vmatprep.subr.mxu0 %v1622
    %1984 = vmatpush1.msra.mxu0 %v1621
    %1985 = vmatprep.subr.mxu0 %v1629
    %1986 = vmatpush1.msra.mxu0 %v1628
    %1987 = vmatprep.subr.mxu0 %v1636
    %1988 = vmatpush1.msra.mxu0 %v1635
    %1989 = vmatprep.subr.mxu0 %v1643
    %1990 = vmatpush1.msra.mxu0 %v1642
    %1991 = vmatprep.subr.mxu0 %v1650
    %1992 = vmatpush1.msra.mxu0 %v1649
    %1993 = vmatprep.subr.mxu0 %v1657
    %1994 = vmatpush1.msra.mxu0 %v1656
    %1995 = vmatprep.subr.mxu0 %v1664
    %1996 = vmatpush1.msra.mxu0 %v1663
    %1997 = vmatprep.subr.mxu0 %v1671
    %1998 = vmatpush1.msra.mxu0 %v1670
    %1999 = vmatprep.subr.mxu0 %v1678
    %2000 = vmatpush1.msra.mxu0 %v1677
    %2001 = vmatprep.subr.mxu0 %v1685
    %2002 = vmatpush1.msra.mxu0 %v1684
    %2003 = vmatprep.subr.mxu0 %v1692
    %2004 = vmatpush1.msra.mxu0 %v1691
    %2005 = vmatprep.subr.mxu0 %v1699
    %2006 = vmatpush1.msra.mxu0 %v1698
    %2007 = vmatprep.subr.mxu0 %v1706
    %2008 = vmatpush1.msra.mxu0 %v1705
    %2009 = vmatprep.subr.mxu0 %v1713
    %2010 = vmatpush1.msra.mxu0 %v1712
    %2011 = vmatprep.subr.mxu0 %v1720
    %2012 = vmatpush1.msra.mxu0 %v1719
    %2013 = vmatprep.subr.mxu0 %v1727
    %2014 = vmatpush1.msra.mxu0 %v1726
    %2015 = vmatprep.subr.mxu0 0.0
    %2016 = vmatpush1.msra.mxu0 0.0
    %2017 = vmatprep.subr.mxu0 0.0
    %2018 = vmatpush1.msra.mxu0 0.0
    %2019 = vmatprep.subr.mxu0 0.0
    %2020 = vmatpush1.msra.mxu0 0.0
    %2021 = vmatprep.subr.mxu0 0.0
    %2022 = vmatpush1.msra.mxu0 0.0
    %2023 = vmatprep.subr.mxu0 0.0
    %2024 = vmatpush1.msra.mxu0 0.0
    %2025 = vmatprep.subr.mxu0 0.0
    %2026 = vmatpush1.msra.mxu0 0.0
    %2027 = vmatprep.subr.mxu0 0.0
    %2028 = vmatpush1.msra.mxu0 0.0
    %2029 = vmatprep.subr.mxu0 0.0
    %2030 = vmatpush1.msra.mxu0 0.0
    %2031 = vmatprep.subr.mxu0 0.0
    %2032 = vmatpush1.msra.mxu0 0.0
    %2033 = vmatprep.subr.mxu0 0.0
    %2034 = vmatpush1.msra.mxu0 0.0
    %2035 = vmatprep.subr.mxu0 0.0
    %2036 = vmatpush1.msra.mxu0 0.0
    %2037 = vmatprep.subr.mxu0 0.0
    %2038 = vmatpush1.msra.mxu0 0.0
    %2039 = vmatprep.subr.mxu0 0.0
    %2040 = vmatpush1.msra.mxu0 0.0
    %2041 = vmatprep.subr.mxu0 0.0
    %2042 = vmatpush1.msra.mxu0 0.0
    %2043 = vmatprep.subr.mxu0 0.0
    %2044 = vmatpush1.msra.mxu0 0.0
    %2045 = vmatprep.subr.mxu0 0.0
    %2046 = vmatpush1.msra.mxu0 0.0
    %2047 = vmatprep.mubr.f32.mxu0 0.0
    %2048 = vmatmul.mubr.f32.gmra.mrb[0].mxu0 %v948
    %v2049 = vpop.f32.mrb[0].mxu0
    %v2050 = vadd.f32 %v1979, %v2049
    %v2051 = vpop.f32.mrb[0].mxu0
    %v2052 = vadd.f32 %v1981, %v2051
    %2053 = vdwg.mxu0
    %2054 = vmatprep.subr.mxu0 %v952
    %2055 = vmatpush1.msra.mxu0 %v951
    %2056 = vmatprep.subr.mxu0 %v959
    %2057 = vmatpush1.msra.mxu0 %v958
    %2058 = vmatprep.subr.mxu0 %v966
    %2059 = vmatpush1.msra.mxu0 %v965
    %2060 = vmatprep.subr.mxu0 %v973
    %2061 = vmatpush1.msra.mxu0 %v972
    %2062 = vmatprep.subr.mxu0 %v980
    %2063 = vmatpush1.msra.mxu0 %v979
    %2064 = vmatprep.subr.mxu0 %v987
    %2065 = vmatpush1.msra.mxu0 %v986
    %2066 = vmatprep.subr.mxu0 %v994
    %2067 = vmatpush1.msra.mxu0 %v993
    %2068 = vmatprep.subr.mxu0 %v1001
    %2069 = vmatpush1.msra.mxu0 %v1000
    %2070 = vmatprep.subr.mxu0 %v1008
    %2071 = vmatpush1.msra.mxu0 %v1007
    %2072 = vmatprep.subr.mxu0 %v1015
    %2073 = vmatpush1.msra.mxu0 %v1014
    %2074 = vmatprep.subr.mxu0 %v1022
    %2075 = vmatpush1.msra.mxu0 %v1021
    %2076 = vmatprep.subr.mxu0 %v1029
    %2077 = vmatpush1.msra.mxu0 %v1028
    %2078 = vmatprep.subr.mxu0 %v1036
    %2079 = vmatpush1.msra.mxu0 %v1035
    %2080 = vmatprep.subr.mxu0 %v1043
    %2081 = vmatpush1.msra.mxu0 %v1042
    %2082 = vmatprep.subr.mxu0 %v1050
    %2083 = vmatpush1.msra.mxu0 %v1049
    %2084 = vmatprep.subr.mxu0 %v1057
    %2085 = vmatpush1.msra.mxu0 %v1056
    %2086 = vmatprep.subr.mxu0 %v1064
    %2087 = vmatpush1.msra.mxu0 %v1063
    %2088 = vmatprep.subr.mxu0 %v1071
    %2089 = vmatpush1.msra.mxu0 %v1070
    %2090 = vmatprep.subr.mxu0 %v1078
    %2091 = vmatpush1.msra.mxu0 %v1077
    %2092 = vmatprep.subr.mxu0 %v1085
    %2093 = vmatpush1.msra.mxu0 %v1084
    %2094 = vmatprep.subr.mxu0 %v1092
    %2095 = vmatpush1.msra.mxu0 %v1091
    %2096 = vmatprep.subr.mxu0 %v1099
    %2097 = vmatpush1.msra.mxu0 %v1098
    %2098 = vmatprep.subr.mxu0 %v1106
    %2099 = vmatpush1.msra.mxu0 %v1105
    %2100 = vmatprep.subr.mxu0 %v1113
    %2101 = vmatpush1.msra.mxu0 %v1112
    %2102 = vmatprep.subr.mxu0 %v1120
    %2103 = vmatpush1.msra.mxu0 %v1119
    %2104 = vmatprep.subr.mxu0 %v1127
    %2105 = vmatpush1.msra.mxu0 %v1126
    %2106 = vmatprep.subr.mxu0 %v1134
    %2107 = vmatpush1.msra.mxu0 %v1133
    %2108 = vmatprep.subr.mxu0 %v1141
    %2109 = vmatpush1.msra.mxu0 %v1140
    %2110 = vmatprep.subr.mxu0 %v1148
    %2111 = vmatpush1.msra.mxu0 %v1147
    %2112 = vmatprep.subr.mxu0 %v1155
    %2113 = vmatpush1.msra.mxu0 %v1154
    %2114 = vmatprep.subr.mxu0 %v1162
    %2115 = vmatpush1.msra.mxu0 %v1161
    %2116 = vmatprep.subr.mxu0 %v1169
    %2117 = vmatpush1.msra.mxu0 %v1168
    %2118 = vmatprep.mubr.f32.mxu0 %v943
    %2119 = vmatmul.mubr.f32.gmra.mrb[0].mxu0 %v942
    %v2120 = vpop.f32.mrb[0].mxu0
    %v2121 = vadd.f32 %v1746, %v2120
    %v2122 = vpop.f32.mrb[0].mxu0
    %v2123 = vadd.f32 %v1750, %v2122
    %2124 = vdwg.mxu0
    %2125 = vmatprep.subr.mxu0 %v1176
    %2126 = vmatpush1.msra.mxu0 %v1175
    %2127 = vmatprep.subr.mxu0 %v1183
    %2128 = vmatpush1.msra.mxu0 %v1182
    %2129 = vmatprep.subr.mxu0 %v1190
    %2130 = vmatpush1.msra.mxu0 %v1189
    %2131 = vmatprep.subr.mxu0 %v1197
    %2132 = vmatpush1.msra.mxu0 %v1196
    %2133 = vmatprep.subr.mxu0 %v1204
    %2134 = vmatpush1.msra.mxu0 %v1203
    %2135 = vmatprep.subr.mxu0 %v1211
    %2136 = vmatpush1.msra.mxu0 %v1210
    %2137 = vmatprep.subr.mxu0 %v1218
    %2138 = vmatpush1.msra.mxu0 %v1217
    %2139 = vmatprep.subr.mxu0 %v1225
    %2140 = vmatpush1.msra.mxu0 %v1224
    %2141 = vmatprep.subr.mxu0 %v1232
    %2142 = vmatpush1.msra.mxu0 %v1231
    %2143 = vmatprep.subr.mxu0 %v1239
    %2144 = vmatpush1.msra.mxu0 %v1238
    %2145 = vmatprep.subr.mxu0 %v1246
    %2146 = vmatpush1.msra.mxu0 %v1245
    %2147 = vmatprep.subr.mxu0 %v1253
    %2148 = vmatpush1.msra.mxu0 %v1252
    %2149 = vmatprep.subr.mxu0 %v1260
    %2150 = vmatpush1.msra.mxu0 %v1259
    %2151 = vmatprep.subr.mxu0 %v1267
    %2152 = vmatpush1.msra.mxu0 %v1266
    %2153 = vmatprep.subr.mxu0 %v1274
    %2154 = vmatpush1.msra.mxu0 %v1273
    %2155 = vmatprep.subr.mxu0 %v1281
    %2156 = vmatpush1.msra.mxu0 %v1280
    %2157 = vmatprep.subr.mxu0 %v1288
    %2158 = vmatpush1.msra.mxu0 %v1287
    %2159 = vmatprep.subr.mxu0 %v1295
    %2160 = vmatpush1.msra.mxu0 %v1294
    %2161 = vmatprep.subr.mxu0 %v1302
    %2162 = vmatpush1.msra.mxu0 %v1301
    %2163 = vmatprep.subr.mxu0 %v1309
    %2164 = vmatpush1.msra.mxu0 %v1308
    %2165 = vmatprep.subr.mxu0 %v1316
    %2166 = vmatpush1.msra.mxu0 %v1315
    %2167 = vmatprep.subr.mxu0 %v1323
    %2168 = vmatpush1.msra.mxu0 %v1322
    %2169 = vmatprep.subr.mxu0 %v1330
    %2170 = vmatpush1.msra.mxu0 %v1329
    %2171 = vmatprep.subr.mxu0 %v1337
    %2172 = vmatpush1.msra.mxu0 %v1336
    %2173 = vmatprep.subr.mxu0 %v1344
    %2174 = vmatpush1.msra.mxu0 %v1343
    %2175 = vmatprep.subr.mxu0 %v1351
    %2176 = vmatpush1.msra.mxu0 %v1350
    %2177 = vmatprep.subr.mxu0 %v1358
    %2178 = vmatpush1.msra.mxu0 %v1357
    %2179 = vmatprep.subr.mxu0 %v1365
    %2180 = vmatpush1.msra.mxu0 %v1364
    %2181 = vmatprep.subr.mxu0 %v1372
    %2182 = vmatpush1.msra.mxu0 %v1371
    %2183 = vmatprep.subr.mxu0 %v1379
    %2184 = vmatpush1.msra.mxu0 %v1378
    %2185 = vmatprep.subr.mxu0 %v1386
    %2186 = vmatpush1.msra.mxu0 %v1385
    %2187 = vmatprep.subr.mxu0 %v1393
    %2188 = vmatpush1.msra.mxu0 %v1392
    %2189 = vmatprep.mubr.f32.mxu0 %v945
    %2190 = vmatmul.mubr.f32.gmra.mrb[0].mxu0 %v944
    %v2191 = vpop.f32.mrb[0].mxu0
    %v2192 = vadd.f32 %v2121, %v2191
    %v2193 = vpop.f32.mrb[0].mxu0
    %v2194 = vadd.f32 %v2123, %v2193
    %2195 = vdwg.mxu0
    %2196 = vmatprep.subr.mxu0 %v1400
    %2197 = vmatpush1.msra.mxu0 %v1399
    %2198 = vmatprep.subr.mxu0 %v1407
    %2199 = vmatpush1.msra.mxu0 %v1406
    %2200 = vmatprep.subr.mxu0 %v1414
    %2201 = vmatpush1.msra.mxu0 %v1413
    %2202 = vmatprep.subr.mxu0 %v1421
    %2203 = vmatpush1.msra.mxu0 %v1420
    %2204 = vmatprep.subr.mxu0 %v1428
    %2205 = vmatpush1.msra.mxu0 %v1427
    %2206 = vmatprep.subr.mxu0 %v1435
    %2207 = vmatpush1.msra.mxu0 %v1434
    %2208 = vmatprep.subr.mxu0 %v1442
    %2209 = vmatpush1.msra.mxu0 %v1441
    %2210 = vmatprep.subr.mxu0 %v1449
    %2211 = vmatpush1.msra.mxu0 %v1448
    %2212 = vmatprep.subr.mxu0 %v1456
    %2213 = vmatpush1.msra.mxu0 %v1455
    %2214 = vmatprep.subr.mxu0 %v1463
    %2215 = vmatpush1.msra.mxu0 %v1462
    %2216 = vmatprep.subr.mxu0 %v1470
    %2217 = vmatpush1.msra.mxu0 %v1469
    %2218 = vmatprep.subr.mxu0 %v1477
    %2219 = vmatpush1.msra.mxu0 %v1476
    %2220 = vmatprep.subr.mxu0 %v1484
    %2221 = vmatpush1.msra.mxu0 %v1483
    %2222 = vmatprep.subr.mxu0 %v1491
    %2223 = vmatpush1.msra.mxu0 %v1490
    %2224 = vmatprep.subr.mxu0 %v1498
    %2225 = vmatpush1.msra.mxu0 %v1497
    %2226 = vmatprep.subr.mxu0 %v1505
    %2227 = vmatpush1.msra.mxu0 %v1504
    %2228 = vmatprep.subr.mxu0 %v1512
    %2229 = vmatpush1.msra.mxu0 %v1511
    %2230 = vmatprep.subr.mxu0 %v1519
    %2231 = vmatpush1.msra.mxu0 %v1518
    %2232 = vmatprep.subr.mxu0 %v1526
    %2233 = vmatpush1.msra.mxu0 %v1525
    %2234 = vmatprep.subr.mxu0 %v1533
    %2235 = vmatpush1.msra.mxu0 %v1532
    %2236 = vmatprep.subr.mxu0 %v1540
    %2237 = vmatpush1.msra.mxu0 %v1539
    %2238 = vmatprep.subr.mxu0 %v1547
    %2239 = vmatpush1.msra.mxu0 %v1546
    %2240 = vmatprep.subr.mxu0 %v1554
    %2241 = vmatpush1.msra.mxu0 %v1553
    %2242 = vmatprep.subr.mxu0 %v1561
    %2243 = vmatpush1.msra.mxu0 %v1560
    %2244 = vmatprep.subr.mxu0 %v1568
    %2245 = vmatpush1.msra.mxu0 %v1567
    %2246 = vmatprep.subr.mxu0 %v1575
    %2247 = vmatpush1.msra.mxu0 %v1574
    %2248 = vmatprep.subr.mxu0 %v1582
    %2249 = vmatpush1.msra.mxu0 %v1581
    %2250 = vmatprep.subr.mxu0 %v1589
    %2251 = vmatpush1.msra.mxu0 %v1588
    %2252 = vmatprep.subr.mxu0 %v1596
    %2253 = vmatpush1.msra.mxu0 %v1595
    %2254 = vmatprep.subr.mxu0 %v1603
    %2255 = vmatpush1.msra.mxu0 %v1602
    %2256 = vmatprep.subr.mxu0 %v1610
    %2257 = vmatpush1.msra.mxu0 %v1609
    %2258 = vmatprep.subr.mxu0 %v1617
    %2259 = vmatpush1.msra.mxu0 %v1616
    %2260 = vmatprep.mubr.f32.mxu0 %v947
    %2261 = vmatmul.mubr.f32.gmra.mrb[0].mxu0 %v946
    %v2262 = vpop.f32.mrb[0].mxu0
    %v2263 = vadd.f32 %v2192, %v2262
    %v2264 = vpop.f32.mrb[0].mxu0
    %v2265 = vadd.f32 %v2194, %v2264
    %2266 = vdwg.mxu0
    %2267 = vmatprep.subr.mxu0 %v1624
    %2268 = vmatpush1.msra.mxu0 %v1623
    %2269 = vmatprep.subr.mxu0 %v1631
    %2270 = vmatpush1.msra.mxu0 %v1630
    %2271 = vmatprep.subr.mxu0 %v1638
    %2272 = vmatpush1.msra.mxu0 %v1637
    %2273 = vmatprep.subr.mxu0 %v1645
    %2274 = vmatpush1.msra.mxu0 %v1644
    %2275 = vmatprep.subr.mxu0 %v1652
    %2276 = vmatpush1.msra.mxu0 %v1651
    %2277 = vmatprep.subr.mxu0 %v1659
    %2278 = vmatpush1.msra.mxu0 %v1658
    %2279 = vmatprep.subr.mxu0 %v1666
    %2280 = vmatpush1.msra.mxu0 %v1665
    %2281 = vmatprep.subr.mxu0 %v1673
    %2282 = vmatpush1.msra.mxu0 %v1672
    %2283 = vmatprep.subr.mxu0 %v1680
    %2284 = vmatpush1.msra.mxu0 %v1679
    %2285 = vmatprep.subr.mxu0 %v1687
    %2286 = vmatpush1.msra.mxu0 %v1686
    %2287 = vmatprep.subr.mxu0 %v1694
    %2288 = vmatpush1.msra.mxu0 %v1693
    %2289 = vmatprep.subr.mxu0 %v1701
    %2290 = vmatpush1.msra.mxu0 %v1700
    %2291 = vmatprep.subr.mxu0 %v1708
    %2292 = vmatpush1.msra.mxu0 %v1707
    %2293 = vmatprep.subr.mxu0 %v1715
    %2294 = vmatpush1.msra.mxu0 %v1714
    %2295 = vmatprep.subr.mxu0 %v1722
    %2296 = vmatpush1.msra.mxu0 %v1721
    %2297 = vmatprep.subr.mxu0 %v1729
    %2298 = vmatpush1.msra.mxu0 %v1728
    %2299 = vmatprep.subr.mxu0 0.0
    %2300 = vmatpush1.msra.mxu0 0.0
    %2301 = vmatprep.subr.mxu0 0.0
    %2302 = vmatpush1.msra.mxu0 0.0
    %2303 = vmatprep.subr.mxu0 0.0
    %2304 = vmatpush1.msra.mxu0 0.0
    %2305 = vmatprep.subr.mxu0 0.0
    %2306 = vmatpush1.msra.mxu0 0.0
    %2307 = vmatprep.subr.mxu0 0.0
    %2308 = vmatpush1.msra.mxu0 0.0
    %2309 = vmatprep.subr.mxu0 0.0
    %2310 = vmatpush1.msra.mxu0 0.0
    %2311 = vmatprep.subr.mxu0 0.0
    %2312 = vmatpush1.msra.mxu0 0.0
    %2313 = vmatprep.subr.mxu0 0.0
    %2314 = vmatpush1.msra.mxu0 0.0
    %2315 = vmatprep.subr.mxu0 0.0
    %2316 = vmatpush1.msra.mxu0 0.0
    %2317 = vmatprep.subr.mxu0 0.0
    %2318 = vmatpush1.msra.mxu0 0.0
    %2319 = vmatprep.subr.mxu0 0.0
    %2320 = vmatpush1.msra.mxu0 0.0
    %2321 = vmatprep.subr.mxu0 0.0
    %2322 = vmatpush1.msra.mxu0 0.0
    %2323 = vmatprep.subr.mxu0 0.0
    %2324 = vmatpush1.msra.mxu0 0.0
    %2325 = vmatprep.subr.mxu0 0.0
    %2326 = vmatpush1.msra.mxu0 0.0
    %2327 = vmatprep.subr.mxu0 0.0
    %2328 = vmatpush1.msra.mxu0 0.0
    %2329 = vmatprep.subr.mxu0 0.0
    %2330 = vmatpush1.msra.mxu0 0.0
    %2331 = vmatprep.mubr.f32.mxu0 0.0
    %2332 = vmatmul.mubr.f32.gmra.mrb[0].mxu0 %v948
    %v2333 = vpop.f32.mrb[0].mxu0
    %v2334 = vadd.f32 %v2263, %v2333
    %v2335 = vpop.f32.mrb[0].mxu0
    %v2336 = vadd.f32 %v2265, %v2335
    %2337 = vdwg.mxu0
    %2338 = vmatprep.subr.mxu0 %v954
    %2339 = vmatpush1.msra.mxu0 %v953
    %2340 = vmatprep.subr.mxu0 %v961
    %2341 = vmatpush1.msra.mxu0 %v960
    %2342 = vmatprep.subr.mxu0 %v968
    %2343 = vmatpush1.msra.mxu0 %v967
    %2344 = vmatprep.subr.mxu0 %v975
    %2345 = vmatpush1.msra.mxu0 %v974
    %2346 = vmatprep.subr.mxu0 %v982
    %2347 = vmatpush1.msra.mxu0 %v981
    %2348 = vmatprep.subr.mxu0 %v989
    %2349 = vmatpush1.msra.mxu0 %v988
    %2350 = vmatprep.subr.mxu0 %v996
    %2351 = vmatpush1.msra.mxu0 %v995
    %2352 = vmatprep.subr.mxu0 %v1003
    %2353 = vmatpush1.msra.mxu0 %v1002
    %2354 = vmatprep.subr.mxu0 %v1010
    %2355 = vmatpush1.msra.mxu0 %v1009
    %2356 = vmatprep.subr.mxu0 %v1017
    %2357 = vmatpush1.msra.mxu0 %v1016
    %2358 = vmatprep.subr.mxu0 %v1024
    %2359 = vmatpush1.msra.mxu0 %v1023
    %2360 = vmatprep.subr.mxu0 %v1031
    %2361 = vmatpush1.msra.mxu0 %v1030
    %2362 = vmatprep.subr.mxu0 %v1038
    %2363 = vmatpush1.msra.mxu0 %v1037
    %2364 = vmatprep.subr.mxu0 %v1045
    %2365 = vmatpush1.msra.mxu0 %v1044
    %2366 = vmatprep.subr.mxu0 %v1052
    %2367 = vmatpush1.msra.mxu0 %v1051
    %2368 = vmatprep.subr.mxu0 %v1059
    %2369 = vmatpush1.msra.mxu0 %v1058
    %2370 = vmatprep.subr.mxu0 %v1066
    %2371 = vmatpush1.msra.mxu0 %v1065
    %2372 = vmatprep.subr.mxu0 %v1073
    %2373 = vmatpush1.msra.mxu0 %v1072
    %2374 = vmatprep.subr.mxu0 %v1080
    %2375 = vmatpush1.msra.mxu0 %v1079
    %2376 = vmatprep.subr.mxu0 %v1087
    %2377 = vmatpush1.msra.mxu0 %v1086
    %2378 = vmatprep.subr.mxu0 %v1094
    %2379 = vmatpush1.msra.mxu0 %v1093
    %2380 = vmatprep.subr.mxu0 %v1101
    %2381 = vmatpush1.msra.mxu0 %v1100
    %2382 = vmatprep.subr.mxu0 %v1108
    %2383 = vmatpush1.msra.mxu0 %v1107
    %2384 = vmatprep.subr.mxu0 %v1115
    %2385 = vmatpush1.msra.mxu0 %v1114
    %2386 = vmatprep.subr.mxu0 %v1122
    %2387 = vmatpush1.msra.mxu0 %v1121
    %2388 = vmatprep.subr.mxu0 %v1129
    %2389 = vmatpush1.msra.mxu0 %v1128
    %2390 = vmatprep.subr.mxu0 %v1136
    %2391 = vmatpush1.msra.mxu0 %v1135
    %2392 = vmatprep.subr.mxu0 %v1143
    %2393 = vmatpush1.msra.mxu0 %v1142
    %2394 = vmatprep.subr.mxu0 %v1150
    %2395 = vmatpush1.msra.mxu0 %v1149
    %2396 = vmatprep.subr.mxu0 %v1157
    %2397 = vmatpush1.msra.mxu0 %v1156
    %2398 = vmatprep.subr.mxu0 %v1164
    %2399 = vmatpush1.msra.mxu0 %v1163
    %2400 = vmatprep.subr.mxu0 %v1171
    %2401 = vmatpush1.msra.mxu0 %v1170
    %2402 = vmatprep.mubr.f32.mxu0 %v943
    %2403 = vmatmul.mubr.f32.gmra.mrb[0].mxu0 %v942
    %v2404 = vpop.f32.mrb[0].mxu0
    %v2405 = vadd.f32 %v1754, %v2404
    %v2406 = vpop.f32.mrb[0].mxu0
    %v2407 = vadd.f32 %v1758, %v2406
    %2408 = vdwg.mxu0
    %2409 = vmatprep.subr.mxu0 %v1178
    %2410 = vmatpush1.msra.mxu0 %v1177
    %2411 = vmatprep.subr.mxu0 %v1185
    %2412 = vmatpush1.msra.mxu0 %v1184
    %2413 = vmatprep.subr.mxu0 %v1192
    %2414 = vmatpush1.msra.mxu0 %v1191
    %2415 = vmatprep.subr.mxu0 %v1199
    %2416 = vmatpush1.msra.mxu0 %v1198
    %2417 = vmatprep.subr.mxu0 %v1206
    %2418 = vmatpush1.msra.mxu0 %v1205
    %2419 = vmatprep.subr.mxu0 %v1213
    %2420 = vmatpush1.msra.mxu0 %v1212
    %2421 = vmatprep.subr.mxu0 %v1220
    %2422 = vmatpush1.msra.mxu0 %v1219
    %2423 = vmatprep.subr.mxu0 %v1227
    %2424 = vmatpush1.msra.mxu0 %v1226
    %2425 = vmatprep.subr.mxu0 %v1234
    %2426 = vmatpush1.msra.mxu0 %v1233
    %2427 = vmatprep.subr.mxu0 %v1241
    %2428 = vmatpush1.msra.mxu0 %v1240
    %2429 = vmatprep.subr.mxu0 %v1248
    %2430 = vmatpush1.msra.mxu0 %v1247
    %2431 = vmatprep.subr.mxu0 %v1255
    %2432 = vmatpush1.msra.mxu0 %v1254
    %2433 = vmatprep.subr.mxu0 %v1262
    %2434 = vmatpush1.msra.mxu0 %v1261
    %2435 = vmatprep.subr.mxu0 %v1269
    %2436 = vmatpush1.msra.mxu0 %v1268
    %2437 = vmatprep.subr.mxu0 %v1276
    %2438 = vmatpush1.msra.mxu0 %v1275
    %2439 = vmatprep.subr.mxu0 %v1283
    %2440 = vmatpush1.msra.mxu0 %v1282
    %2441 = vmatprep.subr.mxu0 %v1290
    %2442 = vmatpush1.msra.mxu0 %v1289
    %2443 = vmatprep.subr.mxu0 %v1297
    %2444 = vmatpush1.msra.mxu0 %v1296
    %2445 = vmatprep.subr.mxu0 %v1304
    %2446 = vmatpush1.msra.mxu0 %v1303
    %2447 = vmatprep.subr.mxu0 %v1311
    %2448 = vmatpush1.msra.mxu0 %v1310
    %2449 = vmatprep.subr.mxu0 %v1318
    %2450 = vmatpush1.msra.mxu0 %v1317
    %2451 = vmatprep.subr.mxu0 %v1325
    %2452 = vmatpush1.msra.mxu0 %v1324
    %2453 = vmatprep.subr.mxu0 %v1332
    %2454 = vmatpush1.msra.mxu0 %v1331
    %2455 = vmatprep.subr.mxu0 %v1339
    %2456 = vmatpush1.msra.mxu0 %v1338
    %2457 = vmatprep.subr.mxu0 %v1346
    %2458 = vmatpush1.msra.mxu0 %v1345
    %2459 = vmatprep.subr.mxu0 %v1353
    %2460 = vmatpush1.msra.mxu0 %v1352
    %2461 = vmatprep.subr.mxu0 %v1360
    %2462 = vmatpush1.msra.mxu0 %v1359
    %2463 = vmatprep.subr.mxu0 %v1367
    %2464 = vmatpush1.msra.mxu0 %v1366
    %2465 = vmatprep.subr.mxu0 %v1374
    %2466 = vmatpush1.msra.mxu0 %v1373
    %2467 = vmatprep.subr.mxu0 %v1381
    %2468 = vmatpush1.msra.mxu0 %v1380
    %2469 = vmatprep.subr.mxu0 %v1388
    %2470 = vmatpush1.msra.mxu0 %v1387
    %2471 = vmatprep.subr.mxu0 %v1395
    %2472 = vmatpush1.msra.mxu0 %v1394
    %2473 = vmatprep.mubr.f32.mxu0 %v945
    %2474 = vmatmul.mubr.f32.gmra.mrb[0].mxu0 %v944
    %v2475 = vpop.f32.mrb[0].mxu0
    %v2476 = vadd.f32 %v2405, %v2475
    %v2477 = vpop.f32.mrb[0].mxu0
    %v2478 = vadd.f32 %v2407, %v2477
    %2479 = vdwg.mxu0
    %2480 = vmatprep.subr.mxu0 %v1402
    %2481 = vmatpush1.msra.mxu0 %v1401
    %2482 = vmatprep.subr.mxu0 %v1409
    %2483 = vmatpush1.msra.mxu0 %v1408
    %2484 = vmatprep.subr.mxu0 %v1416
    %2485 = vmatpush1.msra.mxu0 %v1415
    %2486 = vmatprep.subr.mxu0 %v1423
    %2487 = vmatpush1.msra.mxu0 %v1422
    %2488 = vmatprep.subr.mxu0 %v1430
    %2489 = vmatpush1.msra.mxu0 %v1429
    %2490 = vmatprep.subr.mxu0 %v1437
    %2491 = vmatpush1.msra.mxu0 %v1436
    %2492 = vmatprep.subr.mxu0 %v1444
    %2493 = vmatpush1.msra.mxu0 %v1443
    %2494 = vmatprep.subr.mxu0 %v1451
    %2495 = vmatpush1.msra.mxu0 %v1450
    %2496 = vmatprep.subr.mxu0 %v1458
    %2497 = vmatpush1.msra.mxu0 %v1457
    %2498 = vmatprep.subr.mxu0 %v1465
    %2499 = vmatpush1.msra.mxu0 %v1464
    %2500 = vmatprep.subr.mxu0 %v1472
    %2501 = vmatpush1.msra.mxu0 %v1471
    %2502 = vmatprep.subr.mxu0 %v1479
    %2503 = vmatpush1.msra.mxu0 %v1478
    %2504 = vmatprep.subr.mxu0 %v1486
    %2505 = vmatpush1.msra.mxu0 %v1485
    %2506 = vmatprep.subr.mxu0 %v1493
    %2507 = vmatpush1.msra.mxu0 %v1492
    %2508 = vmatprep.subr.mxu0 %v1500
    %2509 = vmatpush1.msra.mxu0 %v1499
    %2510 = vmatprep.subr.mxu0 %v1507
    %2511 = vmatpush1.msra.mxu0 %v1506
    %2512 = vmatprep.subr.mxu0 %v1514
    %2513 = vmatpush1.msra.mxu0 %v1513
    %2514 = vmatprep.subr.mxu0 %v1521
    %2515 = vmatpush1.msra.mxu0 %v1520
    %2516 = vmatprep.subr.mxu0 %v1528
    %2517 = vmatpush1.msra.mxu0 %v1527
    %2518 = vmatprep.subr.mxu0 %v1535
    %2519 = vmatpush1.msra.mxu0 %v1534
    %2520 = vmatprep.subr.mxu0 %v1542
    %2521 = vmatpush1.msra.mxu0 %v1541
    %2522 = vmatprep.subr.mxu0 %v1549
    %2523 = vmatpush1.msra.mxu0 %v1548
    %2524 = vmatprep.subr.mxu0 %v1556
    %2525 = vmatpush1.msra.mxu0 %v1555
    %2526 = vmatprep.subr.mxu0 %v1563
    %2527 = vmatpush1.msra.mxu0 %v1562
    %2528 = vmatprep.subr.mxu0 %v1570
    %2529 = vmatpush1.msra.mxu0 %v1569
    %2530 = vmatprep.subr.mxu0 %v1577
    %2531 = vmatpush1.msra.mxu0 %v1576
    %2532 = vmatprep.subr.mxu0 %v1584
    %2533 = vmatpush1.msra.mxu0 %v1583
    %2534 = vmatprep.subr.mxu0 %v1591
    %2535 = vmatpush1.msra.mxu0 %v1590
    %2536 = vmatprep.subr.mxu0 %v1598
    %2537 = vmatpush1.msra.mxu0 %v1597
    %2538 = vmatprep.subr.mxu0 %v1605
    %2539 = vmatpush1.msra.mxu0 %v1604
    %2540 = vmatprep.subr.mxu0 %v1612
    %2541 = vmatpush1.msra.mxu0 %v1611
    %2542 = vmatprep.subr.mxu0 %v1619
    %2543 = vmatpush1.msra.mxu0 %v1618
    %2544 = vmatprep.mubr.f32.mxu0 %v947
    %2545 = vmatmul.mubr.f32.gmra.mrb[0].mxu0 %v946
    %v2546 = vpop.f32.mrb[0].mxu0
    %v2547 = vadd.f32 %v2476, %v2546
    %v2548 = vpop.f32.mrb[0].mxu0
    %v2549 = vadd.f32 %v2478, %v2548
    %2550 = vdwg.mxu0
    %2551 = vmatprep.subr.mxu0 %v1626
    %2552 = vmatpush1.msra.mxu0 %v1625
    %2553 = vmatprep.subr.mxu0 %v1633
    %2554 = vmatpush1.msra.mxu0 %v1632
    %2555 = vmatprep.subr.mxu0 %v1640
    %2556 = vmatpush1.msra.mxu0 %v1639
    %2557 = vmatprep.subr.mxu0 %v1647
    %2558 = vmatpush1.msra.mxu0 %v1646
    %2559 = vmatprep.subr.mxu0 %v1654
    %2560 = vmatpush1.msra.mxu0 %v1653
    %2561 = vmatprep.subr.mxu0 %v1661
    %2562 = vmatpush1.msra.mxu0 %v1660
    %2563 = vmatprep.subr.mxu0 %v1668
    %2564 = vmatpush1.msra.mxu0 %v1667
    %2565 = vmatprep.subr.mxu0 %v1675
    %2566 = vmatpush1.msra.mxu0 %v1674
    %2567 = vmatprep.subr.mxu0 %v1682
    %2568 = vmatpush1.msra.mxu0 %v1681
    %2569 = vmatprep.subr.mxu0 %v1689
    %2570 = vmatpush1.msra.mxu0 %v1688
    %2571 = vmatprep.subr.mxu0 %v1696
    %2572 = vmatpush1.msra.mxu0 %v1695
    %2573 = vmatprep.subr.mxu0 %v1703
    %2574 = vmatpush1.msra.mxu0 %v1702
    %2575 = vmatprep.subr.mxu0 %v1710
    %2576 = vmatpush1.msra.mxu0 %v1709
    %2577 = vmatprep.subr.mxu0 %v1717
    %2578 = vmatpush1.msra.mxu0 %v1716
    %2579 = vmatprep.subr.mxu0 %v1724
    %2580 = vmatpush1.msra.mxu0 %v1723
    %2581 = vmatprep.subr.mxu0 %v1731
    %2582 = vmatpush1.msra.mxu0 %v1730
    %2583 = vmatprep.subr.mxu0 0.0
    %2584 = vmatpush1.msra.mxu0 0.0
    %2585 = vmatprep.subr.mxu0 0.0
    %2586 = vmatpush1.msra.mxu0 0.0
    %2587 = vmatprep.subr.mxu0 0.0
    %2588 = vmatpush1.msra.mxu0 0.0
    %2589 = vmatprep.subr.mxu0 0.0
    %2590 = vmatpush1.msra.mxu0 0.0
    %2591 = vmatprep.subr.mxu0 0.0
    %2592 = vmatpush1.msra.mxu0 0.0
    %2593 = vmatprep.subr.mxu0 0.0
    %2594 = vmatpush1.msra.mxu0 0.0
    %2595 = vmatprep.subr.mxu0 0.0
    %2596 = vmatpush1.msra.mxu0 0.0
    %2597 = vmatprep.subr.mxu0 0.0
    %2598 = vmatpush1.msra.mxu0 0.0
    %2599 = vmatprep.subr.mxu0 0.0
    %2600 = vmatpush1.msra.mxu0 0.0
    %2601 = vmatprep.subr.mxu0 0.0
    %2602 = vmatpush1.msra.mxu0 0.0
    %2603 = vmatprep.subr.mxu0 0.0
    %2604 = vmatpush1.msra.mxu0 0.0
    %2605 = vmatprep.subr.mxu0 0.0
    %2606 = vmatpush1.msra.mxu0 0.0
    %2607 = vmatprep.subr.mxu0 0.0
    %2608 = vmatpush1.msra.mxu0 0.0
    %2609 = vmatprep.subr.mxu0 0.0
    %2610 = vmatpush1.msra.mxu0 0.0
    %2611 = vmatprep.subr.mxu0 0.0
    %2612 = vmatpush1.msra.mxu0 0.0
    %2613 = vmatprep.subr.mxu0 0.0
    %2614 = vmatpush1.msra.mxu0 0.0
    %2615 = vmatprep.mubr.f32.mxu0 0.0
    %2616 = vmatmul.mubr.f32.gmra.mrb[0].mxu0 %v948
    %v2617 = vpop.f32.mrb[0].mxu0
    %v2618 = vadd.f32 %v2547, %v2617
    %v2619 = vpop.f32.mrb[0].mxu0
    %v2620 = vadd.f32 %v2549, %v2619
    %2621 = vdwg.mxu0
    %2622 = vmatprep.subr.mxu0 0.0
    %2623 = vmatpush1.msra.mxu0 %v955
    %2624 = vmatprep.subr.mxu0 0.0
    %2625 = vmatpush1.msra.mxu0 %v962
    %2626 = vmatprep.subr.mxu0 0.0
    %2627 = vmatpush1.msra.mxu0 %v969
    %2628 = vmatprep.subr.mxu0 0.0
    %2629 = vmatpush1.msra.mxu0 %v976
    %2630 = vmatprep.subr.mxu0 0.0
    %2631 = vmatpush1.msra.mxu0 %v983
    %2632 = vmatprep.subr.mxu0 0.0
    %2633 = vmatpush1.msra.mxu0 %v990
    %2634 = vmatprep.subr.mxu0 0.0
    %2635 = vmatpush1.msra.mxu0 %v997
    %2636 = vmatprep.subr.mxu0 0.0
    %2637 = vmatpush1.msra.mxu0 %v1004
    %2638 = vmatprep.subr.mxu0 0.0
    %2639 = vmatpush1.msra.mxu0 %v1011
    %2640 = vmatprep.subr.mxu0 0.0
    %2641 = vmatpush1.msra.mxu0 %v1018
    %2642 = vmatprep.subr.mxu0 0.0
    %2643 = vmatpush1.msra.mxu0 %v1025
    %2644 = vmatprep.subr.mxu0 0.0
    %2645 = vmatpush1.msra.mxu0 %v1032
    %2646 = vmatprep.subr.mxu0 0.0
    %2647 = vmatpush1.msra.mxu0 %v1039
    %2648 = vmatprep.subr.mxu0 0.0
    %2649 = vmatpush1.msra.mxu0 %v1046
    %2650 = vmatprep.subr.mxu0 0.0
    %2651 = vmatpush1.msra.mxu0 %v1053
    %2652 = vmatprep.subr.mxu0 0.0
    %2653 = vmatpush1.msra.mxu0 %v1060
    %2654 = vmatprep.subr.mxu0 0.0
    %2655 = vmatpush1.msra.mxu0 %v1067
    %2656 = vmatprep.subr.mxu0 0.0
    %2657 = vmatpush1.msra.mxu0 %v1074
    %2658 = vmatprep.subr.mxu0 0.0
    %2659 = vmatpush1.msra.mxu0 %v1081
    %2660 = vmatprep.subr.mxu0 0.0
    %2661 = vmatpush1.msra.mxu0 %v1088
    %2662 = vmatprep.subr.mxu0 0.0
    %2663 = vmatpush1.msra.mxu0 %v1095
    %2664 = vmatprep.subr.mxu0 0.0
    %2665 = vmatpush1.msra.mxu0 %v1102
    %2666 = vmatprep.subr.mxu0 0.0
    %2667 = vmatpush1.msra.mxu0 %v1109
    %2668 = vmatprep.subr.mxu0 0.0
    %2669 = vmatpush1.msra.mxu0 %v1116
    %2670 = vmatprep.subr.mxu0 0.0
    %2671 = vmatpush1.msra.mxu0 %v1123
    %2672 = vmatprep.subr.mxu0 0.0
    %2673 = vmatpush1.msra.mxu0 %v1130
    %2674 = vmatprep.subr.mxu0 0.0
    %2675 = vmatpush1.msra.mxu0 %v1137
    %2676 = vmatprep.subr.mxu0 0.0
    %2677 = vmatpush1.msra.mxu0 %v1144
    %2678 = vmatprep.subr.mxu0 0.0
    %2679 = vmatpush1.msra.mxu0 %v1151
    %2680 = vmatprep.subr.mxu0 0.0
    %2681 = vmatpush1.msra.mxu0 %v1158
    %2682 = vmatprep.subr.mxu0 0.0
    %2683 = vmatpush1.msra.mxu0 %v1165
    %2684 = vmatprep.subr.mxu0 0.0
    %2685 = vmatpush1.msra.mxu0 %v1172
    %2686 = vmatprep.mubr.f32.mxu0 %v943
    %2687 = vmatmul.mubr.f32.gmra.mrb[0].mxu0 %v942
    %v2688 = vpop.f32.mrb[0].mxu0
    %v2689 = vadd.f32 %v1762, %v2688
    %v2690 = vpop.f32.mrb[0].mxu0
    %2691 = vdwg.mxu0
    %2692 = vmatprep.subr.mxu0 0.0
    %2693 = vmatpush1.msra.mxu0 %v1179
    %2694 = vmatprep.subr.mxu0 0.0
    %2695 = vmatpush1.msra.mxu0 %v1186
    %2696 = vmatprep.subr.mxu0 0.0
    %2697 = vmatpush1.msra.mxu0 %v1193
    %2698 = vmatprep.subr.mxu0 0.0
    %2699 = vmatpush1.msra.mxu0 %v1200
    %2700 = vmatprep.subr.mxu0 0.0
    %2701 = vmatpush1.msra.mxu0 %v1207
    %2702 = vmatprep.subr.mxu0 0.0
    %2703 = vmatpush1.msra.mxu0 %v1214
    %2704 = vmatprep.subr.mxu0 0.0
    %2705 = vmatpush1.msra.mxu0 %v1221
    %2706 = vmatprep.subr.mxu0 0.0
    %2707 = vmatpush1.msra.mxu0 %v1228
    %2708 = vmatprep.subr.mxu0 0.0
    %2709 = vmatpush1.msra.mxu0 %v1235
    %2710 = vmatprep.subr.mxu0 0.0
    %2711 = vmatpush1.msra.mxu0 %v1242
    %2712 = vmatprep.subr.mxu0 0.0
    %2713 = vmatpush1.msra.mxu0 %v1249
    %2714 = vmatprep.subr.mxu0 0.0
    %2715 = vmatpush1.msra.mxu0 %v1256
    %2716 = vmatprep.subr.mxu0 0.0
    %2717 = vmatpush1.msra.mxu0 %v1263
    %2718 = vmatprep.subr.mxu0 0.0
    %2719 = vmatpush1.msra.mxu0 %v1270
    %2720 = vmatprep.subr.mxu0 0.0
    %2721 = vmatpush1.msra.mxu0 %v1277
    %2722 = vmatprep.subr.mxu0 0.0
    %2723 = vmatpush1.msra.mxu0 %v1284
    %2724 = vmatprep.subr.mxu0 0.0
    %2725 = vmatpush1.msra.mxu0 %v1291
    %2726 = vmatprep.subr.mxu0 0.0
    %2727 = vmatpush1.msra.mxu0 %v1298
    %2728 = vmatprep.subr.mxu0 0.0
    %2729 = vmatpush1.msra.mxu0 %v1305
    %2730 = vmatprep.subr.mxu0 0.0
    %2731 = vmatpush1.msra.mxu0 %v1312
    %2732 = vmatprep.subr.mxu0 0.0
    %2733 = vmatpush1.msra.mxu0 %v1319
    %2734 = vmatprep.subr.mxu0 0.0
    %2735 = vmatpush1.msra.mxu0 %v1326
    %2736 = vmatprep.subr.mxu0 0.0
    %2737 = vmatpush1.msra.mxu0 %v1333
    %2738 = vmatprep.subr.mxu0 0.0
    %2739 = vmatpush1.msra.mxu0 %v1340
    %2740 = vmatprep.subr.mxu0 0.0
    %2741 = vmatpush1.msra.mxu0 %v1347
    %2742 = vmatprep.subr.mxu0 0.0
    %2743 = vmatpush1.msra.mxu0 %v1354
    %2744 = vmatprep.subr.mxu0 0.0
    %2745 = vmatpush1.msra.mxu0 %v1361
    %2746 = vmatprep.subr.mxu0 0.0
    %2747 = vmatpush1.msra.mxu0 %v1368
    %2748 = vmatprep.subr.mxu0 0.0
    %2749 = vmatpush1.msra.mxu0 %v1375
    %2750 = vmatprep.subr.mxu0 0.0
    %2751 = vmatpush1.msra.mxu0 %v1382
    %2752 = vmatprep.subr.mxu0 0.0
    %2753 = vmatpush1.msra.mxu0 %v1389
    %2754 = vmatprep.subr.mxu0 0.0
    %2755 = vmatpush1.msra.mxu0 %v1396
    %2756 = vmatprep.mubr.f32.mxu0 %v945
    %2757 = vmatmul.mubr.f32.gmra.mrb[0].mxu0 %v944
    %v2758 = vpop.f32.mrb[0].mxu0
    %v2759 = vadd.f32 %v2689, %v2758
    %v2760 = vpop.f32.mrb[0].mxu0
    %2761 = vdwg.mxu0
    %2762 = vmatprep.subr.mxu0 0.0
    %2763 = vmatpush1.msra.mxu0 %v1403
    %2764 = vmatprep.subr.mxu0 0.0
    %2765 = vmatpush1.msra.mxu0 %v1410
    %2766 = vmatprep.subr.mxu0 0.0
    %2767 = vmatpush1.msra.mxu0 %v1417
    %2768 = vmatprep.subr.mxu0 0.0
    %2769 = vmatpush1.msra.mxu0 %v1424
    %2770 = vmatprep.subr.mxu0 0.0
    %2771 = vmatpush1.msra.mxu0 %v1431
    %2772 = vmatprep.subr.mxu0 0.0
    %2773 = vmatpush1.msra.mxu0 %v1438
    %2774 = vmatprep.subr.mxu0 0.0
    %2775 = vmatpush1.msra.mxu0 %v1445
    %2776 = vmatprep.subr.mxu0 0.0
    %2777 = vmatpush1.msra.mxu0 %v1452
    %2778 = vmatprep.subr.mxu0 0.0
    %2779 = vmatpush1.msra.mxu0 %v1459
    %2780 = vmatprep.subr.mxu0 0.0
    %2781 = vmatpush1.msra.mxu0 %v1466
    %2782 = vmatprep.subr.mxu0 0.0
    %2783 = vmatpush1.msra.mxu0 %v1473
    %2784 = vmatprep.subr.mxu0 0.0
    %2785 = vmatpush1.msra.mxu0 %v1480
    %2786 = vmatprep.subr.mxu0 0.0
    %2787 = vmatpush1.msra.mxu0 %v1487
    %2788 = vmatprep.subr.mxu0 0.0
    %2789 = vmatpush1.msra.mxu0 %v1494
    %2790 = vmatprep.subr.mxu0 0.0
    %2791 = vmatpush1.msra.mxu0 %v1501
    %2792 = vmatprep.subr.mxu0 0.0
    %2793 = vmatpush1.msra.mxu0 %v1508
    %2794 = vmatprep.subr.mxu0 0.0
    %2795 = vmatpush1.msra.mxu0 %v1515
    %2796 = vmatprep.subr.mxu0 0.0
    %2797 = vmatpush1.msra.mxu0 %v1522
    %2798 = vmatprep.subr.mxu0 0.0
    %2799 = vmatpush1.msra.mxu0 %v1529
    %2800 = vmatprep.subr.mxu0 0.0
    %2801 = vmatpush1.msra.mxu0 %v1536
    %2802 = vmatprep.subr.mxu0 0.0
    %2803 = vmatpush1.msra.mxu0 %v1543
    %2804 = vmatprep.subr.mxu0 0.0
    %2805 = vmatpush1.msra.mxu0 %v1550
    %2806 = vmatprep.subr.mxu0 0.0
    %2807 = vmatpush1.msra.mxu0 %v1557
    %2808 = vmatprep.subr.mxu0 0.0
    %2809 = vmatpush1.msra.mxu0 %v1564
    %2810 = vmatprep.subr.mxu0 0.0
    %2811 = vmatpush1.msra.mxu0 %v1571
    %2812 = vmatprep.subr.mxu0 0.0
    %2813 = vmatpush1.msra.mxu0 %v1578
    %2814 = vmatprep.subr.mxu0 0.0
    %2815 = vmatpush1.msra.mxu0 %v1585
    %2816 = vmatprep.subr.mxu0 0.0
    %2817 = vmatpush1.msra.mxu0 %v1592
    %2818 = vmatprep.subr.mxu0 0.0
    %2819 = vmatpush1.msra.mxu0 %v1599
    %2820 = vmatprep.subr.mxu0 0.0
    %2821 = vmatpush1.msra.mxu0 %v1606
    %2822 = vmatprep.subr.mxu0 0.0
    %2823 = vmatpush1.msra.mxu0 %v1613
    %2824 = vmatprep.subr.mxu0 0.0
    %2825 = vmatpush1.msra.mxu0 %v1620
    %2826 = vmatprep.mubr.f32.mxu0 %v947
    %2827 = vmatmul.mubr.f32.gmra.mrb[0].mxu0 %v946
    %v2828 = vpop.f32.mrb[0].mxu0
    %v2829 = vadd.f32 %v2759, %v2828
    %v2830 = vpop.f32.mrb[0].mxu0
    %2831 = vdwg.mxu0
    %2832 = vmatprep.subr.mxu0 0.0
    %2833 = vmatpush1.msra.mxu0 %v1627
    %2834 = vmatprep.subr.mxu0 0.0
    %2835 = vmatpush1.msra.mxu0 %v1634
    %2836 = vmatprep.subr.mxu0 0.0
    %2837 = vmatpush1.msra.mxu0 %v1641
    %2838 = vmatprep.subr.mxu0 0.0
    %2839 = vmatpush1.msra.mxu0 %v1648
    %2840 = vmatprep.subr.mxu0 0.0
    %2841 = vmatpush1.msra.mxu0 %v1655
    %2842 = vmatprep.subr.mxu0 0.0
    %2843 = vmatpush1.msra.mxu0 %v1662
    %2844 = vmatprep.subr.mxu0 0.0
    %2845 = vmatpush1.msra.mxu0 %v1669
    %2846 = vmatprep.subr.mxu0 0.0
    %2847 = vmatpush1.msra.mxu0 %v1676
    %2848 = vmatprep.subr.mxu0 0.0
    %2849 = vmatpush1.msra.mxu0 %v1683
    %2850 = vmatprep.subr.mxu0 0.0
    %2851 = vmatpush1.msra.mxu0 %v1690
    %2852 = vmatprep.subr.mxu0 0.0
    %2853 = vmatpush1.msra.mxu0 %v1697
    %2854 = vmatprep.subr.mxu0 0.0
    %2855 = vmatpush1.msra.mxu0 %v1704
    %2856 = vmatprep.subr.mxu0 0.0
    %2857 = vmatpush1.msra.mxu0 %v1711
    %2858 = vmatprep.subr.mxu0 0.0
    %2859 = vmatpush1.msra.mxu0 %v1718
    %2860 = vmatprep.subr.mxu0 0.0
    %2861 = vmatpush1.msra.mxu0 %v1725
    %2862 = vmatprep.subr.mxu0 0.0
    %2863 = vmatpush1.msra.mxu0 %v1732
    %2864 = vmatprep.subr.mxu0 0.0
    %2865 = vmatpush1.msra.mxu0 0.0
    %2866 = vmatprep.subr.mxu0 0.0
    %2867 = vmatpush1.msra.mxu0 0.0
    %2868 = vmatprep.subr.mxu0 0.0
    %2869 = vmatpush1.msra.mxu0 0.0
    %2870 = vmatprep.subr.mxu0 0.0
    %2871 = vmatpush1.msra.mxu0 0.0
    %2872 = vmatprep.subr.mxu0 0.0
    %2873 = vmatpush1.msra.mxu0 0.0
    %2874 = vmatprep.subr.mxu0 0.0
    %2875 = vmatpush1.msra.mxu0 0.0
    %2876 = vmatprep.subr.mxu0 0.0
    %2877 = vmatpush1.msra.mxu0 0.0
    %2878 = vmatprep.subr.mxu0 0.0
    %2879 = vmatpush1.msra.mxu0 0.0
    %2880 = vmatprep.subr.mxu0 0.0
    %2881 = vmatpush1.msra.mxu0 0.0
    %2882 = vmatprep.subr.mxu0 0.0
    %2883 = vmatpush1.msra.mxu0 0.0
    %2884 = vmatprep.subr.mxu0 0.0
    %2885 = vmatpush1.msra.mxu0 0.0
    %2886 = vmatprep.subr.mxu0 0.0
    %2887 = vmatpush1.msra.mxu0 0.0
    %2888 = vmatprep.subr.mxu0 0.0
    %2889 = vmatpush1.msra.mxu0 0.0
    %2890 = vmatprep.subr.mxu0 0.0
    %2891 = vmatpush1.msra.mxu0 0.0
    %2892 = vmatprep.subr.mxu0 0.0
    %2893 = vmatpush1.msra.mxu0 0.0
    %2894 = vmatprep.subr.mxu0 0.0
    %2895 = vmatpush1.msra.mxu0 0.0
    %2896 = vmatprep.mubr.f32.mxu0 0.0
    %2897 = vmatmul.mubr.f32.gmra.mrb[0].mxu0 %v948
    %v2898 = vpop.f32.mrb[0].mxu0
    %v2899 = vadd.f32 %v2829, %v2898
    %v2900 = vpop.f32.mrb[0].mxu0
    %2901 = vdwg.mxu0
    %v2902 = vmax.f32 %v2050, 0.0
    %v2903 = vmax.f32 %v2052, 0.0
    %v2904 = vmax.f32 %v2334, 0.0
    %v2905 = vmax.f32 %v2336, 0.0
    %v2906 = vmax.f32 %v2618, 0.0
    %v2907 = vmax.f32 %v2620, 0.0
    %v2908 = vmax.f32 %v2899, 0.0
    %v2909 = vld [vmem:[%s10] sm:$0xff]
    %v2910 = vld [vmem:[%s10 + $0x8] sm:$0xff]
    %v2911 = vld [vmem:[%s10 + $0x10] sm:$0xff]
    %v2912 = vld [vmem:[%s10 + $0x18] sm:$0xff]
    %v2913 = vld [vmem:[%s10 + $0x20] sm:$0xff]
    %v2914 = vld [vmem:[%s10 + $0x28] sm:$0xff]
    %v2915 = vld [vmem:[%s10 + $0x30] sm:$0xff]
    %v2916 = vld [vmem:[%s10 + $0x38] sm:$0xff]
    %v2917 = vld [vmem:[%s10 + $0x40] sm:$0xff]
    %v2918 = vld [vmem:[%s10 + $0x48] sm:$0xff]
    %v2919 = vld [vmem:[%s10 + $0x50] sm:$0xff]
    %v2920 = vld [vmem:[%s10 + $0x58] sm:$0xff]
    %v2921 = vld [vmem:[%s10 + $0x60] sm:$0xff]
    %v2922 = vld [vmem:[%s10 + $0x68] sm:$0xff]
    %v2923 = vld [vmem:[%s10 + $0x70] sm:$0xff]
    %v2924 = vld [vmem:[%s10 + $0x78] sm:$0xff]
    %v2925 = vld [vmem:[%s10 + $0x80] sm:$0xff]
    %v2926 = vld [vmem:[%s10 + $0x88] sm:$0xff]
    %v2927 = vld [vmem:[%s10 + $0x90] sm:$0xff]
    %v2928 = vld [vmem:[%s10 + $0x98] sm:$0xff]
    %v2929 = vld [vmem:[%s10 + $0xa0] sm:$0xff]
    %v2930 = vld [vmem:[%s10 + $0xa8] sm:$0xff]
    %v2931 = vld [vmem:[%s10 + $0xb0] sm:$0xff]
    %v2932 = vld [vmem:[%s10 + $0xb8] sm:$0xff]
    %v2933 = vld [vmem:[%s10 + $0xc0] sm:$0xff]
    %v2934 = vld [vmem:[%s10 + $0xc8] sm:$0xff]
    %v2935 = vld [vmem:[%s10 + $0xd0] sm:$0xff]
    %v2936 = vld [vmem:[%s10 + $0xd8] sm:$0xff]
    %v2937 = vld [vmem:[%s10 + $0xe0] sm:$0xff]
    %v2938 = vld [vmem:[%s10 + $0xe8] sm:$0xff]
    %v2939 = vld [vmem:[%s10 + $0xf0] sm:$0xff]
    %v2940 = vld [vmem:[%s10 + $0xf8] sm:$0xff]
    %v2941 = vld [vmem:[%s10 + $0x100] sm:$0xff]
    %v2942 = vld [vmem:[%s10 + $0x108] sm:$0xff]
    %v2943 = vld [vmem:[%s10 + $0x110] sm:$0xff]
    %v2944 = vld [vmem:[%s10 + $0x118] sm:$0xff]
    %v2945 = vld [vmem:[%s10 + $0x120] sm:$0xff]
    %v2946 = vld [vmem:[%s10 + $0x128] sm:$0xff]
    %v2947 = vld [vmem:[%s10 + $0x130] sm:$0xff]
    %v2948 = vld [vmem:[%s10 + $0x138] sm:$0xff]
    %v2949 = vld [vmem:[%s10 + $0x140] sm:$0xff]
    %v2950 = vld [vmem:[%s10 + $0x148] sm:$0xff]
    %v2951 = vld [vmem:[%s10 + $0x150] sm:$0xff]
    %v2952 = vld [vmem:[%s10 + $0x158] sm:$0xff]
    %v2953 = vld [vmem:[%s10 + $0x160] sm:$0xff]
    %v2954 = vld [vmem:[%s10 + $0x168] sm:$0xff]
    %v2955 = vld [vmem:[%s10 + $0x170] sm:$0xff]
    %v2956 = vld [vmem:[%s10 + $0x178] sm:$0xff]
    %v2957 = vld [vmem:[%s10 + $0x180] sm:$0xff]
    %v2958 = vld [vmem:[%s10 + $0x188] sm:$0xff]
    %v2959 = vld [vmem:[%s10 + $0x190] sm:$0xff]
    %v2960 = vld [vmem:[%s10 + $0x198] sm:$0xff]
    %v2961 = vld [vmem:[%s10 + $0x1a0] sm:$0xff]
    %v2962 = vld [vmem:[%s10 + $0x1a8] sm:$0xff]
    %v2963 = vld [vmem:[%s10 + $0x1b0] sm:$0xff]
    %v2964 = vld [vmem:[%s10 + $0x1b8] sm:$0xff]
    %v2965 = vld [vmem:[%s10 + $0x1c0] sm:$0xff]
    %v2966 = vld [vmem:[%s10 + $0x1c8] sm:$0xff]
    %v2967 = vld [vmem:[%s10 + $0x1d0] sm:$0xff]
    %v2968 = vld [vmem:[%s10 + $0x1d8] sm:$0xff]
    %v2969 = vld [vmem:[%s10 + $0x1e0] sm:$0xff]
    %v2970 = vld [vmem:[%s10 + $0x1e8] sm:$0xff]
    %v2971 = vld [vmem:[%s10 + $0x1f0] sm:$0xff]
    %v2972 = vld [vmem:[%s10 + $0x1f8] sm:$0xff]
    %v2973 = vld [vmem:[%s10 + $0x200] sm:$0xff]
    %v2974 = vld [vmem:[%s10 + $0x208] sm:$0xff]
    %v2975 = vld [vmem:[%s10 + $0x210] sm:$0xff]
    %v2976 = vld [vmem:[%s10 + $0x218] sm:$0xff]
    %v2977 = vld [vmem:[%s10 + $0x220] sm:$0xff]
    %v2978 = vld [vmem:[%s10 + $0x228] sm:$0xff]
    %v2979 = vld [vmem:[%s10 + $0x230] sm:$0xff]
    %v2980 = vld [vmem:[%s10 + $0x238] sm:$0xff]
    %v2981 = vld [vmem:[%s10 + $0x240] sm:$0xff]
    %v2982 = vld [vmem:[%s10 + $0x248] sm:$0xff]
    %v2983 = vld [vmem:[%s10 + $0x250] sm:$0xff]
    %v2984 = vld [vmem:[%s10 + $0x258] sm:$0xff]
    %v2985 = vld [vmem:[%s10 + $0x260] sm:$0xff]
    %v2986 = vld [vmem:[%s10 + $0x268] sm:$0xff]
    %v2987 = vld [vmem:[%s10 + $0x270] sm:$0xff]
    %v2988 = vld [vmem:[%s10 + $0x278] sm:$0xff]
    %v2989 = vld [vmem:[%s10 + $0x280] sm:$0xff]
    %v2990 = vld [vmem:[%s10 + $0x288] sm:$0xff]
    %v2991 = vld [vmem:[%s10 + $0x290] sm:$0xff]
    %v2992 = vld [vmem:[%s10 + $0x298] sm:$0xff]
    %v2993 = vld [vmem:[%s10 + $0x2a0] sm:$0xff]
    %v2994 = vld [vmem:[%s10 + $0x2a8] sm:$0xff]
    %v2995 = vld [vmem:[%s10 + $0x2b0] sm:$0xff]
    %v2996 = vld [vmem:[%s10 + $0x2b8] sm:$0xff]
    %v2997 = vld [vmem:[%s10 + $0x2c0] sm:$0xff]
    %v2998 = vld [vmem:[%s10 + $0x2c8] sm:$0xff]
    %v2999 = vld [vmem:[%s10 + $0x2d0] sm:$0xff]
    %v3000 = vld [vmem:[%s10 + $0x2d8] sm:$0xff]
    %v3001 = vld [vmem:[%s10 + $0x2e0] sm:$0xff]
    %v3002 = vld [vmem:[%s10 + $0x2e8] sm:$0xff]
    %v3003 = vld [vmem:[%s10 + $0x2f0] sm:$0xff]
    %v3004 = vld [vmem:[%s10 + $0x2f8] sm:$0xff]
    %v3005 = vld [vmem:[%s10 + $0x300] sm:$0xff]
    %v3006 = vld [vmem:[%s10 + $0x308] sm:$0xff]
    %v3007 = vld [vmem:[%s10 + $0x310] sm:$0xff]
    %v3008 = vld [vmem:[%s10 + $0x318] sm:$0xff]
    %v3009 = vld [vmem:[%s10 + $0x320] sm:$0xff]
    %v3010 = vld [vmem:[%s10 + $0x328] sm:$0xff]
    %v3011 = vld [vmem:[%s10 + $0x330] sm:$0xff]
    %v3012 = vld [vmem:[%s10 + $0x338] sm:$0xff]
    %v3013 = vld [vmem:[%s10 + $0x340] sm:$0xff]
    %v3014 = vld [vmem:[%s10 + $0x348] sm:$0xff]
    %v3015 = vld [vmem:[%s10 + $0x350] sm:$0xff]
    %v3016 = vld [vmem:[%s10 + $0x358] sm:$0xff]
    %v3017 = vld [vmem:[%s10 + $0x360] sm:$0xff]
    %v3018 = vld [vmem:[%s10 + $0x368] sm:$0xff]
    %v3019 = vld [vmem:[%s10 + $0x370] sm:$0xff]
    %v3020 = vld [vmem:[%s10 + $0x378] sm:$0xff]
    %v3021 = vld [vmem:[#allocation17] sm:$0x1]
    %v3023 = vlaneseq
    %v3024 = vshrl.u32 %v3023, 7
    %v3025 = vsub.s32 0, %v3024
    %v3026 = vrot.slane %v3021, %v3025
    %3028 = vmatprep.subr.mxu0 0.0
    %3029 = vmatpush1.msra.mxu0 %v2909
    %3030 = vmatprep.subr.mxu0 0.0
    %3031 = vmatpush1.msra.mxu0 %v2910
    %3032 = vmatprep.subr.mxu0 0.0
    %3033 = vmatpush1.msra.mxu0 %v2911
    %3034 = vmatprep.subr.mxu0 0.0
    %3035 = vmatpush1.msra.mxu0 %v2912
    %3036 = vmatprep.subr.mxu0 0.0
    %3037 = vmatpush1.msra.mxu0 %v2913
    %3038 = vmatprep.subr.mxu0 0.0
    %3039 = vmatpush1.msra.mxu0 %v2914
    %3040 = vmatprep.subr.mxu0 0.0
    %3041 = vmatpush1.msra.mxu0 %v2915
    %3042 = vmatprep.subr.mxu0 0.0
    %3043 = vmatpush1.msra.mxu0 %v2916
    %3044 = vmatprep.subr.mxu0 0.0
    %3045 = vmatpush1.msra.mxu0 %v2917
    %3046 = vmatprep.subr.mxu0 0.0
    %3047 = vmatpush1.msra.mxu0 %v2918
    %3048 = vmatprep.subr.mxu0 0.0
    %3049 = vmatpush1.msra.mxu0 %v2919
    %3050 = vmatprep.subr.mxu0 0.0
    %3051 = vmatpush1.msra.mxu0 %v2920
    %3052 = vmatprep.subr.mxu0 0.0
    %3053 = vmatpush1.msra.mxu0 %v2921
    %3054 = vmatprep.subr.mxu0 0.0
    %3055 = vmatpush1.msra.mxu0 %v2922
    %3056 = vmatprep.subr.mxu0 0.0
    %3057 = vmatpush1.msra.mxu0 %v2923
    %3058 = vmatprep.subr.mxu0 0.0
    %3059 = vmatpush1.msra.mxu0 %v2924
    %3060 = vmatprep.subr.mxu0 0.0
    %3061 = vmatpush1.msra.mxu0 %v2925
    %3062 = vmatprep.subr.mxu0 0.0
    %3063 = vmatpush1.msra.mxu0 %v2926
    %3064 = vmatprep.subr.mxu0 0.0
    %3065 = vmatpush1.msra.mxu0 %v2927
    %3066 = vmatprep.subr.mxu0 0.0
    %3067 = vmatpush1.msra.mxu0 %v2928
    %3068 = vmatprep.subr.mxu0 0.0
    %3069 = vmatpush1.msra.mxu0 %v2929
    %3070 = vmatprep.subr.mxu0 0.0
    %3071 = vmatpush1.msra.mxu0 %v2930
    %3072 = vmatprep.subr.mxu0 0.0
    %3073 = vmatpush1.msra.mxu0 %v2931
    %3074 = vmatprep.subr.mxu0 0.0
    %3075 = vmatpush1.msra.mxu0 %v2932
    %3076 = vmatprep.subr.mxu0 0.0
    %3077 = vmatpush1.msra.mxu0 %v2933
    %3078 = vmatprep.subr.mxu0 0.0
    %3079 = vmatpush1.msra.mxu0 %v2934
    %3080 = vmatprep.subr.mxu0 0.0
    %3081 = vmatpush1.msra.mxu0 %v2935
    %3082 = vmatprep.subr.mxu0 0.0
    %3083 = vmatpush1.msra.mxu0 %v2936
    %3084 = vmatprep.subr.mxu0 0.0
    %3085 = vmatpush1.msra.mxu0 %v2937
    %3086 = vmatprep.subr.mxu0 0.0
    %3087 = vmatpush1.msra.mxu0 %v2938
    %3088 = vmatprep.subr.mxu0 0.0
    %3089 = vmatpush1.msra.mxu0 %v2939
    %3090 = vmatprep.subr.mxu0 0.0
    %3091 = vmatpush1.msra.mxu0 %v2940
    %3092 = vmatprep.mubr.f32.mxu0 %v2903
    %3093 = vmatmul.mubr.f32.gmra.mrb[0].mxu0 %v2902
    %v3094 = vpop.f32.mrb[0].mxu0
    %v3095 = vadd.f32 %v3026, %v3094
    %v3096 = vpop.f32.mrb[0].mxu0
    %3097 = vdwg.mxu0
    %3098 = vmatprep.subr.mxu0 0.0
    %3099 = vmatpush1.msra.mxu0 %v2941
    %3100 = vmatprep.subr.mxu0 0.0
    %3101 = vmatpush1.msra.mxu0 %v2942
    %3102 = vmatprep.subr.mxu0 0.0
    %3103 = vmatpush1.msra.mxu0 %v2943
    %3104 = vmatprep.subr.mxu0 0.0
    %3105 = vmatpush1.msra.mxu0 %v2944
    %3106 = vmatprep.subr.mxu0 0.0
    %3107 = vmatpush1.msra.mxu0 %v2945
    %3108 = vmatprep.subr.mxu0 0.0
    %3109 = vmatpush1.msra.mxu0 %v2946
    %3110 = vmatprep.subr.mxu0 0.0
    %3111 = vmatpush1.msra.mxu0 %v2947
    %3112 = vmatprep.subr.mxu0 0.0
    %3113 = vmatpush1.msra.mxu0 %v2948
    %3114 = vmatprep.subr.mxu0 0.0
    %3115 = vmatpush1.msra.mxu0 %v2949
    %3116 = vmatprep.subr.mxu0 0.0
    %3117 = vmatpush1.msra.mxu0 %v2950
    %3118 = vmatprep.subr.mxu0 0.0
    %3119 = vmatpush1.msra.mxu0 %v2951
    %3120 = vmatprep.subr.mxu0 0.0
    %3121 = vmatpush1.msra.mxu0 %v2952
    %3122 = vmatprep.subr.mxu0 0.0
    %3123 = vmatpush1.msra.mxu0 %v2953
    %3124 = vmatprep.subr.mxu0 0.0
    %3125 = vmatpush1.msra.mxu0 %v2954
    %3126 = vmatprep.subr.mxu0 0.0
    %3127 = vmatpush1.msra.mxu0 %v2955
    %3128 = vmatprep.subr.mxu0 0.0
    %3129 = vmatpush1.msra.mxu0 %v2956
    %3130 = vmatprep.subr.mxu0 0.0
    %3131 = vmatpush1.msra.mxu0 %v2957
    %3132 = vmatprep.subr.mxu0 0.0
    %3133 = vmatpush1.msra.mxu0 %v2958
    %3134 = vmatprep.subr.mxu0 0.0
    %3135 = vmatpush1.msra.mxu0 %v2959
    %3136 = vmatprep.subr.mxu0 0.0
    %3137 = vmatpush1.msra.mxu0 %v2960
    %3138 = vmatprep.subr.mxu0 0.0
    %3139 = vmatpush1.msra.mxu0 %v2961
    %3140 = vmatprep.subr.mxu0 0.0
    %3141 = vmatpush1.msra.mxu0 %v2962
    %3142 = vmatprep.subr.mxu0 0.0
    %3143 = vmatpush1.msra.mxu0 %v2963
    %3144 = vmatprep.subr.mxu0 0.0
    %3145 = vmatpush1.msra.mxu0 %v2964
    %3146 = vmatprep.subr.mxu0 0.0
    %3147 = vmatpush1.msra.mxu0 %v2965
    %3148 = vmatprep.subr.mxu0 0.0
    %3149 = vmatpush1.msra.mxu0 %v2966
    %3150 = vmatprep.subr.mxu0 0.0
    %3151 = vmatpush1.msra.mxu0 %v2967
    %3152 = vmatprep.subr.mxu0 0.0
    %3153 = vmatpush1.msra.mxu0 %v2968
    %3154 = vmatprep.subr.mxu0 0.0
    %3155 = vmatpush1.msra.mxu0 %v2969
    %3156 = vmatprep.subr.mxu0 0.0
    %3157 = vmatpush1.msra.mxu0 %v2970
    %3158 = vmatprep.subr.mxu0 0.0
    %3159 = vmatpush1.msra.mxu0 %v2971
    %3160 = vmatprep.subr.mxu0 0.0
    %3161 = vmatpush1.msra.mxu0 %v2972
    %3162 = vmatprep.mubr.f32.mxu0 %v2905
    %3163 = vmatmul.mubr.f32.gmra.mrb[0].mxu0 %v2904
    %v3164 = vpop.f32.mrb[0].mxu0
    %v3165 = vadd.f32 %v3095, %v3164
    %v3166 = vpop.f32.mrb[0].mxu0
    %3167 = vdwg.mxu0
    %3168 = vmatprep.subr.mxu0 0.0
    %3169 = vmatpush1.msra.mxu0 %v2973
    %3170 = vmatprep.subr.mxu0 0.0
    %3171 = vmatpush1.msra.mxu0 %v2974
    %3172 = vmatprep.subr.mxu0 0.0
    %3173 = vmatpush1.msra.mxu0 %v2975
    %3174 = vmatprep.subr.mxu0 0.0
    %3175 = vmatpush1.msra.mxu0 %v2976
    %3176 = vmatprep.subr.mxu0 0.0
    %3177 = vmatpush1.msra.mxu0 %v2977
    %3178 = vmatprep.subr.mxu0 0.0
    %3179 = vmatpush1.msra.mxu0 %v2978
    %3180 = vmatprep.subr.mxu0 0.0
    %3181 = vmatpush1.msra.mxu0 %v2979
    %3182 = vmatprep.subr.mxu0 0.0
    %3183 = vmatpush1.msra.mxu0 %v2980
    %3184 = vmatprep.subr.mxu0 0.0
    %3185 = vmatpush1.msra.mxu0 %v2981
    %3186 = vmatprep.subr.mxu0 0.0
    %3187 = vmatpush1.msra.mxu0 %v2982
    %3188 = vmatprep.subr.mxu0 0.0
    %3189 = vmatpush1.msra.mxu0 %v2983
    %3190 = vmatprep.subr.mxu0 0.0
    %3191 = vmatpush1.msra.mxu0 %v2984
    %3192 = vmatprep.subr.mxu0 0.0
    %3193 = vmatpush1.msra.mxu0 %v2985
    %3194 = vmatprep.subr.mxu0 0.0
    %3195 = vmatpush1.msra.mxu0 %v2986
    %3196 = vmatprep.subr.mxu0 0.0
    %3197 = vmatpush1.msra.mxu0 %v2987
    %3198 = vmatprep.subr.mxu0 0.0
    %3199 = vmatpush1.msra.mxu0 %v2988
    %3200 = vmatprep.subr.mxu0 0.0
    %3201 = vmatpush1.msra.mxu0 %v2989
    %3202 = vmatprep.subr.mxu0 0.0
    %3203 = vmatpush1.msra.mxu0 %v2990
    %3204 = vmatprep.subr.mxu0 0.0
    %3205 = vmatpush1.msra.mxu0 %v2991
    %3206 = vmatprep.subr.mxu0 0.0
    %3207 = vmatpush1.msra.mxu0 %v2992
    %3208 = vmatprep.subr.mxu0 0.0
    %3209 = vmatpush1.msra.mxu0 %v2993
    %3210 = vmatprep.subr.mxu0 0.0
    %3211 = vmatpush1.msra.mxu0 %v2994
    %3212 = vmatprep.subr.mxu0 0.0
    %3213 = vmatpush1.msra.mxu0 %v2995
    %3214 = vmatprep.subr.mxu0 0.0
    %3215 = vmatpush1.msra.mxu0 %v2996
    %3216 = vmatprep.subr.mxu0 0.0
    %3217 = vmatpush1.msra.mxu0 %v2997
    %3218 = vmatprep.subr.mxu0 0.0
    %3219 = vmatpush1.msra.mxu0 %v2998
    %3220 = vmatprep.subr.mxu0 0.0
    %3221 = vmatpush1.msra.mxu0 %v2999
    %3222 = vmatprep.subr.mxu0 0.0
    %3223 = vmatpush1.msra.mxu0 %v3000
    %3224 = vmatprep.subr.mxu0 0.0
    %3225 = vmatpush1.msra.mxu0 %v3001
    %3226 = vmatprep.subr.mxu0 0.0
    %3227 = vmatpush1.msra.mxu0 %v3002
    %3228 = vmatprep.subr.mxu0 0.0
    %3229 = vmatpush1.msra.mxu0 %v3003
    %3230 = vmatprep.subr.mxu0 0.0
    %3231 = vmatpush1.msra.mxu0 %v3004
    %3232 = vmatprep.mubr.f32.mxu0 %v2907
    %3233 = vmatmul.mubr.f32.gmra.mrb[0].mxu0 %v2906
    %v3234 = vpop.f32.mrb[0].mxu0
    %v3235 = vadd.f32 %v3165, %v3234
    %v3236 = vpop.f32.mrb[0].mxu0
    %3237 = vdwg.mxu0
    %3238 = vmatprep.subr.mxu0 0.0
    %3239 = vmatpush1.msra.mxu0 %v3005
    %3240 = vmatprep.subr.mxu0 0.0
    %3241 = vmatpush1.msra.mxu0 %v3006
    %3242 = vmatprep.subr.mxu0 0.0
    %3243 = vmatpush1.msra.mxu0 %v3007
    %3244 = vmatprep.subr.mxu0 0.0
    %3245 = vmatpush1.msra.mxu0 %v3008
    %3246 = vmatprep.subr.mxu0 0.0
    %3247 = vmatpush1.msra.mxu0 %v3009
    %3248 = vmatprep.subr.mxu0 0.0
    %3249 = vmatpush1.msra.mxu0 %v3010
    %3250 = vmatprep.subr.mxu0 0.0
    %3251 = vmatpush1.msra.mxu0 %v3011
    %3252 = vmatprep.subr.mxu0 0.0
    %3253 = vmatpush1.msra.mxu0 %v3012
    %3254 = vmatprep.subr.mxu0 0.0
    %3255 = vmatpush1.msra.mxu0 %v3013
    %3256 = vmatprep.subr.mxu0 0.0
    %3257 = vmatpush1.msra.mxu0 %v3014
    %3258 = vmatprep.subr.mxu0 0.0
    %3259 = vmatpush1.msra.mxu0 %v3015
    %3260 = vmatprep.subr.mxu0 0.0
    %3261 = vmatpush1.msra.mxu0 %v3016
    %3262 = vmatprep.subr.mxu0 0.0
    %3263 = vmatpush1.msra.mxu0 %v3017
    %3264 = vmatprep.subr.mxu0 0.0
    %3265 = vmatpush1.msra.mxu0 %v3018
    %3266 = vmatprep.subr.mxu0 0.0
    %3267 = vmatpush1.msra.mxu0 %v3019
    %3268 = vmatprep.subr.mxu0 0.0
    %3269 = vmatpush1.msra.mxu0 %v3020
    %3270 = vmatprep.subr.mxu0 0.0
    %3271 = vmatpush1.msra.mxu0 0.0
    %3272 = vmatprep.subr.mxu0 0.0
    %3273 = vmatpush1.msra.mxu0 0.0
    %3274 = vmatprep.subr.mxu0 0.0
    %3275 = vmatpush1.msra.mxu0 0.0
    %3276 = vmatprep.subr.mxu0 0.0
    %3277 = vmatpush1.msra.mxu0 0.0
    %3278 = vmatprep.subr.mxu0 0.0
    %3279 = vmatpush1.msra.mxu0 0.0
    %3280 = vmatprep.subr.mxu0 0.0
    %3281 = vmatpush1.msra.mxu0 0.0
    %3282 = vmatprep.subr.mxu0 0.0
    %3283 = vmatpush1.msra.mxu0 0.0
    %3284 = vmatprep.subr.mxu0 0.0
    %3285 = vmatpush1.msra.mxu0 0.0
    %3286 = vmatprep.subr.mxu0 0.0
    %3287 = vmatpush1.msra.mxu0 0.0
    %3288 = vmatprep.subr.mxu0 0.0
    %3289 = vmatpush1.msra.mxu0 0.0
    %3290 = vmatprep.subr.mxu0 0.0
    %3291 = vmatpush1.msra.mxu0 0.0
    %3292 = vmatprep.subr.mxu0 0.0
    %3293 = vmatpush1.msra.mxu0 0.0
    %3294 = vmatprep.subr.mxu0 0.0
    %3295 = vmatpush1.msra.mxu0 0.0
    %3296 = vmatprep.subr.mxu0 0.0
    %3297 = vmatpush1.msra.mxu0 0.0
    %3298 = vmatprep.subr.mxu0 0.0
    %3299 = vmatpush1.msra.mxu0 0.0
    %3300 = vmatprep.subr.mxu0 0.0
    %3301 = vmatpush1.msra.mxu0 0.0
    %3302 = vmatprep.mubr.f32.mxu0 0.0
    %3303 = vmatmul.mubr.f32.gmra.mrb[0].mxu0 %v2908
    %v3304 = vpop.f32.mrb[0].mxu0
    %v3305 = vadd.f32 %v3235, %v3304
    %v3306 = vpop.f32.mrb[0].mxu0
    %3307 = vdwg.mxu0
    %v3308 = vmul.f32 %v3305, %v209
    %v3309 = vmul.f32 %v3308, 0.02
    %v3310 = vld [vmem:[%s12] sm:$0xff]
    %v3311 = vld [vmem:[%s12 + $0x8] sm:$0xff]
    %v3312 = vld [vmem:[%s12 + $0x10] sm:$0xff]
    %v3313 = vld [vmem:[%s12 + $0x18] sm:$0xff]
    %v3314 = vld [vmem:[%s12 + $0x20] sm:$0xff]
    %v3315 = vld [vmem:[%s12 + $0x28] sm:$0xff]
    %v3316 = vld [vmem:[%s12 + $0x30] sm:$0xff]
    %v3317 = vld [vmem:[%s12 + $0x38] sm:$0xff]
    %v3318 = vld [vmem:[%s12 + $0x40] sm:$0xff]
    %v3319 = vld [vmem:[%s12 + $0x48] sm:$0xff]
    %v3320 = vld [vmem:[%s12 + $0x50] sm:$0xff]
    %v3321 = vld [vmem:[%s12 + $0x58] sm:$0xff]
    %v3322 = vld [vmem:[%s12 + $0x60] sm:$0xff]
    %v3323 = vld [vmem:[%s12 + $0x68] sm:$0xff]
    %v3324 = vld [vmem:[%s12 + $0x70] sm:$0xff]
    %v3325 = vld [vmem:[%s12 + $0x78] sm:$0xff]
    %v3326 = vld [vmem:[%s12 + $0x80] sm:$0xff]
    %v3327 = vld [vmem:[%s12 + $0x88] sm:$0xff]
    %v3328 = vld [vmem:[%s12 + $0x90] sm:$0xff]
    %v3329 = vld [vmem:[%s12 + $0x98] sm:$0xff]
    %v3330 = vld [vmem:[%s12 + $0xa0] sm:$0xff]
    %v3331 = vld [vmem:[%s12 + $0xa8] sm:$0xff]
    %v3332 = vld [vmem:[%s12 + $0xb0] sm:$0xff]
    %v3333 = vld [vmem:[%s12 + $0xb8] sm:$0xff]
    %v3334 = vld [vmem:[%s12 + $0xc0] sm:$0xf]
    %v3335 = vld [vmem:[%s12 + $0xc8] sm:$0xf]
    %v3336 = vld [vmem:[#allocation18] sm:$0x3]
    %v3338 = vlaneseq
    %v3339 = vshrl.u32 %v3338, 7
    %v3340 = vsub.s32 0, %v3339
    %v3341 = vrot.slane %v3336, %v3340
    %v3342 = vlaneseq
    %v3343 = vshrl.u32 %v3342, 7
    %v3344 = vsub.s32 1, %v3343
    %v3345 = vrot.slane %v3336, %v3344
    %v3349 = vsel %vm231, %v210, 0
    %v3352 = vsel %vm235, %v3334, 0
    %v3355 = vsel %vm235, %v3335, 0
    %3357 = vmatprep.subr.mxu0 %v3311
    %3358 = vmatpush1.msra.mxu0 %v3310
    %3359 = vmatprep.subr.mxu0 %v3313
    %3360 = vmatpush1.msra.mxu0 %v3312
    %3361 = vmatprep.subr.mxu0 %v3315
    %3362 = vmatpush1.msra.mxu0 %v3314
    %3363 = vmatprep.subr.mxu0 %v3317
    %3364 = vmatpush1.msra.mxu0 %v3316
    %3365 = vmatprep.subr.mxu0 %v3319
    %3366 = vmatpush1.msra.mxu0 %v3318
    %3367 = vmatprep.subr.mxu0 %v3321
    %3368 = vmatpush1.msra.mxu0 %v3320
    %3369 = vmatprep.subr.mxu0 %v3323
    %3370 = vmatpush1.msra.mxu0 %v3322
    %3371 = vmatprep.subr.mxu0 %v3325
    %3372 = vmatpush1.msra.mxu0 %v3324
    %3373 = vmatprep.subr.mxu0 %v3327
    %3374 = vmatpush1.msra.mxu0 %v3326
    %3375 = vmatprep.subr.mxu0 %v3329
    %3376 = vmatpush1.msra.mxu0 %v3328
    %3377 = vmatprep.subr.mxu0 %v3331
    %3378 = vmatpush1.msra.mxu0 %v3330
    %3379 = vmatprep.subr.mxu0 %v3333
    %3380 = vmatpush1.msra.mxu0 %v3332
    %3381 = vmatprep.subr.mxu0 %v3355
    %3382 = vmatpush1.msra.mxu0 %v3352
    %3383 = vmatprep.subr.mxu0 0.0
    %3384 = vmatpush1.msra.mxu0 0.0
    %3385 = vmatprep.subr.mxu0 0.0
    %3386 = vmatpush1.msra.mxu0 0.0
    %3387 = vmatprep.subr.mxu0 0.0
    %3388 = vmatpush1.msra.mxu0 0.0
    %3389 = vmatprep.subr.mxu0 0.0
    %3390 = vmatpush1.msra.mxu0 0.0
    %3391 = vmatprep.subr.mxu0 0.0
    %3392 = vmatpush1.msra.mxu0 0.0
    %3393 = vmatprep.subr.mxu0 0.0
    %3394 = vmatpush1.msra.mxu0 0.0
    %3395 = vmatprep.subr.mxu0 0.0
    %3396 = vmatpush1.msra.mxu0 0.0
    %3397 = vmatprep.subr.mxu0 0.0
    %3398 = vmatpush1.msra.mxu0 0.0
    %3399 = vmatprep.subr.mxu0 0.0
    %3400 = vmatpush1.msra.mxu0 0.0
    %3401 = vmatprep.subr.mxu0 0.0
    %3402 = vmatpush1.msra.mxu0 0.0
    %3403 = vmatprep.subr.mxu0 0.0
    %3404 = vmatpush1.msra.mxu0 0.0
    %3405 = vmatprep.subr.mxu0 0.0
    %3406 = vmatpush1.msra.mxu0 0.0
    %3407 = vmatprep.subr.mxu0 0.0
    %3408 = vmatpush1.msra.mxu0 0.0
    %3409 = vmatprep.subr.mxu0 0.0
    %3410 = vmatpush1.msra.mxu0 0.0
    %3411 = vmatprep.subr.mxu0 0.0
    %3412 = vmatpush1.msra.mxu0 0.0
    %3413 = vmatprep.subr.mxu0 0.0
    %3414 = vmatpush1.msra.mxu0 0.0
    %3415 = vmatprep.subr.mxu0 0.0
    %3416 = vmatpush1.msra.mxu0 0.0
    %3417 = vmatprep.subr.mxu0 0.0
    %3418 = vmatpush1.msra.mxu0 0.0
    %3419 = vmatprep.subr.mxu0 0.0
    %3420 = vmatpush1.msra.mxu0 0.0
    %3421 = vmatprep.mubr.f32.mxu0 0.0
    %3422 = vmatmul.mubr.f32.gmra.mrb[0].mxu0 %v233
    %v3423 = vpop.f32.mrb[0].mxu0
    %v3424 = vadd.f32 %v3341, %v3423
    %v3425 = vpop.f32.mrb[0].mxu0
    %v3426 = vadd.f32 %v3345, %v3425
    %3427 = vmatprep.mubr.f32.mxu0 0.0
    %3428 = vmatmul.mubr.f32.gmra.mrb[0].mxu0 %v3349
    %v3429 = vpop.f32.mrb[0].mxu0
    %v3430 = vadd.f32 %v3341, %v3429
    %v3431 = vpop.f32.mrb[0].mxu0
    %v3432 = vadd.f32 %v3345, %v3431
    %3433 = vdwg.mxu0
    %v3434 = vmax.f32 %v3424, 0.0
    %v3435 = vmax.f32 %v3426, 0.0
    %v3436 = vmax.f32 %v3430, 0.0
    %v3437 = vmax.f32 %v3432, 0.0
    %v3438 = vld [vmem:[#allocation20] sm:$0xff]
    %v3439 = vld [vmem:[#allocation20 + $0x8] sm:$0xff]
    %v3440 = vld [vmem:[#allocation20 + $0x10] sm:$0xff]
    %v3441 = vld [vmem:[#allocation20 + $0x18] sm:$0xff]
    %v3442 = vld [vmem:[#allocation20 + $0x20] sm:$0xff]
    %v3443 = vld [vmem:[#allocation20 + $0x28] sm:$0xff]
    %v3444 = vld [vmem:[#allocation20 + $0x30] sm:$0xff]
    %v3445 = vld [vmem:[#allocation20 + $0x38] sm:$0xff]
    %v3446 = vld [vmem:[#allocation20 + $0x40] sm:$0xff]
    %v3447 = vld [vmem:[#allocation20 + $0x48] sm:$0xff]
    %v3448 = vld [vmem:[#allocation20 + $0x50] sm:$0xff]
    %v3449 = vld [vmem:[#allocation20 + $0x58] sm:$0xff]
    %v3450 = vld [vmem:[#allocation20 + $0x60] sm:$0xff]
    %v3451 = vld [vmem:[#allocation20 + $0x68] sm:$0xff]
    %v3452 = vld [vmem:[#allocation20 + $0x70] sm:$0xff]
    %v3453 = vld [vmem:[#allocation20 + $0x78] sm:$0xff]
    %v3454 = vld [vmem:[#allocation20 + $0x80] sm:$0xff]
    %v3455 = vld [vmem:[#allocation20 + $0x88] sm:$0xff]
    %v3456 = vld [vmem:[#allocation20 + $0x90] sm:$0xff]
    %v3457 = vld [vmem:[#allocation20 + $0x98] sm:$0xff]
    %v3458 = vld [vmem:[#allocation20 + $0xa0] sm:$0xff]
    %v3459 = vld [vmem:[#allocation20 + $0xa8] sm:$0xff]
    %v3460 = vld [vmem:[#allocation20 + $0xb0] sm:$0xff]
    %v3461 = vld [vmem:[#allocation20 + $0xb8] sm:$0xff]
    %v3462 = vld [vmem:[#allocation20 + $0xc0] sm:$0xff]
    %v3463 = vld [vmem:[#allocation20 + $0xc8] sm:$0xff]
    %v3464 = vld [vmem:[#allocation20 + $0xd0] sm:$0xff]
    %v3465 = vld [vmem:[#allocation20 + $0xd8] sm:$0xff]
    %v3466 = vld [vmem:[#allocation20 + $0xe0] sm:$0xff]
    %v3467 = vld [vmem:[#allocation20 + $0xe8] sm:$0xff]
    %v3468 = vld [vmem:[#allocation20 + $0xf0] sm:$0xff]
    %v3469 = vld [vmem:[#allocation20 + $0xf8] sm:$0xff]
    %v3470 = vld [vmem:[#allocation20 + $0x100] sm:$0xff]
    %v3471 = vld [vmem:[#allocation20 + $0x108] sm:$0xff]
    %v3472 = vld [vmem:[#allocation20 + $0x110] sm:$0xff]
    %v3473 = vld [vmem:[#allocation20 + $0x118] sm:$0xff]
    %v3474 = vld [vmem:[#allocation20 + $0x120] sm:$0xff]
    %v3475 = vld [vmem:[#allocation20 + $0x128] sm:$0xff]
    %v3476 = vld [vmem:[#allocation20 + $0x130] sm:$0xff]
    %v3477 = vld [vmem:[#allocation20 + $0x138] sm:$0xff]
    %v3478 = vld [vmem:[#allocation20 + $0x140] sm:$0xff]
    %v3479 = vld [vmem:[#allocation20 + $0x148] sm:$0xff]
    %v3480 = vld [vmem:[#allocation20 + $0x150] sm:$0xff]
    %v3481 = vld [vmem:[#allocation20 + $0x158] sm:$0xff]
    %v3482 = vld [vmem:[#allocation20 + $0x160] sm:$0xff]
    %v3483 = vld [vmem:[#allocation20 + $0x168] sm:$0xff]
    %v3484 = vld [vmem:[#allocation20 + $0x170] sm:$0xff]
    %v3485 = vld [vmem:[#allocation20 + $0x178] sm:$0xff]
    %v3486 = vld [vmem:[#allocation20 + $0x180] sm:$0xff]
    %v3487 = vld [vmem:[#allocation20 + $0x188] sm:$0xff]
    %v3488 = vld [vmem:[#allocation21] sm:$0x3]
    %v3490 = vlaneseq
    %v3491 = vshrl.u32 %v3490, 7
    %v3492 = vsub.s32 0, %v3491
    %v3493 = vrot.slane %v3488, %v3492
    %v3494 = vlaneseq
    %v3495 = vshrl.u32 %v3494, 7
    %v3496 = vsub.s32 1, %v3495
    %v3497 = vrot.slane %v3488, %v3496
    %vm3500 = vcmask 588800
    %v3502 = vsel %vm3500, %v3435, 0
    %v3505 = vsel %vm3500, %v3437, 0
    %3507 = vmatprep.subr.mxu0 %v3439
    %3508 = vmatpush1.msra.mxu0 %v3438
    %3509 = vmatprep.subr.mxu0 %v3441
    %3510 = vmatpush1.msra.mxu0 %v3440
    %3511 = vmatprep.subr.mxu0 %v3443
    %3512 = vmatpush1.msra.mxu0 %v3442
    %3513 = vmatprep.subr.mxu0 %v3445
    %3514 = vmatpush1.msra.mxu0 %v3444
    %3515 = vmatprep.subr.mxu0 %v3447
    %3516 = vmatpush1.msra.mxu0 %v3446
    %3517 = vmatprep.subr.mxu0 %v3449
    %3518 = vmatpush1.msra.mxu0 %v3448
    %3519 = vmatprep.subr.mxu0 %v3451
    %3520 = vmatpush1.msra.mxu0 %v3450
    %3521 = vmatprep.subr.mxu0 %v3453
    %3522 = vmatpush1.msra.mxu0 %v3452
    %3523 = vmatprep.subr.mxu0 %v3455
    %3524 = vmatpush1.msra.mxu0 %v3454
    %3525 = vmatprep.subr.mxu0 %v3457
    %3526 = vmatpush1.msra.mxu0 %v3456
    %3527 = vmatprep.subr.mxu0 %v3459
    %3528 = vmatpush1.msra.mxu0 %v3458
    %3529 = vmatprep.subr.mxu0 %v3461
    %3530 = vmatpush1.msra.mxu0 %v3460
    %3531 = vmatprep.subr.mxu0 %v3463
    %3532 = vmatpush1.msra.mxu0 %v3462
    %3533 = vmatprep.subr.mxu0 %v3465
    %3534 = vmatpush1.msra.mxu0 %v3464
    %3535 = vmatprep.subr.mxu0 %v3467
    %3536 = vmatpush1.msra.mxu0 %v3466
    %3537 = vmatprep.subr.mxu0 %v3469
    %3538 = vmatpush1.msra.mxu0 %v3468
    %3539 = vmatprep.subr.mxu0 %v3471
    %3540 = vmatpush1.msra.mxu0 %v3470
    %3541 = vmatprep.subr.mxu0 %v3473
    %3542 = vmatpush1.msra.mxu0 %v3472
    %3543 = vmatprep.subr.mxu0 %v3475
    %3544 = vmatpush1.msra.mxu0 %v3474
    %3545 = vmatprep.subr.mxu0 %v3477
    %3546 = vmatpush1.msra.mxu0 %v3476
    %3547 = vmatprep.subr.mxu0 %v3479
    %3548 = vmatpush1.msra.mxu0 %v3478
    %3549 = vmatprep.subr.mxu0 %v3481
    %3550 = vmatpush1.msra.mxu0 %v3480
    %3551 = vmatprep.subr.mxu0 %v3483
    %3552 = vmatpush1.msra.mxu0 %v3482
    %3553 = vmatprep.subr.mxu0 %v3485
    %3554 = vmatpush1.msra.mxu0 %v3484
    %3555 = vmatprep.subr.mxu0 %v3487
    %3556 = vmatpush1.msra.mxu0 %v3486
    %3557 = vmatprep.subr.mxu0 0.0
    %3558 = vmatpush1.msra.mxu0 0.0
    %3559 = vmatprep.subr.mxu0 0.0
    %3560 = vmatpush1.msra.mxu0 0.0
    %3561 = vmatprep.subr.mxu0 0.0
    %3562 = vmatpush1.msra.mxu0 0.0
    %3563 = vmatprep.subr.mxu0 0.0
    %3564 = vmatpush1.msra.mxu0 0.0
    %3565 = vmatprep.subr.mxu0 0.0
    %3566 = vmatpush1.msra.mxu0 0.0
    %3567 = vmatprep.subr.mxu0 0.0
    %3568 = vmatpush1.msra.mxu0 0.0
    %3569 = vmatprep.subr.mxu0 0.0
    %3570 = vmatpush1.msra.mxu0 0.0
    %3571 = vmatprep.mubr.f32.mxu0 %v3502
    %3572 = vmatmul.mubr.f32.gmra.mrb[0].mxu0 %v3434
    %v3573 = vpop.f32.mrb[0].mxu0
    %v3574 = vadd.f32 %v3493, %v3573
    %v3575 = vpop.f32.mrb[0].mxu0
    %v3576 = vadd.f32 %v3497, %v3575
    %3577 = vmatprep.mubr.f32.mxu0 %v3505
    %3578 = vmatmul.mubr.f32.gmra.mrb[0].mxu0 %v3436
    %v3579 = vpop.f32.mrb[0].mxu0
    %v3580 = vadd.f32 %v3493, %v3579
    %v3581 = vpop.f32.mrb[0].mxu0
    %v3582 = vadd.f32 %v3497, %v3581
    %3583 = vdwg.mxu0
    %v3584 = vmax.f32 %v3574, 0.0
    %v3585 = vmax.f32 %v3576, 0.0
    %v3586 = vmax.f32 %v3580, 0.0
    %v3587 = vmax.f32 %v3582, 0.0
    %v3588 = vld [vmem:[%s16] sm:$0xff]
    %v3589 = vld [vmem:[%s16 + $0x8] sm:$0xff]
    %v3590 = vld [vmem:[%s16 + $0x10] sm:$0xff]
    %v3591 = vld [vmem:[%s16 + $0x18] sm:$0xff]
    %v3592 = vld [vmem:[%s16 + $0x20] sm:$0xff]
    %v3593 = vld [vmem:[%s16 + $0x28] sm:$0xff]
    %v3594 = vld [vmem:[%s16 + $0x30] sm:$0xff]
    %v3595 = vld [vmem:[%s16 + $0x38] sm:$0xff]
    %v3596 = vld [vmem:[%s16 + $0x40] sm:$0xff]
    %v3597 = vld [vmem:[%s16 + $0x48] sm:$0xff]
    %v3598 = vld [vmem:[%s16 + $0x50] sm:$0xff]
    %v3599 = vld [vmem:[%s16 + $0x58] sm:$0xff]
    %v3600 = vld [vmem:[%s16 + $0x60] sm:$0xff]
    %v3601 = vld [vmem:[%s16 + $0x68] sm:$0xff]
    %v3602 = vld [vmem:[%s16 + $0x70] sm:$0xff]
    %v3603 = vld [vmem:[%s16 + $0x78] sm:$0xff]
    %v3604 = vld [vmem:[%s16 + $0x80] sm:$0xff]
    %v3605 = vld [vmem:[%s16 + $0x88] sm:$0xff]
    %v3606 = vld [vmem:[%s16 + $0x90] sm:$0xff]
    %v3607 = vld [vmem:[%s16 + $0x98] sm:$0xff]
    %v3608 = vld [vmem:[%s16 + $0xa0] sm:$0xff]
    %v3609 = vld [vmem:[%s16 + $0xa8] sm:$0xff]
    %v3610 = vld [vmem:[%s16 + $0xb0] sm:$0xff]
    %v3611 = vld [vmem:[%s16 + $0xb8] sm:$0xff]
    %v3612 = vld [vmem:[%s16 + $0xc0] sm:$0xff]
    %v3613 = vld [vmem:[#allocation2] sm:$0x1]
    %v3615 = vlaneseq
    %v3616 = vshrl.u32 %v3615, 7
    %v3617 = vsub.s32 0, %v3616
    %v3618 = vrot.slane %v3613, %v3617
    %v3621 = vsel %vm3500, %v3585, 0
    %v3624 = vsel %vm3500, %v3587, 0
    %3626 = vmatprep.subr.mxu0 0.0
    %3627 = vmatpush1.msra.mxu0 %v3588
    %3628 = vmatprep.subr.mxu0 0.0
    %3629 = vmatpush1.msra.mxu0 %v3589
    %3630 = vmatprep.subr.mxu0 0.0
    %3631 = vmatpush1.msra.mxu0 %v3590
    %3632 = vmatprep.subr.mxu0 0.0
    %3633 = vmatpush1.msra.mxu0 %v3591
    %3634 = vmatprep.subr.mxu0 0.0
    %3635 = vmatpush1.msra.mxu0 %v3592
    %3636 = vmatprep.subr.mxu0 0.0
    %3637 = vmatpush1.msra.mxu0 %v3593
    %3638 = vmatprep.subr.mxu0 0.0
    %3639 = vmatpush1.msra.mxu0 %v3594
    %3640 = vmatprep.subr.mxu0 0.0
    %3641 = vmatpush1.msra.mxu0 %v3595
    %3642 = vmatprep.subr.mxu0 0.0
    %3643 = vmatpush1.msra.mxu0 %v3596
    %3644 = vmatprep.subr.mxu0 0.0
    %3645 = vmatpush1.msra.mxu0 %v3597
    %3646 = vmatprep.subr.mxu0 0.0
    %3647 = vmatpush1.msra.mxu0 %v3598
    %3648 = vmatprep.subr.mxu0 0.0
    %3649 = vmatpush1.msra.mxu0 %v3599
    %3650 = vmatprep.subr.mxu0 0.0
    %3651 = vmatpush1.msra.mxu0 %v3600
    %3652 = vmatprep.subr.mxu0 0.0
    %3653 = vmatpush1.msra.mxu0 %v3601
    %3654 = vmatprep.subr.mxu0 0.0
    %3655 = vmatpush1.msra.mxu0 %v3602
    %3656 = vmatprep.subr.mxu0 0.0
    %3657 = vmatpush1.msra.mxu0 %v3603
    %3658 = vmatprep.subr.mxu0 0.0
    %3659 = vmatpush1.msra.mxu0 %v3604
    %3660 = vmatprep.subr.mxu0 0.0
    %3661 = vmatpush1.msra.mxu0 %v3605
    %3662 = vmatprep.subr.mxu0 0.0
    %3663 = vmatpush1.msra.mxu0 %v3606
    %3664 = vmatprep.subr.mxu0 0.0
    %3665 = vmatpush1.msra.mxu0 %v3607
    %3666 = vmatprep.subr.mxu0 0.0
    %3667 = vmatpush1.msra.mxu0 %v3608
    %3668 = vmatprep.subr.mxu0 0.0
    %3669 = vmatpush1.msra.mxu0 %v3609
    %3670 = vmatprep.subr.mxu0 0.0
    %3671 = vmatpush1.msra.mxu0 %v3610
    %3672 = vmatprep.subr.mxu0 0.0
    %3673 = vmatpush1.msra.mxu0 %v3611
    %3674 = vmatprep.subr.mxu0 0.0
    %3675 = vmatpush1.msra.mxu0 %v3612
    %3676 = vmatprep.subr.mxu0 0.0
    %3677 = vmatpush1.msra.mxu0 0.0
    %3678 = vmatprep.subr.mxu0 0.0
    %3679 = vmatpush1.msra.mxu0 0.0
    %3680 = vmatprep.subr.mxu0 0.0
    %3681 = vmatpush1.msra.mxu0 0.0
    %3682 = vmatprep.subr.mxu0 0.0
    %3683 = vmatpush1.msra.mxu0 0.0
    %3684 = vmatprep.subr.mxu0 0.0
    %3685 = vmatpush1.msra.mxu0 0.0
    %3686 = vmatprep.subr.mxu0 0.0
    %3687 = vmatpush1.msra.mxu0 0.0
    %3688 = vmatprep.subr.mxu0 0.0
    %3689 = vmatpush1.msra.mxu0 0.0
    %3690 = vmatprep.mubr.f32.mxu0 %v3621
    %3691 = vmatmul.mubr.f32.gmra.mrb[0].mxu0 %v3584
    %v3692 = vpop.f32.mrb[0].mxu0
    %v3693 = vadd.f32 %v3618, %v3692
    %v3694 = vpop.f32.mrb[0].mxu0
    %3695 = vmatprep.mubr.f32.mxu0 %v3624
    %3696 = vmatmul.mubr.f32.gmra.mrb[0].mxu0 %v3586
    %v3697 = vpop.f32.mrb[0].mxu0
    %v3698 = vadd.f32 %v3618, %v3697
    %v3699 = vpop.f32.mrb[0].mxu0
    %3700 = vdwg.mxu0
    %v3701 = vmul.f32 %v3693, %v3693
    %v3702 = vmul.f32 %v3698, %v3698
    %v3703 = vmul.f32 %v209, %v209
    %v3704 = vsel %vm231, %v3703, 0.0
    %3705 = vadd.xlane.f32.xlu0 %v3704
    %v3706 = vpop.xlane.xlu0 %3705
    %v3707 = vrot.slane %v3706, 4
    %v3708 = vadd.f32 %v3706, %v3707
    %v3709 = vrot.slane %v3708, 2
    %v3710 = vadd.f32 %v3708, %v3709
    %v3711 = vrot.slane %v3710, 1
    %v3712 = vadd.f32 %v3710, %v3711
    %s3713 = vtos %v3712
    %v3714 = vstv %s3713
    %v3715 = vrcp.pop %v3714
    %v3716 = vsub.f32 0.0, %v3715
    %v3717 = vmul.f32 %v3716, 1.442695
    %v3718 = vpow.pop %v3717
    %v3719 = vmul.f32 %v3718, 0.0001
    %v3720 = vadd.f32 %v3701, %v3719
    %3722 = vrot.lane.b32.xlu0 %v3309, 4
    %v3723 = vpop.permute.xlu0 %3722
    %3726 = vrot.lane.b32.xlu0 %v3720, 104
    %v3727 = vpop.permute.xlu0 %3726
    %3730 = vrot.lane.b32.xlu0 %v3702, 105
    %v3731 = vpop.permute.xlu0 %3730
    %vm3733 = vcmask 31744
    %v3734 = vsel %vm3733, %v395, %v3723
    %vm3735 = vcmask 850944
    %v3736 = vsel %vm3735, %v3734, %v3727
    %vm3737 = vcmask 859136
    %v3738 = vsel %vm3737, %v3736, %v3731
    %vm3739 = vcmask 867328
    %v3740 = vsel %vm3739, %v3738, 0.0
    %3741 = vst [vmem:[#allocation23] sm:$0xff] %v3740
    // Predicated region
    $region122: #{tpu_custom_call.1} parent=1 // pred_check
      _
    $region123: #{tpu_custom_call.1} parent=1 // pred_check_branch
      %3743 = sbr.rel (0) target = $region125
    $region124: #{tpu_custom_call.1} parent=1 // pred_region
      %s3745 = ssub.s32 128, 128
      %3746 = vsyncadd [#allocation5], %s3745
      %s3748 = sshll.u32 [#allocation23], 4
      %s3749 = int_to_ptr.vmem [resolvable:$true] %s3748
      %3751 = dma.vmem_to_hbm [thread:$0]  %s3749, 128, %s18, [#allocation5]
    $region125: #{tpu_custom_call.1} parent=1 // pred_fallthru
      _
    // Predicated region
    $region126: #{tpu_custom_call.1} parent=1 // pred_check
      _
    $region127: #{tpu_custom_call.1} parent=1 // pred_check_branch
      %3753 = sbr.rel (0) target = $region129
    $region128: #{tpu_custom_call.1} parent=1 // pred_region
      %3754 = dma.done [#allocation5], 128
    $region129: #{tpu_custom_call.1} parent=1 // pred_fallthru
      _
    %3755 = vsyncpa [#allocation4], 1
    %3756 = vsyncpa [#allocation7], 1
    %3757 = vsyncpa [#allocation10], 1
    %3758 = vsyncpa [#allocation13], 1
    %3759 = vsyncpa [#allocation16], 1
    %3760 = vsyncpa [#allocation19], 1
    %3761 = vsyncpa [#allocation22], 1
    %3762 = vsyncpa [#allocation5], 1

</llo_original>
